<compile_context>
chip_gen: v5e
topology: v5e:2x2
jax: 0.10.0
libtpu: 0.0.40
codegen_flags: <defaults>
</compile_context>

<pallas_src>
import functools

import jax
import jax.numpy as jnp
from jax.experimental import pallas as pl
from jax.experimental.pallas import tpu as pltpu


def _round_up(x, m):
    return ((x + m - 1) // m) * m


# ----------------------------------------------------------------------------
# Pallas kernels
# ----------------------------------------------------------------------------
def _matmul_bias_acc_kernel(a_ref, b_ref, bias_ref, o_ref, acc_ref, *, apply_relu):
    """Tiled matmul with K-reduction accumulator, fused bias (+ optional ReLU)."""
    @pl.when(pl.program_id(2) == 0)
    def _():
        acc_ref[...] = jnp.zeros_like(acc_ref)

    acc_ref[...] += jnp.dot(a_ref[...], b_ref[...],
                            preferred_element_type=jnp.float32)

    @pl.when(pl.program_id(2) == pl.num_programs(2) - 1)
    def _():
        out = acc_ref[...] + bias_ref[...]          # (tm,tn) + (1,tn)
        if apply_relu:
            out = jnp.maximum(out, 0.0)
        o_ref[...] = out.astype(o_ref.dtype)


def _matmul_bias_single_kernel(a_ref, b_ref, bias_ref, o_ref, *, apply_relu):
    """Single-K-step matmul: no accumulator scratch needed."""
    out = jnp.dot(a_ref[...], b_ref[...],
                  preferred_element_type=jnp.float32) + bias_ref[...]
    if apply_relu:
        out = jnp.maximum(out, 0.0)
    o_ref[...] = out.astype(o_ref.dtype)


def _max4_kernel(a_ref, b_ref, c_ref, d_ref, o_ref):
    """Elementwise max of 4 arrays == 2x2 max-pool over pre-strided views."""
    o_ref[...] = jnp.maximum(jnp.maximum(a_ref[...], b_ref[...]),
                             jnp.maximum(c_ref[...], d_ref[...]))


# ----------------------------------------------------------------------------
# Wrappers
# ----------------------------------------------------------------------------
def pallas_matmul_bias(a, b, bias, *, relu, tm=256, tn=None, tk=None):
    """relu_maybe(a @ b + bias) with a Pallas tiled MXU matmul.

    a: (M, K) f32, b: (K, N) f32, bias: (N,) f32.
    Caller picks tn/tk so they divide N/K exactly (None -> full dim, single tile);
    only M is padded (to a multiple of 8 / tm) and sliced back off.
    """
    M, K = a.shape
    K2, N = b.shape
    assert K == K2 and bias.shape == (N,)
    tn = N if tn is None else tn
    tk = K if tk is None else tk
    assert N % tn == 0 and K % tk == 0, (N, tn, K, tk)

    tm = min(tm, _round_up(M, 8))
    Mp = _round_up(M, tm)
    a_p = jnp.pad(a, ((0, Mp - M), (0, 0))) if Mp != M else a
    bias2d = bias.reshape(1, N)

    grid = (Mp // tm, N // tn, K // tk)
    if grid[2] == 1:
        kernel = functools.partial(_matmul_bias_single_kernel, apply_relu=relu)
        scratch = []
    else:
        kernel = functools.partial(_matmul_bias_acc_kernel, apply_relu=relu)
        scratch = [pltpu.VMEM((tm, tn), jnp.float32)]

    out = pl.pallas_call(
        kernel,
        out_shape=jax.ShapeDtypeStruct((Mp, N), jnp.float32),
        grid_spec=pltpu.PrefetchScalarGridSpec(
            num_scalar_prefetch=0,
            grid=grid,
            in_specs=[
                pl.BlockSpec((tm, tk), lambda i, j, k: (i, k)),
                pl.BlockSpec((tk, tn), lambda i, j, k: (k, j)),
                pl.BlockSpec((1, tn), lambda i, j, k: (0, j)),
            ],
            out_specs=pl.BlockSpec((tm, tn), lambda i, j, k: (i, j)),
            scratch_shapes=scratch,
        ),
        compiler_params=pltpu.CompilerParams(
            dimension_semantics=("parallel", "parallel", "arbitrary")),
    )(a_p, b, bias2d)
    return out[:M] if Mp != M else out


def pallas_maxpool2x2(x_nhwc):
    """MaxPool2d(kernel=2, stride=2), trailing odd row/col dropped (PyTorch floor).

    Views are flattened to (B*Ho, Wo*C) so the kernel's lane dim is a multiple of
    128 (896 for both layers) -> unmasked, lane-dense loads/stores.
    """
    B, H, W, C = x_nhwc.shape
    Ho, Wo = H // 2, W // 2
    x = x_nhwc[:, : 2 * Ho, : 2 * Wo, :]
    a = x[:, 0::2, 0::2, :].reshape(B * Ho, Wo * C)
    b = x[:, 0::2, 1::2, :].reshape(B * Ho, Wo * C)
    c = x[:, 1::2, 0::2, :].reshape(B * Ho, Wo * C)
    d = x[:, 1::2, 1::2, :].reshape(B * Ho, Wo * C)
    out = pl.pallas_call(
        _max4_kernel,
        out_shape=jax.ShapeDtypeStruct(a.shape, x.dtype),
    )(a, b, c, d)
    return out.reshape(B, Ho, Wo, C)


def _im2col_nhwc(x, k, pad):
    """im2col on NHWC input; patch flattening order is (KH, KW, C)."""
    B, H, W, C = x.shape
    Ho = H + 2 * pad - k + 1
    Wo = W + 2 * pad - k + 1
    xp = jnp.pad(x, ((0, 0), (pad, pad), (pad, pad), (0, 0)))
    patches = jnp.stack(
        [xp[:, kh:kh + Ho, kw:kw + Wo, :] for kh in range(k) for kw in range(k)],
        axis=3,
    )                                                # (B, Ho, Wo, k*k, C)
    cols = patches.reshape(B * Ho * Wo, k * k * C)
    return cols, Ho, Wo


# ----------------------------------------------------------------------------
# CNN forward (== PyTorch module semantics)
# ----------------------------------------------------------------------------
def cnn_forward(x, params):
    """x: (B, 1, 28, 28) NCHW f32. params: output of prepare_params()."""
    B = x.shape[0]
    x = jnp.transpose(x, (0, 2, 3, 1))                           # NHWC (C=1)

    # layer1: Conv2d(1, 64, k=4, s=1, p=2) + ReLU + MaxPool(2,2)
    cols, Ho, Wo = _im2col_nhwc(x, 4, 2)                         # (B*29*29, 16)
    y = pallas_matmul_bias(cols, params["conv1_w"], params["conv1_b"], relu=True)
    y = pallas_maxpool2x2(y.reshape(B, Ho, Wo, -1))              # (B, 14, 14, 64)

    # layer2: Conv2d(64, 128, k=4, s=1, p=2) + ReLU + MaxPool(2,2)
    cols, Ho, Wo = _im2col_nhwc(y, 4, 2)                         # (B*15*15, 1024)
    y = pallas_matmul_bias(cols, params["conv2_w"], params["conv2_b"], relu=True)
    y = pallas_maxpool2x2(y.reshape(B, Ho, Wo, -1))              # (B, 7, 7, 128)

    # fc: Linear(6272, 3136) + ReLU + Linear(3136, 10)
    # flatten in (h, w, c) order; fc1_w columns were pre-permuted to match
    # PyTorch's (c, h, w) flatten semantics.
    flat = y.reshape(B, -1)                                      # (B, 6272)
    h = pallas_matmul_bias(flat, params["fc1_w"], params["fc1_b"],
                           relu=True, tn=640, tk=896)            # (B, 3200)
    h = h[:, : params["fc2_w"].shape[0]]                         # drop N padding -> 3136
    out = pallas_matmul_bias(h, params["fc2_w"], params["fc2_b"], relu=False)
    return out                                                   # (B, 10)


# ----------------------------------------------------------------------------
# Parameter construction / preparation
# ----------------------------------------------------------------------------
def init_params(key):
    """Random params in the PyTorch module's native layouts."""
    ks = jax.random.split(key, 8)
    scale = 0.05
    return {
        "conv1_w": scale * jax.random.normal(ks[0], (64, 1, 4, 4), jnp.float32),
        "conv1_b": scale * jax.random.normal(ks[1], (64,), jnp.float32),
        "conv2_w": scale * jax.random.normal(ks[2], (128, 64, 4, 4), jnp.float32),
        "conv2_b": scale * jax.random.normal(ks[3], (128,), jnp.float32),
        "fc1_w": scale * jax.random.normal(ks[4], (7 * 7 * 64, 7 * 7 * 128), jnp.float32),
        "fc1_b": scale * jax.random.normal(ks[5], (7 * 7 * 64,), jnp.float32),
        "fc2_w": scale * jax.random.normal(ks[6], (10, 7 * 7 * 64), jnp.float32),
        "fc2_b": scale * jax.random.normal(ks[7], (10,), jnp.float32),
    }


def prepare_params(p):
    """One-time (outside jit) layout prep: transpose / permute / pad weights."""
    def conv_w_mat(w):                       # torch (O, C, KH, KW) -> (KH*KW*C, O)
        o = w.shape[0]
        return jnp.transpose(w, (2, 3, 1, 0)).reshape(-1, o)

    n_out, n_in = p["fc1_w"].shape           # (3136, 6272)
    c2 = p["conv2_w"].shape[0]               # 128
    s = int(round((n_in // c2) ** 0.5))      # 7
    # torch flattens (c, h, w); kernel activations are (h, w, c): permute columns,
    # transpose to (K, N) and pre-pad N to a multiple of 640 (lane-dense N tiles).
    fc1_w = jnp.transpose(p["fc1_w"].reshape(n_out, c2, s, s),
                          (2, 3, 1, 0)).reshape(n_in, n_out)
    n_pad = _round_up(n_out, 640) - n_out
    fc1_w = jnp.pad(fc1_w, ((0, 0), (0, n_pad)))
    fc1_b = jnp.pad(p["fc1_b"], (0, n_pad))
    return {
        "conv1_w": conv_w_mat(p["conv1_w"]), "conv1_b": p["conv1_b"],
        "conv2_w": conv_w_mat(p["conv2_w"]), "conv2_b": p["conv2_b"],
        "fc1_w": fc1_w, "fc1_b": fc1_b,
        "fc2_w": p["fc2_w"].T, "fc2_b": p["fc2_b"],
    }


if __name__ == "__main__":
    key = jax.random.PRNGKey(0)
    pkey, xkey = jax.random.split(key)
    params = prepare_params(init_params(pkey))

    # MNIST-shaped input (the module's fc layer fixes spatial size to 28x28).
    x = jax.random.normal(xkey, (2, 1, 28, 28), jnp.float32)   # NCHW

    fwd = jax.jit(cnn_forward)
    logits = fwd(x, params)
    jax.block_until_ready(logits)
    assert logits.shape == (2, 10) and logits.dtype == jnp.float32
    print("KERNEL_OK")
</pallas_src>

<mosaic_0001>
module attributes {stable_mosaic.version = 11 : i64} {
  func.func @_matmul_bias_single_kernel(%arg0: i32, %arg1: i32, %arg2: i32, %arg3: memref<256x16xf32, #tpu.memory_space<vmem>>, %arg4: memref<16x64xf32, #tpu.memory_space<vmem>>, %arg5: memref<1x64xf32, #tpu.memory_space<vmem>>, %arg6: memref<256x64xf32, #tpu.memory_space<vmem>>) attributes {dimension_semantics = [#tpu.dimension_semantics<parallel>, #tpu.dimension_semantics<parallel>, #tpu.dimension_semantics<arbitrary>], iteration_bounds = array<i64: 7, 1, 1>, scalar_prefetch = 0 : i64, scratch_operands = 0 : i64, tpu.core_type = #tpu.core_type<tc>, window_params = [{transform_indices = @transform_0, window_bounds = array<i64: 256, 16>}, {transform_indices = @transform_1, window_bounds = array<i64: 16, 64>}, {transform_indices = @transform_2, window_bounds = array<i64: 1, 64>}, {transform_indices = @transform_3, window_bounds = array<i64: 256, 64>}]} {
    %c0 = arith.constant 0 : index
    %c0_0 = arith.constant 0 : index
    %0 = vector.load %arg3[%c0, %c0_0] : memref<256x16xf32, #tpu.memory_space<vmem>>, vector<256x16xf32>
    %c0_1 = arith.constant 0 : index
    %c0_2 = arith.constant 0 : index
    %1 = vector.load %arg4[%c0_1, %c0_2] : memref<16x64xf32, #tpu.memory_space<vmem>>, vector<16x64xf32>
    %cst = arith.constant dense<0.000000e+00> : vector<256x64xf32>
    %2 = tpu.matmul %0, %1, %cst {dimension_numbers = #tpu.dot_dimension_numbers<[1], [0], [0], [1], [0, 0, 1, 1], [], []>} : vector<256x16xf32>, vector<16x64xf32>, vector<256x64xf32> -> vector<256x64xf32>
    %c0_3 = arith.constant 0 : index
    %c0_4 = arith.constant 0 : index
    %3 = vector.load %arg5[%c0_3, %c0_4] : memref<1x64xf32, #tpu.memory_space<vmem>>, vector<1x64xf32>
    %4 = vector.broadcast %3 : vector<1x64xf32> to vector<256x64xf32>
    %5 = arith.addf %2, %4 : vector<256x64xf32>
    %cst_5 = arith.constant 0.000000e+00 : f32
    %6 = vector.broadcast %cst_5 : f32 to vector<256x64xf32>
    %7 = arith.maximumf %5, %6 : vector<256x64xf32>
    %c0_6 = arith.constant 0 : index
    %c0_7 = arith.constant 0 : index
    %8 = vector.load %arg6[%c0_6, %c0_7] : memref<256x64xf32, #tpu.memory_space<vmem>>, vector<256x64xf32>
    tpu.vector_store %arg6[%c0_6, %c0_7], %7 {strides = array<i32>} : memref<256x64xf32, #tpu.memory_space<vmem>>, vector<256x64xf32>,
    return
  }
  func.func @transform_0(%arg0: i32, %arg1: i32, %arg2: i32) -> (i32, i32) {
    %c0_i32 = arith.constant 0 : i32
    return %arg0, %arg2 : i32, i32
  }
  func.func @transform_1(%arg0: i32, %arg1: i32, %arg2: i32) -> (i32, i32) {
    %c0_i32 = arith.constant 0 : i32
    return %arg2, %arg1 : i32, i32
  }
  func.func @transform_2(%arg0: i32, %arg1: i32, %arg2: i32) -> (i32, i32) {
    %c0_i32 = arith.constant 0 : i32
    %c0_i32_0 = arith.constant 0 : i32
    return %c0_i32, %arg1 : i32, i32
  }
  func.func @transform_3(%arg0: i32, %arg1: i32, %arg2: i32) -> (i32, i32) {
    %c0_i32 = arith.constant 0 : i32
    return %arg0, %arg1 : i32, i32
  }
}

module attributes {stable_mosaic.version = 11 : i64} {
  func.func @_max4_kernel(%arg0: memref<28x896xf32, #tpu.memory_space<vmem>>, %arg1: memref<28x896xf32, #tpu.memory_space<vmem>>, %arg2: memref<28x896xf32, #tpu.memory_space<vmem>>, %arg3: memref<28x896xf32, #tpu.memory_space<vmem>>, %arg4: memref<28x896xf32, #tpu.memory_space<vmem>>) attributes {dimension_semantics = [], scalar_prefetch = 0 : i64, scratch_operands = 0 : i64, tpu.core_type = #tpu.core_type<tc>} {
    %c0 = arith.constant 0 : index
    %c0_0 = arith.constant 0 : index
    %0 = vector.load %arg0[%c0, %c0_0] : memref<28x896xf32, #tpu.memory_space<vmem>>, vector<28x896xf32>
    %c0_1 = arith.constant 0 : index
    %c0_2 = arith.constant 0 : index
    %1 = vector.load %arg1[%c0_1, %c0_2] : memref<28x896xf32, #tpu.memory_space<vmem>>, vector<28x896xf32>
    %2 = arith.maximumf %0, %1 : vector<28x896xf32>
    %c0_3 = arith.constant 0 : index
    %c0_4 = arith.constant 0 : index
    %3 = vector.load %arg2[%c0_3, %c0_4] : memref<28x896xf32, #tpu.memory_space<vmem>>, vector<28x896xf32>
    %c0_5 = arith.constant 0 : index
    %c0_6 = arith.constant 0 : index
    %4 = vector.load %arg3[%c0_5, %c0_6] : memref<28x896xf32, #tpu.memory_space<vmem>>, vector<28x896xf32>
    %5 = arith.maximumf %3, %4 : vector<28x896xf32>
    %6 = arith.maximumf %2, %5 : vector<28x896xf32>
    %c0_7 = arith.constant 0 : index
    %c0_8 = arith.constant 0 : index
    %7 = vector.load %arg4[%c0_7, %c0_8] : memref<28x896xf32, #tpu.memory_space<vmem>>, vector<28x896xf32>
    tpu.vector_store %arg4[%c0_7, %c0_8], %6 {strides = array<i32>} : memref<28x896xf32, #tpu.memory_space<vmem>>, vector<28x896xf32>,
    return
  }
}

module attributes {stable_mosaic.version = 11 : i64} {
  func.func @_matmul_bias_single_kernel(%arg0: i32, %arg1: i32, %arg2: i32, %arg3: memref<256x1024xf32, #tpu.memory_space<vmem>>, %arg4: memref<1024x128xf32, #tpu.memory_space<vmem>>, %arg5: memref<1x128xf32, #tpu.memory_space<vmem>>, %arg6: memref<256x128xf32, #tpu.memory_space<vmem>>) attributes {dimension_semantics = [#tpu.dimension_semantics<parallel>, #tpu.dimension_semantics<parallel>, #tpu.dimension_semantics<arbitrary>], iteration_bounds = array<i64: 2, 1, 1>, scalar_prefetch = 0 : i64, scratch_operands = 0 : i64, tpu.core_type = #tpu.core_type<tc>, window_params = [{transform_indices = @transform_0, window_bounds = array<i64: 256, 1024>}, {transform_indices = @transform_1, window_bounds = array<i64: 1024, 128>}, {transform_indices = @transform_2, window_bounds = array<i64: 1, 128>}, {transform_indices = @transform_3, window_bounds = array<i64: 256, 128>}]} {
    %c0 = arith.constant 0 : index
    %c0_0 = arith.constant 0 : index
    %0 = vector.load %arg3[%c0, %c0_0] : memref<256x1024xf32, #tpu.memory_space<vmem>>, vector<256x1024xf32>
    %c0_1 = arith.constant 0 : index
    %c0_2 = arith.constant 0 : index
    %1 = vector.load %arg4[%c0_1, %c0_2] : memref<1024x128xf32, #tpu.memory_space<vmem>>, vector<1024x128xf32>
    %cst = arith.constant dense<0.000000e+00> : vector<256x128xf32>
    %2 = tpu.matmul %0, %1, %cst {dimension_numbers = #tpu.dot_dimension_numbers<[1], [0], [0], [1], [0, 0, 1, 1], [], []>} : vector<256x1024xf32>, vector<1024x128xf32>, vector<256x128xf32> -> vector<256x128xf32>
    %c0_3 = arith.constant 0 : index
    %c0_4 = arith.constant 0 : index
    %3 = vector.load %arg5[%c0_3, %c0_4] : memref<1x128xf32, #tpu.memory_space<vmem>>, vector<1x128xf32>
    %4 = vector.broadcast %3 : vector<1x128xf32> to vector<256x128xf32>
    %5 = arith.addf %2, %4 : vector<256x128xf32>
    %cst_5 = arith.constant 0.000000e+00 : f32
    %6 = vector.broadcast %cst_5 : f32 to vector<256x128xf32>
    %7 = arith.maximumf %5, %6 : vector<256x128xf32>
    %c0_6 = arith.constant 0 : index
    %c0_7 = arith.constant 0 : index
    %8 = vector.load %arg6[%c0_6, %c0_7] : memref<256x128xf32, #tpu.memory_space<vmem>>, vector<256x128xf32>
    tpu.vector_store %arg6[%c0_6, %c0_7], %7 {strides = array<i32>} : memref<256x128xf32, #tpu.memory_space<vmem>>, vector<256x128xf32>,
    return
  }
  func.func @transform_0(%arg0: i32, %arg1: i32, %arg2: i32) -> (i32, i32) {
    %c0_i32 = arith.constant 0 : i32
    return %arg0, %arg2 : i32, i32
  }
  func.func @transform_1(%arg0: i32, %arg1: i32, %arg2: i32) -> (i32, i32) {
    %c0_i32 = arith.constant 0 : i32
    return %arg2, %arg1 : i32, i32
  }
  func.func @transform_2(%arg0: i32, %arg1: i32, %arg2: i32) -> (i32, i32) {
    %c0_i32 = arith.constant 0 : i32
    %c0_i32_0 = arith.constant 0 : i32
    return %c0_i32, %arg1 : i32, i32
  }
  func.func @transform_3(%arg0: i32, %arg1: i32, %arg2: i32) -> (i32, i32) {
    %c0_i32 = arith.constant 0 : i32
    return %arg0, %arg1 : i32, i32
  }
}

module attributes {stable_mosaic.version = 11 : i64} {
  func.func @_max4_kernel(%arg0: memref<14x896xf32, #tpu.memory_space<vmem>>, %arg1: memref<14x896xf32, #tpu.memory_space<vmem>>, %arg2: memref<14x896xf32, #tpu.memory_space<vmem>>, %arg3: memref<14x896xf32, #tpu.memory_space<vmem>>, %arg4: memref<14x896xf32, #tpu.memory_space<vmem>>) attributes {dimension_semantics = [], scalar_prefetch = 0 : i64, scratch_operands = 0 : i64, tpu.core_type = #tpu.core_type<tc>} {
    %c0 = arith.constant 0 : index
    %c0_0 = arith.constant 0 : index
    %0 = vector.load %arg0[%c0, %c0_0] : memref<14x896xf32, #tpu.memory_space<vmem>>, vector<14x896xf32>
    %c0_1 = arith.constant 0 : index
    %c0_2 = arith.constant 0 : index
    %1 = vector.load %arg1[%c0_1, %c0_2] : memref<14x896xf32, #tpu.memory_space<vmem>>, vector<14x896xf32>
    %2 = arith.maximumf %0, %1 : vector<14x896xf32>
    %c0_3 = arith.constant 0 : index
    %c0_4 = arith.constant 0 : index
    %3 = vector.load %arg2[%c0_3, %c0_4] : memref<14x896xf32, #tpu.memory_space<vmem>>, vector<14x896xf32>
    %c0_5 = arith.constant 0 : index
    %c0_6 = arith.constant 0 : index
    %4 = vector.load %arg3[%c0_5, %c0_6] : memref<14x896xf32, #tpu.memory_space<vmem>>, vector<14x896xf32>
    %5 = arith.maximumf %3, %4 : vector<14x896xf32>
    %6 = arith.maximumf %2, %5 : vector<14x896xf32>
    %c0_7 = arith.constant 0 : index
    %c0_8 = arith.constant 0 : index
    %7 = vector.load %arg4[%c0_7, %c0_8] : memref<14x896xf32, #tpu.memory_space<vmem>>, vector<14x896xf32>
    tpu.vector_store %arg4[%c0_7, %c0_8], %6 {strides = array<i32>} : memref<14x896xf32, #tpu.memory_space<vmem>>, vector<14x896xf32>,
    return
  }
}

module attributes {stable_mosaic.version = 11 : i64} {
  func.func @_matmul_bias_acc_kernel(%arg0: i32, %arg1: i32, %arg2: i32, %arg3: memref<8x896xf32, #tpu.memory_space<vmem>>, %arg4: memref<896x640xf32, #tpu.memory_space<vmem>>, %arg5: memref<1x640xf32, #tpu.memory_space<vmem>>, %arg6: memref<8x640xf32, #tpu.memory_space<vmem>>, %arg7: memref<8x640xf32, #tpu.memory_space<vmem>>) attributes {dimension_semantics = [#tpu.dimension_semantics<parallel>, #tpu.dimension_semantics<parallel>, #tpu.dimension_semantics<arbitrary>], iteration_bounds = array<i64: 1, 5, 7>, scalar_prefetch = 0 : i64, scratch_operands = 1 : i64, tpu.core_type = #tpu.core_type<tc>, window_params = [{transform_indices = @transform_0, window_bounds = array<i64: 8, 896>}, {transform_indices = @transform_1, window_bounds = array<i64: 896, 640>}, {transform_indices = @transform_2, window_bounds = array<i64: 1, 640>}, {transform_indices = @transform_3, window_bounds = array<i64: 8, 640>}]} {
    %c0_i32 = arith.constant 0 : i32
    %0 = arith.cmpi eq, %arg2, %c0_i32 : i32
    %1 = arith.extui %0 : i1 to i32
    %c0_i32_0 = arith.constant 0 : i32
    %2 = arith.cmpi ne, %1, %c0_i32_0 : i32
    scf.if %2 {
      %cst_9 = arith.constant 0.000000e+00 : f32
      %12 = vector.broadcast %cst_9 : f32 to vector<8x640xf32>
      %c0_10 = arith.constant 0 : index
      %c0_11 = arith.constant 0 : index
      %13 = vector.load %arg7[%c0_10, %c0_11] : memref<8x640xf32, #tpu.memory_space<vmem>>, vector<8x640xf32>
      tpu.vector_store %arg7[%c0_10, %c0_11], %12 {strides = array<i32>} : memref<8x640xf32, #tpu.memory_space<vmem>>, vector<8x640xf32>,
    } else {
    }
    %c0 = arith.constant 0 : index
    %c0_1 = arith.constant 0 : index
    %3 = vector.load %arg7[%c0, %c0_1] : memref<8x640xf32, #tpu.memory_space<vmem>>, vector<8x640xf32>
    %c0_2 = arith.constant 0 : index
    %c0_3 = arith.constant 0 : index
    %4 = vector.load %arg3[%c0_2, %c0_3] : memref<8x896xf32, #tpu.memory_space<vmem>>, vector<8x896xf32>
    %c0_4 = arith.constant 0 : index
    %c0_5 = arith.constant 0 : index
    %5 = vector.load %arg4[%c0_4, %c0_5] : memref<896x640xf32, #tpu.memory_space<vmem>>, vector<896x640xf32>
    %cst = arith.constant dense<0.000000e+00> : vector<8x640xf32>
    %6 = tpu.matmul %4, %5, %cst {dimension_numbers = #tpu.dot_dimension_numbers<[1], [0], [0], [1], [0, 0, 1, 1], [], []>} : vector<8x896xf32>, vector<896x640xf32>, vector<8x640xf32> -> vector<8x640xf32>
    %7 = arith.addf %3, %6 : vector<8x640xf32>
    %c0_6 = arith.constant 0 : index
    %c0_7 = arith.constant 0 : index
    %8 = vector.load %arg7[%c0_6, %c0_7] : memref<8x640xf32, #tpu.memory_space<vmem>>, vector<8x640xf32>
    tpu.vector_store %arg7[%c0_6, %c0_7], %7 {strides = array<i32>} : memref<8x640xf32, #tpu.memory_space<vmem>>, vector<8x640xf32>,
    %c6_i32 = arith.constant 6 : i32
    %9 = arith.cmpi eq, %arg2, %c6_i32 : i32
    %10 = arith.extui %9 : i1 to i32
    %c0_i32_8 = arith.constant 0 : i32
    %11 = arith.cmpi ne, %10, %c0_i32_8 : i32
    scf.if %11 {
      %c0_9 = arith.constant 0 : index
      %c0_10 = arith.constant 0 : index
      %12 = vector.load %arg7[%c0_9, %c0_10] : memref<8x640xf32, #tpu.memory_space<vmem>>, vector<8x640xf32>
      %c0_11 = arith.constant 0 : index
      %c0_12 = arith.constant 0 : index
      %13 = vector.load %arg5[%c0_11, %c0_12] : memref<1x640xf32, #tpu.memory_space<vmem>>, vector<1x640xf32>
      %14 = vector.broadcast %13 : vector<1x640xf32> to vector<8x640xf32>
      %15 = arith.addf %12, %14 : vector<8x640xf32>
      %cst_13 = arith.constant 0.000000e+00 : f32
      %16 = vector.broadcast %cst_13 : f32 to vector<8x640xf32>
      %17 = arith.maximumf %15, %16 : vector<8x640xf32>
      %c0_14 = arith.constant 0 : index
      %c0_15 = arith.constant 0 : index
      %18 = vector.load %arg6[%c0_14, %c0_15] : memref<8x640xf32, #tpu.memory_space<vmem>>, vector<8x640xf32>
      tpu.vector_store %arg6[%c0_14, %c0_15], %17 {strides = array<i32>} : memref<8x640xf32, #tpu.memory_space<vmem>>, vector<8x640xf32>,
    } else {
    }
    return
  }
  func.func @transform_0(%arg0: i32, %arg1: i32, %arg2: i32) -> (i32, i32) {
    %c0_i32 = arith.constant 0 : i32
    return %arg0, %arg2 : i32, i32
  }
  func.func @transform_1(%arg0: i32, %arg1: i32, %arg2: i32) -> (i32, i32) {
    %c0_i32 = arith.constant 0 : i32
    return %arg2, %arg1 : i32, i32
  }
  func.func @transform_2(%arg0: i32, %arg1: i32, %arg2: i32) -> (i32, i32) {
    %c0_i32 = arith.constant 0 : i32
    %c0_i32_0 = arith.constant 0 : i32
    return %c0_i32, %arg1 : i32, i32
  }
  func.func @transform_3(%arg0: i32, %arg1: i32, %arg2: i32) -> (i32, i32) {
    %c0_i32 = arith.constant 0 : i32
    return %arg0, %arg1 : i32, i32
  }
}

module attributes {stable_mosaic.version = 11 : i64} {
  func.func @_matmul_bias_single_kernel(%arg0: i32, %arg1: i32, %arg2: i32, %arg3: memref<8x3136xf32, #tpu.memory_space<vmem>>, %arg4: memref<3136x10xf32, #tpu.memory_space<vmem>>, %arg5: memref<1x10xf32, #tpu.memory_space<vmem>>, %arg6: memref<8x10xf32, #tpu.memory_space<vmem>>) attributes {dimension_semantics = [#tpu.dimension_semantics<parallel>, #tpu.dimension_semantics<parallel>, #tpu.dimension_semantics<arbitrary>], iteration_bounds = array<i64: 1, 1, 1>, scalar_prefetch = 0 : i64, scratch_operands = 0 : i64, tpu.core_type = #tpu.core_type<tc>, window_params = [{transform_indices = @transform_0, window_bounds = array<i64: 8, 3136>}, {transform_indices = @transform_1, window_bounds = array<i64: 3136, 10>}, {transform_indices = @transform_2, window_bounds = array<i64: 1, 10>}, {transform_indices = @transform_3, window_bounds = array<i64: 8, 10>}]} {
    %c0 = arith.constant 0 : index
    %c0_0 = arith.constant 0 : index
    %0 = vector.load %arg3[%c0, %c0_0] : memref<8x3136xf32, #tpu.memory_space<vmem>>, vector<8x3136xf32>
    %c0_1 = arith.constant 0 : index
    %c0_2 = arith.constant 0 : index
    %1 = vector.load %arg4[%c0_1, %c0_2] : memref<3136x10xf32, #tpu.memory_space<vmem>>, vector<3136x10xf32>
    %cst = arith.constant dense<0.000000e+00> : vector<8x10xf32>
    %2 = tpu.matmul %0, %1, %cst {dimension_numbers = #tpu.dot_dimension_numbers<[1], [0], [0], [1], [0, 0, 1, 1], [], []>} : vector<8x3136xf32>, vector<3136x10xf32>, vector<8x10xf32> -> vector<8x10xf32>
    %c0_3 = arith.constant 0 : index
    %c0_4 = arith.constant 0 : index
    %3 = vector.load %arg5[%c0_3, %c0_4] : memref<1x10xf32, #tpu.memory_space<vmem>>, vector<1x10xf32>
    %4 = vector.broadcast %3 : vector<1x10xf32> to vector<8x10xf32>
    %5 = arith.addf %2, %4 : vector<8x10xf32>
    %c0_5 = arith.constant 0 : index
    %c0_6 = arith.constant 0 : index
    %6 = vector.load %arg6[%c0_5, %c0_6] : memref<8x10xf32, #tpu.memory_space<vmem>>, vector<8x10xf32>
    tpu.vector_store %arg6[%c0_5, %c0_6], %5 {strides = array<i32>} : memref<8x10xf32, #tpu.memory_space<vmem>>, vector<8x10xf32>,
    return
  }
  func.func @transform_0(%arg0: i32, %arg1: i32, %arg2: i32) -> (i32, i32) {
    %c0_i32 = arith.constant 0 : i32
    return %arg0, %arg2 : i32, i32
  }
  func.func @transform_1(%arg0: i32, %arg1: i32, %arg2: i32) -> (i32, i32) {
    %c0_i32 = arith.constant 0 : i32
    return %arg2, %arg1 : i32, i32
  }
  func.func @transform_2(%arg0: i32, %arg1: i32, %arg2: i32) -> (i32, i32) {
    %c0_i32 = arith.constant 0 : i32
    %c0_i32_0 = arith.constant 0 : i32
    return %c0_i32, %arg1 : i32, i32
  }
  func.func @transform_3(%arg0: i32, %arg1: i32, %arg2: i32) -> (i32, i32) {
    %c0_i32 = arith.constant 0 : i32
    return %arg0, %arg1 : i32, i32
  }
}

</mosaic_0001>

<llo_original>
// kernel: cnn_forward.6
$region0: #{cnn_forward.6}
  #allocation0 [shape = 'u32[]', space=smem, size = 0x4, offset = 0x4, fixed_abs, tag = 'smem constant byte address 0x4 - core index']
  #allocation1 [shape = 'u32[72,128]{1,0:T(1,128)}', space=vmem, size = 0x9000, scoped, tag = 'internal scratch']
  %s0 = inlined_call_operand.vmem [shape: f32[1792,16], index: 0, kind: input, shape index: {}]
  %s1 = inlined_call_operand.vmem [shape: f32[16,64], index: 1, kind: input, shape index: {}]
  %s2 = inlined_call_operand.vmem [shape: f32[1,64], index: 2, kind: input, shape index: {}]
  %s3 = inlined_call_operand.vmem [shape: f32[1792,64], index: 3, kind: output, shape index: {}]
  %s4 = sld [smem:[#allocation0]]
  $region45: #{cnn_forward.6} parent=0
    _
  %s6 = ssub.s32 1, %s4
  %s7 = scalar_select 0, %s6, %s4
  loop: start=0, step=1, limit=9
  $region2: #{cnn_forward.6} parent=0 // loop_pre_header
    _
  $region3: #{cnn_forward.6} parent=0 // loop_header
    %s9 = sphi 0, %s13
    %p10 = scmp.ge.s32.totalorder %s9, 9
    %s16 = sphi 0, %s35
    %s17 = sphi 0, %s31
    %s18 = sphi 0, %s27
    %s19 = sphi 0, %s16
    %s20 = sphi 0, %s17
    %s21 = sphi 0, %s18
    %s22 = sphi 0, %s19
    %s23 = sphi 0, %s20
    %s24 = sphi 0, %s21
    %s40 = sphi 0, %s42
    %s43 = sphi 0, %s40
    %s44 = sphi 0, %s43
    %s60 = sphi 0, %s44
    %s68 = sphi 0, %s70
    %s71 = sphi 0, %s68
    %s72 = sphi 0, %s71
    %s88 = sphi 0, %s72
    %s94 = sphi 0, %s96
    %s97 = sphi 0, %s94
    %s98 = sphi 0, %s97
    %s114 = sphi 0, %s98
    %s122 = sphi 0, %s124
    %s125 = sphi 0, %s122
    %s126 = sphi 0, %s125
    %s142 = sphi 0, %s126
  $region4: #{cnn_forward.6} parent=0 // loop_header_branch
    %12 = sbr.rel (%p10) target = $region8
  $region5: #{cnn_forward.6} parent=0 // loop_body
    %s14 = ssub.s32 %s9, 1
    %s15 = ssub.s32 %s9, 2
    %s25 = sadd.s32 1, %s18
    %p26 = scmp.ge.s32.totalorder %s25, 1
    %s27 = scalar_select %p26, 0, %s25
    %s28 = sadd.s32 1, %s17
    %s29 = scalar_select %p26, %s28, %s17
    %p30 = scmp.ge.s32.totalorder %s29, 1
    %s31 = scalar_select %p30, 0, %s29
    %s32 = sadd.s32 1, %s16
    %s33 = scalar_select %p30, %s32, %s16
    %p34 = scmp.ge.s32.totalorder %s33, 7
    %s35 = scalar_select %p34, 0, %s33
    %s36 = ssub.s32 %s16, %s35
    %s37 = ssub.s32 %s18, %s27
    %s38 = sor.u32 %s36, %s37
    %p39 = scmp.eq.s32.totalorder %s38, 0
    %s41 = sadd.s32 %s40, 1
    %s42 = scalar_select %p39, %s40, %s41
    %p45 = pneg %p39
    %p46 = scmp.eq.s32.totalorder %s9, 6
    %p47 = por %p45, %p46
    %p48 = scmp.ne.s32.totalorder %s40, %s43
    %p49 = scmp.eq.s32.totalorder %s9, 0
    %p50 = por %p48, %p49
    %p51 = scmp.ne.s32.totalorder %s40, %s43
    %p52 = scmp.eq.s32.totalorder %s14, 6
    %p53 = por %p51, %p52
    %p54 = scmp.ne.s32.totalorder %s43, %s44
    %p55 = scmp.eq.s32.totalorder %s14, 0
    %p56 = por %p54, %p55
    %p57 = scmp.ne.s32.totalorder %s43, %s44
    %p58 = scmp.eq.s32.totalorder %s15, 6
    %p59 = por %p57, %p58
    %p61 = scmp.ne.s32.totalorder %s44, %s60
    %p62 = scmp.eq.s32.totalorder %s15, 0
    %p63 = por %p61, %p62
    %s64 = ssub.s32 %s18, %s27
    %s65 = ssub.s32 %s17, %s31
    %s66 = sor.u32 %s64, %s65
    %p67 = scmp.eq.s32.totalorder %s66, 0
    %s69 = sadd.s32 %s68, 1
    %s70 = scalar_select %p67, %s68, %s69
    %p73 = pneg %p67
    %p74 = scmp.eq.s32.totalorder %s9, 6
    %p75 = por %p73, %p74
    %p76 = scmp.ne.s32.totalorder %s68, %s71
    %p77 = scmp.eq.s32.totalorder %s9, 0
    %p78 = por %p76, %p77
    %p79 = scmp.ne.s32.totalorder %s68, %s71
    %p80 = scmp.eq.s32.totalorder %s14, 6
    %p81 = por %p79, %p80
    %p82 = scmp.ne.s32.totalorder %s71, %s72
    %p83 = scmp.eq.s32.totalorder %s14, 0
    %p84 = por %p82, %p83
    %p85 = scmp.ne.s32.totalorder %s71, %s72
    %p86 = scmp.eq.s32.totalorder %s15, 6
    %p87 = por %p85, %p86
    %p89 = scmp.ne.s32.totalorder %s72, %s88
    %p90 = scmp.eq.s32.totalorder %s15, 0
    %p91 = por %p89, %p90
    %s92 = ssub.s32 %s17, %s31
    %p93 = scmp.eq.s32.totalorder %s92, 0
    %s95 = sadd.s32 %s94, 1
    %s96 = scalar_select %p93, %s94, %s95
    %p99 = pneg %p93
    %p100 = scmp.eq.s32.totalorder %s9, 6
    %p101 = por %p99, %p100
    %p102 = scmp.ne.s32.totalorder %s94, %s97
    %p103 = scmp.eq.s32.totalorder %s9, 0
    %p104 = por %p102, %p103
    %p105 = scmp.ne.s32.totalorder %s94, %s97
    %p106 = scmp.eq.s32.totalorder %s14, 6
    %p107 = por %p105, %p106
    %p108 = scmp.ne.s32.totalorder %s97, %s98
    %p109 = scmp.eq.s32.totalorder %s14, 0
    %p110 = por %p108, %p109
    %p111 = scmp.ne.s32.totalorder %s97, %s98
    %p112 = scmp.eq.s32.totalorder %s15, 6
    %p113 = por %p111, %p112
    %p115 = scmp.ne.s32.totalorder %s98, %s114
    %p116 = scmp.eq.s32.totalorder %s15, 0
    %p117 = por %p115, %p116
    %s118 = ssub.s32 %s16, %s35
    %s119 = ssub.s32 %s17, %s31
    %s120 = sor.u32 %s118, %s119
    %p121 = scmp.eq.s32.totalorder %s120, 0
    %s123 = sadd.s32 %s122, 1
    %s124 = scalar_select %p121, %s122, %s123
    %p127 = pneg %p121
    %p128 = scmp.eq.s32.totalorder %s9, 6
    %p129 = por %p127, %p128
    %p130 = scmp.ne.s32.totalorder %s122, %s125
    %p131 = scmp.eq.s32.totalorder %s9, 0
    %p132 = por %p130, %p131
    %p133 = scmp.ne.s32.totalorder %s122, %s125
    %p134 = scmp.eq.s32.totalorder %s14, 6
    %p135 = por %p133, %p134
    %p136 = scmp.ne.s32.totalorder %s125, %s126
    %p137 = scmp.eq.s32.totalorder %s14, 0
    %p138 = por %p136, %p137
    %p139 = scmp.ne.s32.totalorder %s125, %s126
    %p140 = scmp.eq.s32.totalorder %s15, 6
    %p141 = por %p139, %p140
    %p143 = scmp.ne.s32.totalorder %s126, %s142
    %p144 = scmp.eq.s32.totalorder %s15, 0
    %p145 = por %p143, %p144
    %p146 = scmp.le.s32.totalorder 1, %s9
    %p147 = scmp.lt.s32.totalorder %s9, 8
    %p148 = pnand %p146, %p147
    %p149 = pneg %p148
    // Predicated region
    $region9: #{cnn_forward.6} parent=5 // pred_check
      _
    $region10: #{cnn_forward.6} parent=5 // pred_check_branch
      %151 = sbr.rel (%p148) target = $region12
    $region11: #{cnn_forward.6} parent=5 // pred_region
      %s152 = ssub.s32 %s9, 1
      // Predicated region
      $region13: #{cnn_forward.6} parent=11 // pred_check
        %p153 = pneg %p84
      $region14: #{cnn_forward.6} parent=11 // pred_check_branch
        %155 = sbr.rel (%p153) target = $region16
      $region15: #{cnn_forward.6} parent=11 // pred_region
        %s156 = smul.u32 2, %s21
        %p157 = scmp.lt.s32.totalorder %s156, 1
        %s158 = scalar_select %p157, %s156, 1
        %p159 = scmp.lt.s32.totalorder %s20, 0
        %s160 = scalar_select %p159, %s20, 0
        %s161 = sadd.s32 %s160, %s158
        %s162 = smul.addr %s161, 8
        %s163 = scalar_lea.vmem %s1, %s162
        %s164 = smul.u32 2, %s21
      $region16: #{cnn_forward.6} parent=11 // pred_fallthru
        _
      // Predicated region
      $region17: #{cnn_forward.6} parent=11 // pred_check
        %p165 = pneg %p110
      $region18: #{cnn_forward.6} parent=11 // pred_check_branch
        %167 = sbr.rel (%p165) target = $region20
      $region19: #{cnn_forward.6} parent=11 // pred_region
        %p168 = scmp.lt.s32.totalorder %s20, 0
        %s169 = scalar_select %p168, %s20, 0
        %s170 = scalar_lea.vmem %s2, %s169
      $region20: #{cnn_forward.6} parent=11 // pred_fallthru
        _
    $region12: #{cnn_forward.6} parent=5 // pred_fallthru
      _
    %p171 = scmp.lt.s32.totalorder %s9, 7
    // Predicated region
    $region21: #{cnn_forward.6} parent=5 // pred_check
      %p172 = pneg %p171
    $region22: #{cnn_forward.6} parent=5 // pred_check_branch
      %174 = sbr.rel (%p172) target = $region24
    $region23: #{cnn_forward.6} parent=5 // pred_region
      // Predicated region
      $region25: #{cnn_forward.6} parent=23 // pred_check
        %p175 = pneg %p50
      $region26: #{cnn_forward.6} parent=23 // pred_check_branch
        %177 = sbr.rel (%p175) target = $region28
      $region27: #{cnn_forward.6} parent=23 // pred_region
        %s178 = smul.u32 32, %s16
        %p179 = scmp.lt.s32.totalorder %s178, 223
        %s180 = scalar_select %p179, %s178, 223
        %p181 = scmp.lt.s32.totalorder %s18, 0
        %s182 = scalar_select %p181, %s18, 0
        %s183 = sadd.s32 %s182, %s180
        %s184 = smul.addr %s183, 8
        %s185 = scalar_lea.vmem %s0, %s184
        %s186 = smul.u32 32, %s16
      $region28: #{cnn_forward.6} parent=23 // pred_fallthru
        _
    $region24: #{cnn_forward.6} parent=5 // pred_fallthru
      _
    %p187 = scmp.le.s32.totalorder 1, %s9
    %p188 = scmp.lt.s32.totalorder %s9, 8
    %p189 = pnand %p187, %p188
    %p190 = pneg %p189
    // Predicated region
    $region29: #{cnn_forward.6} parent=5 // pred_check
      _
    $region30: #{cnn_forward.6} parent=5 // pred_check_branch
      %192 = sbr.rel (%p189) target = $region32
    $region31: #{cnn_forward.6} parent=5 // pred_region
      %s193 = ssub.s32 %s9, 1
      %s194 = smul.u32 32, %s19
      %p195 = scmp.lt.s32.totalorder %s194, 223
      %s196 = scalar_select %p195, %s194, 223
      %p197 = scmp.lt.s32.totalorder %s21, 0
      %s198 = scalar_select %p197, %s21, 0
      %s199 = sadd.s32 %s198, %s196
      %s200 = smul.addr %s199, 8
      %s201 = scalar_lea.vmem %s0, %s200
      %p202 = pneg %p56
      %p203 = pneg %p53
      %s204 = smul.u32 2, %s21
      %p205 = scmp.lt.s32.totalorder %s204, 1
      %s206 = scalar_select %p205, %s204, 1
      %p207 = scmp.lt.s32.totalorder %s20, 0
      %s208 = scalar_select %p207, %s20, 0
      %s209 = sadd.s32 %s208, %s206
      %s210 = smul.addr %s209, 8
      %s211 = scalar_lea.vmem %s1, %s210
      %p212 = pneg %p84
      %p213 = pneg %p81
      %p214 = scmp.lt.s32.totalorder %s20, 0
      %s215 = scalar_select %p214, %s20, 0
      %s216 = scalar_lea.vmem %s2, %s215
      %p217 = pneg %p110
      %p218 = pneg %p107
      %p219 = pneg %p138
      %p220 = pneg %p135
      %s221 = smul.u32 32, %s19
      %p222 = scmp.lt.s32.totalorder %s221, 223
      %s223 = scalar_select %p222, %s221, 223
      %p224 = scmp.lt.s32.totalorder %s20, 0
      %s225 = scalar_select %p224, %s20, 0
      %s226 = sadd.s32 %s225, %s223
      %s227 = smul.addr %s226, 8
      %s228 = scalar_lea.vmem %s3, %s227
      %s229 = smul.u32 32, %s19
      %p230 = scmp.lt.s32.totalorder %s229, 223
      %s231 = scalar_select %p230, %s229, 223
      %p232 = scmp.lt.s32.totalorder %s21, 0
      %s233 = scalar_select %p232, %s21, 0
      %s234 = sadd.s32 %s233, %s231
      %s235 = smul.addr %s234, 8
      %s236 = scalar_lea.vmem %s0, %s235
      %s237 = smul.u32 32, %s19
      %s238 = smul.u32 2, %s21
      %p239 = scmp.lt.s32.totalorder %s238, 1
      %s240 = scalar_select %p239, %s238, 1
      %p241 = scmp.lt.s32.totalorder %s20, 0
      %s242 = scalar_select %p241, %s20, 0
      %s243 = sadd.s32 %s242, %s240
      %s244 = smul.addr %s243, 8
      %s245 = scalar_lea.vmem %s1, %s244
      %s246 = smul.u32 2, %s21
      %p247 = scmp.lt.s32.totalorder %s20, 0
      %s248 = scalar_select %p247, %s20, 0
      %s249 = scalar_lea.vmem %s2, %s248
      %s250 = smul.u32 32, %s19
      %p251 = scmp.lt.s32.totalorder %s250, 223
      %s252 = scalar_select %p251, %s250, 223
      %p253 = scmp.lt.s32.totalorder %s20, 0
      %s254 = scalar_select %p253, %s20, 0
      %s255 = sadd.s32 %s254, %s252
      %s256 = smul.addr %s255, 8
      %s257 = scalar_lea.vmem %s3, %s256
      %s258 = smul.u32 32, %s19
      %v259 = vld [vmem:[%s236] sm:$0xff]
      %v260 = vld [vmem:[%s236 + $0x8] sm:$0xff]
      %v261 = vld [vmem:[%s236 + $0x10] sm:$0xff]
      %v262 = vld [vmem:[%s236 + $0x18] sm:$0xff]
      %v263 = vld [vmem:[%s236 + $0x20] sm:$0xff]
      %v264 = vld [vmem:[%s236 + $0x28] sm:$0xff]
      %v265 = vld [vmem:[%s236 + $0x30] sm:$0xff]
      %v266 = vld [vmem:[%s236 + $0x38] sm:$0xff]
      %v267 = vld [vmem:[%s236 + $0x40] sm:$0xff]
      %v268 = vld [vmem:[%s236 + $0x48] sm:$0xff]
      %v269 = vld [vmem:[%s236 + $0x50] sm:$0xff]
      %v270 = vld [vmem:[%s236 + $0x58] sm:$0xff]
      %v271 = vld [vmem:[%s236 + $0x60] sm:$0xff]
      %v272 = vld [vmem:[%s236 + $0x68] sm:$0xff]
      %v273 = vld [vmem:[%s236 + $0x70] sm:$0xff]
      %v274 = vld [vmem:[%s236 + $0x78] sm:$0xff]
      %v275 = vld [vmem:[%s236 + $0x80] sm:$0xff]
      %v276 = vld [vmem:[%s236 + $0x88] sm:$0xff]
      %v277 = vld [vmem:[%s236 + $0x90] sm:$0xff]
      %v278 = vld [vmem:[%s236 + $0x98] sm:$0xff]
      %v279 = vld [vmem:[%s236 + $0xa0] sm:$0xff]
      %v280 = vld [vmem:[%s236 + $0xa8] sm:$0xff]
      %v281 = vld [vmem:[%s236 + $0xb0] sm:$0xff]
      %v282 = vld [vmem:[%s236 + $0xb8] sm:$0xff]
      %v283 = vld [vmem:[%s236 + $0xc0] sm:$0xff]
      %v284 = vld [vmem:[%s236 + $0xc8] sm:$0xff]
      %v285 = vld [vmem:[%s236 + $0xd0] sm:$0xff]
      %v286 = vld [vmem:[%s236 + $0xd8] sm:$0xff]
      %v287 = vld [vmem:[%s236 + $0xe0] sm:$0xff]
      %v288 = vld [vmem:[%s236 + $0xe8] sm:$0xff]
      %v289 = vld [vmem:[%s236 + $0xf0] sm:$0xff]
      %v290 = vld [vmem:[%s236 + $0xf8] sm:$0xff]
      %v291 = vld [vmem:[%s245] sm:$0xff]
      %v292 = vld [vmem:[%s245 + $0x8] sm:$0xff]
      %v293 = vld [vmem:[%s249] sm:$0x1]
      %v295 = vperm.slane %v293, 0
      %vm297 = vcmask 130048
      %v299 = vsel %vm297, %v259, 0
      %v302 = vsel %vm297, %v260, 0
      %v305 = vsel %vm297, %v261, 0
      %v308 = vsel %vm297, %v262, 0
      %v311 = vsel %vm297, %v263, 0
      %v314 = vsel %vm297, %v264, 0
      %v317 = vsel %vm297, %v265, 0
      %v320 = vsel %vm297, %v266, 0
      %v323 = vsel %vm297, %v267, 0
      %v326 = vsel %vm297, %v268, 0
      %v329 = vsel %vm297, %v269, 0
      %v332 = vsel %vm297, %v270, 0
      %v335 = vsel %vm297, %v271, 0
      %v338 = vsel %vm297, %v272, 0
      %v341 = vsel %vm297, %v273, 0
      %v344 = vsel %vm297, %v274, 0
      %v347 = vsel %vm297, %v275, 0
      %v350 = vsel %vm297, %v276, 0
      %v353 = vsel %vm297, %v277, 0
      %v356 = vsel %vm297, %v278, 0
      %v359 = vsel %vm297, %v279, 0
      %v362 = vsel %vm297, %v280, 0
      %v365 = vsel %vm297, %v281, 0
      %v368 = vsel %vm297, %v282, 0
      %v371 = vsel %vm297, %v283, 0
      %v374 = vsel %vm297, %v284, 0
      %v377 = vsel %vm297, %v285, 0
      %v380 = vsel %vm297, %v286, 0
      %v383 = vsel %vm297, %v287, 0
      %v386 = vsel %vm297, %v288, 0
      %v389 = vsel %vm297, %v289, 0
      %v392 = vsel %vm297, %v290, 0
      %394 = vmatpush.msra.mxu0 0.0
      %395 = vmatpush.msra.mxu0 0.0
      %396 = vmatpush.msra.mxu0 0.0
      %397 = vmatpush.msra.mxu0 0.0
      %398 = vmatpush.msra.mxu0 0.0
      %399 = vmatpush.msra.mxu0 0.0
      %400 = vmatpush.msra.mxu0 0.0
      %401 = vmatpush.msra.mxu0 0.0
      %402 = vmatpush.msra.mxu0 0.0
      %403 = vmatpush.msra.mxu0 0.0
      %404 = vmatpush.msra.mxu0 0.0
      %405 = vmatpush.msra.mxu0 0.0
      %406 = vmatpush.msra.mxu0 0.0
      %407 = vmatpush.msra.mxu0 0.0
      %408 = vmatpush.msra.mxu0 %v292
      %409 = vmatpush.msra.mxu0 %v291
      %410 = vmatmul.f32.gmra.mxu0 %v299
      %v411 = vpop.f32.mrf.mxu0
      %v412 = vadd.f32 %v295, %v411
      %413 = vmatmul.f32.gmra.mxu0 %v302
      %v414 = vpop.f32.mrf.mxu0
      %v415 = vadd.f32 %v295, %v414
      %416 = vmatmul.f32.gmra.mxu0 %v305
      %v417 = vpop.f32.mrf.mxu0
      %v418 = vadd.f32 %v295, %v417
      %419 = vmatmul.f32.gmra.mxu0 %v308
      %v420 = vpop.f32.mrf.mxu0
      %v421 = vadd.f32 %v295, %v420
      %422 = vmatmul.f32.gmra.mxu0 %v311
      %v423 = vpop.f32.mrf.mxu0
      %v424 = vadd.f32 %v295, %v423
      %425 = vmatmul.f32.gmra.mxu0 %v314
      %v426 = vpop.f32.mrf.mxu0
      %v427 = vadd.f32 %v295, %v426
      %428 = vmatmul.f32.gmra.mxu0 %v317
      %v429 = vpop.f32.mrf.mxu0
      %v430 = vadd.f32 %v295, %v429
      %431 = vmatmul.f32.gmra.mxu0 %v320
      %v432 = vpop.f32.mrf.mxu0
      %v433 = vadd.f32 %v295, %v432
      %434 = vmatmul.f32.gmra.mxu0 %v323
      %v435 = vpop.f32.mrf.mxu0
      %v436 = vadd.f32 %v295, %v435
      %437 = vmatmul.f32.gmra.mxu0 %v326
      %v438 = vpop.f32.mrf.mxu0
      %v439 = vadd.f32 %v295, %v438
      %440 = vmatmul.f32.gmra.mxu0 %v329
      %v441 = vpop.f32.mrf.mxu0
      %v442 = vadd.f32 %v295, %v441
      %443 = vmatmul.f32.gmra.mxu0 %v332
      %v444 = vpop.f32.mrf.mxu0
      %v445 = vadd.f32 %v295, %v444
      %446 = vmatmul.f32.gmra.mxu0 %v335
      %v447 = vpop.f32.mrf.mxu0
      %v448 = vadd.f32 %v295, %v447
      %449 = vmatmul.f32.gmra.mxu0 %v338
      %v450 = vpop.f32.mrf.mxu0
      %v451 = vadd.f32 %v295, %v450
      %452 = vmatmul.f32.gmra.mxu0 %v341
      %v453 = vpop.f32.mrf.mxu0
      %v454 = vadd.f32 %v295, %v453
      %455 = vmatmul.f32.gmra.mxu0 %v344
      %v456 = vpop.f32.mrf.mxu0
      %v457 = vadd.f32 %v295, %v456
      %458 = vmatmul.f32.gmra.mxu0 %v347
      %v459 = vpop.f32.mrf.mxu0
      %v460 = vadd.f32 %v295, %v459
      %461 = vmatmul.f32.gmra.mxu0 %v350
      %v462 = vpop.f32.mrf.mxu0
      %v463 = vadd.f32 %v295, %v462
      %464 = vmatmul.f32.gmra.mxu0 %v353
      %v465 = vpop.f32.mrf.mxu0
      %v466 = vadd.f32 %v295, %v465
      %467 = vmatmul.f32.gmra.mxu0 %v356
      %v468 = vpop.f32.mrf.mxu0
      %v469 = vadd.f32 %v295, %v468
      %470 = vmatmul.f32.gmra.mxu0 %v359
      %v471 = vpop.f32.mrf.mxu0
      %v472 = vadd.f32 %v295, %v471
      %473 = vmatmul.f32.gmra.mxu0 %v362
      %v474 = vpop.f32.mrf.mxu0
      %v475 = vadd.f32 %v295, %v474
      %476 = vmatmul.f32.gmra.mxu0 %v365
      %v477 = vpop.f32.mrf.mxu0
      %v478 = vadd.f32 %v295, %v477
      %479 = vmatmul.f32.gmra.mxu0 %v368
      %v480 = vpop.f32.mrf.mxu0
      %v481 = vadd.f32 %v295, %v480
      %482 = vmatmul.f32.gmra.mxu0 %v371
      %v483 = vpop.f32.mrf.mxu0
      %v484 = vadd.f32 %v295, %v483
      %485 = vmatmul.f32.gmra.mxu0 %v374
      %v486 = vpop.f32.mrf.mxu0
      %v487 = vadd.f32 %v295, %v486
      %488 = vmatmul.f32.gmra.mxu0 %v377
      %v489 = vpop.f32.mrf.mxu0
      %v490 = vadd.f32 %v295, %v489
      %491 = vmatmul.f32.gmra.mxu0 %v380
      %v492 = vpop.f32.mrf.mxu0
      %v493 = vadd.f32 %v295, %v492
      %494 = vmatmul.f32.gmra.mxu0 %v383
      %v495 = vpop.f32.mrf.mxu0
      %v496 = vadd.f32 %v295, %v495
      %497 = vmatmul.f32.gmra.mxu0 %v386
      %v498 = vpop.f32.mrf.mxu0
      %v499 = vadd.f32 %v295, %v498
      %500 = vmatmul.f32.gmra.mxu0 %v389
      %v501 = vpop.f32.mrf.mxu0
      %v502 = vadd.f32 %v295, %v501
      %503 = vmatmul.f32.gmra.mxu0 %v392
      %v504 = vpop.f32.mrf.mxu0
      %v505 = vadd.f32 %v295, %v504
      %506 = vdwg.mxu0
      %v507 = vmax.f32 %v412, 0.0
      %v508 = vmax.f32 %v415, 0.0
      %v509 = vmax.f32 %v418, 0.0
      %v510 = vmax.f32 %v421, 0.0
      %v511 = vmax.f32 %v424, 0.0
      %v512 = vmax.f32 %v427, 0.0
      %v513 = vmax.f32 %v430, 0.0
      %v514 = vmax.f32 %v433, 0.0
      %v515 = vmax.f32 %v436, 0.0
      %v516 = vmax.f32 %v439, 0.0
      %v517 = vmax.f32 %v442, 0.0
      %v518 = vmax.f32 %v445, 0.0
      %v519 = vmax.f32 %v448, 0.0
      %v520 = vmax.f32 %v451, 0.0
      %v521 = vmax.f32 %v454, 0.0
      %v522 = vmax.f32 %v457, 0.0
      %v523 = vmax.f32 %v460, 0.0
      %v524 = vmax.f32 %v463, 0.0
      %v525 = vmax.f32 %v466, 0.0
      %v526 = vmax.f32 %v469, 0.0
      %v527 = vmax.f32 %v472, 0.0
      %v528 = vmax.f32 %v475, 0.0
      %v529 = vmax.f32 %v478, 0.0
      %v530 = vmax.f32 %v481, 0.0
      %v531 = vmax.f32 %v484, 0.0
      %v532 = vmax.f32 %v487, 0.0
      %v533 = vmax.f32 %v490, 0.0
      %v534 = vmax.f32 %v493, 0.0
      %v535 = vmax.f32 %v496, 0.0
      %v536 = vmax.f32 %v499, 0.0
      %v537 = vmax.f32 %v502, 0.0
      %v538 = vmax.f32 %v505, 0.0
      %vm539 = vcmask 523264
      %540 = vst.msk [vmem:[%s257] sm:$0xff] %vm539, %v507
      %541 = vst.msk [vmem:[%s257 + $0x8] sm:$0xff] %vm539, %v508
      %542 = vst.msk [vmem:[%s257 + $0x10] sm:$0xff] %vm539, %v509
      %543 = vst.msk [vmem:[%s257 + $0x18] sm:$0xff] %vm539, %v510
      %544 = vst.msk [vmem:[%s257 + $0x20] sm:$0xff] %vm539, %v511
      %545 = vst.msk [vmem:[%s257 + $0x28] sm:$0xff] %vm539, %v512
      %546 = vst.msk [vmem:[%s257 + $0x30] sm:$0xff] %vm539, %v513
      %547 = vst.msk [vmem:[%s257 + $0x38] sm:$0xff] %vm539, %v514
      %548 = vst.msk [vmem:[%s257 + $0x40] sm:$0xff] %vm539, %v515
      %549 = vst.msk [vmem:[%s257 + $0x48] sm:$0xff] %vm539, %v516
      %550 = vst.msk [vmem:[%s257 + $0x50] sm:$0xff] %vm539, %v517
      %551 = vst.msk [vmem:[%s257 + $0x58] sm:$0xff] %vm539, %v518
      %552 = vst.msk [vmem:[%s257 + $0x60] sm:$0xff] %vm539, %v519
      %553 = vst.msk [vmem:[%s257 + $0x68] sm:$0xff] %vm539, %v520
      %554 = vst.msk [vmem:[%s257 + $0x70] sm:$0xff] %vm539, %v521
      %555 = vst.msk [vmem:[%s257 + $0x78] sm:$0xff] %vm539, %v522
      %556 = vst.msk [vmem:[%s257 + $0x80] sm:$0xff] %vm539, %v523
      %557 = vst.msk [vmem:[%s257 + $0x88] sm:$0xff] %vm539, %v524
      %558 = vst.msk [vmem:[%s257 + $0x90] sm:$0xff] %vm539, %v525
      %559 = vst.msk [vmem:[%s257 + $0x98] sm:$0xff] %vm539, %v526
      %560 = vst.msk [vmem:[%s257 + $0xa0] sm:$0xff] %vm539, %v527
      %561 = vst.msk [vmem:[%s257 + $0xa8] sm:$0xff] %vm539, %v528
      %562 = vst.msk [vmem:[%s257 + $0xb0] sm:$0xff] %vm539, %v529
      %563 = vst.msk [vmem:[%s257 + $0xb8] sm:$0xff] %vm539, %v530
      %564 = vst.msk [vmem:[%s257 + $0xc0] sm:$0xff] %vm539, %v531
      %565 = vst.msk [vmem:[%s257 + $0xc8] sm:$0xff] %vm539, %v532
      %566 = vst.msk [vmem:[%s257 + $0xd0] sm:$0xff] %vm539, %v533
      %567 = vst.msk [vmem:[%s257 + $0xd8] sm:$0xff] %vm539, %v534
      %568 = vst.msk [vmem:[%s257 + $0xe0] sm:$0xff] %vm539, %v535
      %569 = vst.msk [vmem:[%s257 + $0xe8] sm:$0xff] %vm539, %v536
      %570 = vst.msk [vmem:[%s257 + $0xf0] sm:$0xff] %vm539, %v537
      %571 = vst.msk [vmem:[%s257 + $0xf8] sm:$0xff] %vm539, %v538
      %s572 = smul.u32 32, %s19
      %p573 = scmp.lt.s32.totalorder %s572, 223
      %s574 = scalar_select %p573, %s572, 223
      %p575 = scmp.lt.s32.totalorder %s20, 0
      %s576 = scalar_select %p575, %s20, 0
      %s577 = sadd.s32 %s576, %s574
      %s578 = smul.addr %s577, 8
      %s579 = scalar_lea.vmem %s3, %s578
      // Predicated region
      $region33: #{cnn_forward.6} parent=31 // pred_check
        %p580 = pneg %p135
      $region34: #{cnn_forward.6} parent=31 // pred_check_branch
        %582 = sbr.rel (%p580) target = $region36
      $region35: #{cnn_forward.6} parent=31 // pred_region
        %s583 = smul.u32 32, %s19
      $region36: #{cnn_forward.6} parent=31 // pred_fallthru
        _
    $region32: #{cnn_forward.6} parent=5 // pred_fallthru
      _
    %p584 = scmp.le.s32.totalorder 2, %s9
    // Predicated region
    $region37: #{cnn_forward.6} parent=5 // pred_check
      %p585 = pneg %p584
    $region38: #{cnn_forward.6} parent=5 // pred_check_branch
      %587 = sbr.rel (%p585) target = $region40
    $region39: #{cnn_forward.6} parent=5 // pred_region
      %s588 = ssub.s32 %s9, 2
      // Predicated region
      $region41: #{cnn_forward.6} parent=39 // pred_check
        %p589 = pneg %p141
      $region42: #{cnn_forward.6} parent=39 // pred_check_branch
        %591 = sbr.rel (%p589) target = $region44
      $region43: #{cnn_forward.6} parent=39 // pred_region
        %s592 = smul.u32 32, %s22
        %p593 = scmp.lt.s32.totalorder %s592, 223
        %s594 = scalar_select %p593, %s592, 223
        %p595 = scmp.lt.s32.totalorder %s23, 0
        %s596 = scalar_select %p595, %s23, 0
        %s597 = sadd.s32 %s596, %s594
        %s598 = smul.addr %s597, 8
        %s599 = scalar_lea.vmem %s3, %s598
      $region44: #{cnn_forward.6} parent=39 // pred_fallthru
        _
    $region40: #{cnn_forward.6} parent=5 // pred_fallthru
      _
  $region6: #{cnn_forward.6} parent=0 // loop_footer
    %s13 = sadd.s32 1, %s9
  $region7: #{cnn_forward.6} parent=0 // loop_footer_branch
    %8 = sbr.rel target = $region3
  $region8: #{cnn_forward.6} parent=0 // loop_exit
    _

// kernel: cnn_forward.7
$region0: #{cnn_forward.7}
  #allocation0 [shape = 'u32[]', space=smem, size = 0x4, offset = 0x4, fixed_abs, tag = 'smem constant byte address 0x4 - core index']
  #allocation1 [shape = 'u32[72,128]{1,0:T(1,128)}', space=vmem, size = 0x9000, scoped, tag = 'internal scratch']
  %s0 = inlined_call_operand.vmem [shape: f32[28,896], index: 0, kind: input, shape index: {}]
  %s1 = inlined_call_operand.vmem [shape: f32[28,896], index: 1, kind: input, shape index: {}]
  %s2 = inlined_call_operand.vmem [shape: f32[28,896], index: 2, kind: input, shape index: {}]
  %s3 = inlined_call_operand.vmem [shape: f32[28,896], index: 3, kind: input, shape index: {}]
  %s4 = inlined_call_operand.vmem [shape: f32[28,896], index: 4, kind: output, shape index: {}]
  %s5 = sld [smem:[#allocation0]]
  $region26: #{cnn_forward.7} parent=0
    _
  %s7 = ssub.s32 1, %s5
  %s8 = scalar_select 0, %s7, %s5
  // Predicated region
  $region2: #{cnn_forward.7} parent=0 // pred_check
    _
  $region3: #{cnn_forward.7} parent=0 // pred_check_branch
    %10 = sbr.rel (0) target = $region5
  $region4: #{cnn_forward.7} parent=0 // pred_region
    _
  $region5: #{cnn_forward.7} parent=0 // pred_fallthru
    _
  // Predicated region
  $region6: #{cnn_forward.7} parent=0 // pred_check
    _
  $region7: #{cnn_forward.7} parent=0 // pred_check_branch
    %12 = sbr.rel (0) target = $region9
  $region8: #{cnn_forward.7} parent=0 // pred_region
    _
  $region9: #{cnn_forward.7} parent=0 // pred_fallthru
    _
  // Predicated region
  $region10: #{cnn_forward.7} parent=0 // pred_check
    _
  $region11: #{cnn_forward.7} parent=0 // pred_check_branch
    %14 = sbr.rel (0) target = $region13
  $region12: #{cnn_forward.7} parent=0 // pred_region
    _
  $region13: #{cnn_forward.7} parent=0 // pred_fallthru
    _
  // Predicated region
  $region14: #{cnn_forward.7} parent=0 // pred_check
    _
  $region15: #{cnn_forward.7} parent=0 // pred_check_branch
    %16 = sbr.rel (0) target = $region17
  $region16: #{cnn_forward.7} parent=0 // pred_region
    _
  $region17: #{cnn_forward.7} parent=0 // pred_fallthru
    _
  %v17 = vld [vmem:[%s0] sm:$0xff]
  %v18 = vld [vmem:[%s0 + $0x8] sm:$0xff]
  %v19 = vld [vmem:[%s0 + $0x10] sm:$0xff]
  %v20 = vld [vmem:[%s0 + $0x18] sm:$0xff]
  %v21 = vld [vmem:[%s0 + $0x20] sm:$0xff]
  %v22 = vld [vmem:[%s0 + $0x28] sm:$0xff]
  %v23 = vld [vmem:[%s0 + $0x30] sm:$0xff]
  %v24 = vld [vmem:[%s0 + $0x38] sm:$0xff]
  %v25 = vld [vmem:[%s0 + $0x40] sm:$0xff]
  %v26 = vld [vmem:[%s0 + $0x48] sm:$0xff]
  %v27 = vld [vmem:[%s0 + $0x50] sm:$0xff]
  %v28 = vld [vmem:[%s0 + $0x58] sm:$0xff]
  %v29 = vld [vmem:[%s0 + $0x60] sm:$0xff]
  %v30 = vld [vmem:[%s0 + $0x68] sm:$0xff]
  %v31 = vld [vmem:[%s0 + $0x70] sm:$0xff]
  %v32 = vld [vmem:[%s0 + $0x78] sm:$0xff]
  %v33 = vld [vmem:[%s0 + $0x80] sm:$0xff]
  %v34 = vld [vmem:[%s0 + $0x88] sm:$0xff]
  %v35 = vld [vmem:[%s0 + $0x90] sm:$0xff]
  %v36 = vld [vmem:[%s0 + $0x98] sm:$0xff]
  %v37 = vld [vmem:[%s0 + $0xa0] sm:$0xff]
  %v38 = vld [vmem:[%s0 + $0xa8] sm:$0xf]
  %v39 = vld [vmem:[%s0 + $0xb0] sm:$0xf]
  %v40 = vld [vmem:[%s0 + $0xb8] sm:$0xf]
  %v41 = vld [vmem:[%s0 + $0xc0] sm:$0xf]
  %v42 = vld [vmem:[%s0 + $0xc8] sm:$0xf]
  %v43 = vld [vmem:[%s0 + $0xd0] sm:$0xf]
  %v44 = vld [vmem:[%s0 + $0xd8] sm:$0xf]
  %v45 = vld [vmem:[%s1] sm:$0xff]
  %v46 = vld [vmem:[%s1 + $0x8] sm:$0xff]
  %v47 = vld [vmem:[%s1 + $0x10] sm:$0xff]
  %v48 = vld [vmem:[%s1 + $0x18] sm:$0xff]
  %v49 = vld [vmem:[%s1 + $0x20] sm:$0xff]
  %v50 = vld [vmem:[%s1 + $0x28] sm:$0xff]
  %v51 = vld [vmem:[%s1 + $0x30] sm:$0xff]
  %v52 = vld [vmem:[%s1 + $0x38] sm:$0xff]
  %v53 = vld [vmem:[%s1 + $0x40] sm:$0xff]
  %v54 = vld [vmem:[%s1 + $0x48] sm:$0xff]
  %v55 = vld [vmem:[%s1 + $0x50] sm:$0xff]
  %v56 = vld [vmem:[%s1 + $0x58] sm:$0xff]
  %v57 = vld [vmem:[%s1 + $0x60] sm:$0xff]
  %v58 = vld [vmem:[%s1 + $0x68] sm:$0xff]
  %v59 = vld [vmem:[%s1 + $0x70] sm:$0xff]
  %v60 = vld [vmem:[%s1 + $0x78] sm:$0xff]
  %v61 = vld [vmem:[%s1 + $0x80] sm:$0xff]
  %v62 = vld [vmem:[%s1 + $0x88] sm:$0xff]
  %v63 = vld [vmem:[%s1 + $0x90] sm:$0xff]
  %v64 = vld [vmem:[%s1 + $0x98] sm:$0xff]
  %v65 = vld [vmem:[%s1 + $0xa0] sm:$0xff]
  %v66 = vld [vmem:[%s1 + $0xa8] sm:$0xf]
  %v67 = vld [vmem:[%s1 + $0xb0] sm:$0xf]
  %v68 = vld [vmem:[%s1 + $0xb8] sm:$0xf]
  %v69 = vld [vmem:[%s1 + $0xc0] sm:$0xf]
  %v70 = vld [vmem:[%s1 + $0xc8] sm:$0xf]
  %v71 = vld [vmem:[%s1 + $0xd0] sm:$0xf]
  %v72 = vld [vmem:[%s1 + $0xd8] sm:$0xf]
  %v73 = vmax.f32 %v17, %v45
  %v74 = vmax.f32 %v18, %v46
  %v75 = vmax.f32 %v19, %v47
  %v76 = vmax.f32 %v20, %v48
  %v77 = vmax.f32 %v21, %v49
  %v78 = vmax.f32 %v22, %v50
  %v79 = vmax.f32 %v23, %v51
  %v80 = vmax.f32 %v24, %v52
  %v81 = vmax.f32 %v25, %v53
  %v82 = vmax.f32 %v26, %v54
  %v83 = vmax.f32 %v27, %v55
  %v84 = vmax.f32 %v28, %v56
  %v85 = vmax.f32 %v29, %v57
  %v86 = vmax.f32 %v30, %v58
  %v87 = vmax.f32 %v31, %v59
  %v88 = vmax.f32 %v32, %v60
  %v89 = vmax.f32 %v33, %v61
  %v90 = vmax.f32 %v34, %v62
  %v91 = vmax.f32 %v35, %v63
  %v92 = vmax.f32 %v36, %v64
  %v93 = vmax.f32 %v37, %v65
  %v94 = vmax.f32 %v38, %v66
  %v95 = vmax.f32 %v39, %v67
  %v96 = vmax.f32 %v40, %v68
  %v97 = vmax.f32 %v41, %v69
  %v98 = vmax.f32 %v42, %v70
  %v99 = vmax.f32 %v43, %v71
  %v100 = vmax.f32 %v44, %v72
  %v101 = vld [vmem:[%s2] sm:$0xff]
  %v102 = vld [vmem:[%s2 + $0x8] sm:$0xff]
  %v103 = vld [vmem:[%s2 + $0x10] sm:$0xff]
  %v104 = vld [vmem:[%s2 + $0x18] sm:$0xff]
  %v105 = vld [vmem:[%s2 + $0x20] sm:$0xff]
  %v106 = vld [vmem:[%s2 + $0x28] sm:$0xff]
  %v107 = vld [vmem:[%s2 + $0x30] sm:$0xff]
  %v108 = vld [vmem:[%s2 + $0x38] sm:$0xff]
  %v109 = vld [vmem:[%s2 + $0x40] sm:$0xff]
  %v110 = vld [vmem:[%s2 + $0x48] sm:$0xff]
  %v111 = vld [vmem:[%s2 + $0x50] sm:$0xff]
  %v112 = vld [vmem:[%s2 + $0x58] sm:$0xff]
  %v113 = vld [vmem:[%s2 + $0x60] sm:$0xff]
  %v114 = vld [vmem:[%s2 + $0x68] sm:$0xff]
  %v115 = vld [vmem:[%s2 + $0x70] sm:$0xff]
  %v116 = vld [vmem:[%s2 + $0x78] sm:$0xff]
  %v117 = vld [vmem:[%s2 + $0x80] sm:$0xff]
  %v118 = vld [vmem:[%s2 + $0x88] sm:$0xff]
  %v119 = vld [vmem:[%s2 + $0x90] sm:$0xff]
  %v120 = vld [vmem:[%s2 + $0x98] sm:$0xff]
  %v121 = vld [vmem:[%s2 + $0xa0] sm:$0xff]
  %v122 = vld [vmem:[%s2 + $0xa8] sm:$0xf]
  %v123 = vld [vmem:[%s2 + $0xb0] sm:$0xf]
  %v124 = vld [vmem:[%s2 + $0xb8] sm:$0xf]
  %v125 = vld [vmem:[%s2 + $0xc0] sm:$0xf]
  %v126 = vld [vmem:[%s2 + $0xc8] sm:$0xf]
  %v127 = vld [vmem:[%s2 + $0xd0] sm:$0xf]
  %v128 = vld [vmem:[%s2 + $0xd8] sm:$0xf]
  %v129 = vld [vmem:[%s3] sm:$0xff]
  %v130 = vld [vmem:[%s3 + $0x8] sm:$0xff]
  %v131 = vld [vmem:[%s3 + $0x10] sm:$0xff]
  %v132 = vld [vmem:[%s3 + $0x18] sm:$0xff]
  %v133 = vld [vmem:[%s3 + $0x20] sm:$0xff]
  %v134 = vld [vmem:[%s3 + $0x28] sm:$0xff]
  %v135 = vld [vmem:[%s3 + $0x30] sm:$0xff]
  %v136 = vld [vmem:[%s3 + $0x38] sm:$0xff]
  %v137 = vld [vmem:[%s3 + $0x40] sm:$0xff]
  %v138 = vld [vmem:[%s3 + $0x48] sm:$0xff]
  %v139 = vld [vmem:[%s3 + $0x50] sm:$0xff]
  %v140 = vld [vmem:[%s3 + $0x58] sm:$0xff]
  %v141 = vld [vmem:[%s3 + $0x60] sm:$0xff]
  %v142 = vld [vmem:[%s3 + $0x68] sm:$0xff]
  %v143 = vld [vmem:[%s3 + $0x70] sm:$0xff]
  %v144 = vld [vmem:[%s3 + $0x78] sm:$0xff]
  %v145 = vld [vmem:[%s3 + $0x80] sm:$0xff]
  %v146 = vld [vmem:[%s3 + $0x88] sm:$0xff]
  %v147 = vld [vmem:[%s3 + $0x90] sm:$0xff]
  %v148 = vld [vmem:[%s3 + $0x98] sm:$0xff]
  %v149 = vld [vmem:[%s3 + $0xa0] sm:$0xff]
  %v150 = vld [vmem:[%s3 + $0xa8] sm:$0xf]
  %v151 = vld [vmem:[%s3 + $0xb0] sm:$0xf]
  %v152 = vld [vmem:[%s3 + $0xb8] sm:$0xf]
  %v153 = vld [vmem:[%s3 + $0xc0] sm:$0xf]
  %v154 = vld [vmem:[%s3 + $0xc8] sm:$0xf]
  %v155 = vld [vmem:[%s3 + $0xd0] sm:$0xf]
  %v156 = vld [vmem:[%s3 + $0xd8] sm:$0xf]
  %v157 = vmax.f32 %v101, %v129
  %v158 = vmax.f32 %v102, %v130
  %v159 = vmax.f32 %v103, %v131
  %v160 = vmax.f32 %v104, %v132
  %v161 = vmax.f32 %v105, %v133
  %v162 = vmax.f32 %v106, %v134
  %v163 = vmax.f32 %v107, %v135
  %v164 = vmax.f32 %v108, %v136
  %v165 = vmax.f32 %v109, %v137
  %v166 = vmax.f32 %v110, %v138
  %v167 = vmax.f32 %v111, %v139
  %v168 = vmax.f32 %v112, %v140
  %v169 = vmax.f32 %v113, %v141
  %v170 = vmax.f32 %v114, %v142
  %v171 = vmax.f32 %v115, %v143
  %v172 = vmax.f32 %v116, %v144
  %v173 = vmax.f32 %v117, %v145
  %v174 = vmax.f32 %v118, %v146
  %v175 = vmax.f32 %v119, %v147
  %v176 = vmax.f32 %v120, %v148
  %v177 = vmax.f32 %v121, %v149
  %v178 = vmax.f32 %v122, %v150
  %v179 = vmax.f32 %v123, %v151
  %v180 = vmax.f32 %v124, %v152
  %v181 = vmax.f32 %v125, %v153
  %v182 = vmax.f32 %v126, %v154
  %v183 = vmax.f32 %v127, %v155
  %v184 = vmax.f32 %v128, %v156
  %v185 = vmax.f32 %v73, %v157
  %v186 = vmax.f32 %v74, %v158
  %v187 = vmax.f32 %v75, %v159
  %v188 = vmax.f32 %v76, %v160
  %v189 = vmax.f32 %v77, %v161
  %v190 = vmax.f32 %v78, %v162
  %v191 = vmax.f32 %v79, %v163
  %v192 = vmax.f32 %v80, %v164
  %v193 = vmax.f32 %v81, %v165
  %v194 = vmax.f32 %v82, %v166
  %v195 = vmax.f32 %v83, %v167
  %v196 = vmax.f32 %v84, %v168
  %v197 = vmax.f32 %v85, %v169
  %v198 = vmax.f32 %v86, %v170
  %v199 = vmax.f32 %v87, %v171
  %v200 = vmax.f32 %v88, %v172
  %v201 = vmax.f32 %v89, %v173
  %v202 = vmax.f32 %v90, %v174
  %v203 = vmax.f32 %v91, %v175
  %v204 = vmax.f32 %v92, %v176
  %v205 = vmax.f32 %v93, %v177
  %v206 = vmax.f32 %v94, %v178
  %v207 = vmax.f32 %v95, %v179
  %v208 = vmax.f32 %v96, %v180
  %v209 = vmax.f32 %v97, %v181
  %v210 = vmax.f32 %v98, %v182
  %v211 = vmax.f32 %v99, %v183
  %v212 = vmax.f32 %v100, %v184
  %213 = vst [vmem:[%s4] sm:$0xff] %v185
  %214 = vst [vmem:[%s4 + $0x8] sm:$0xff] %v186
  %215 = vst [vmem:[%s4 + $0x10] sm:$0xff] %v187
  %216 = vst [vmem:[%s4 + $0x18] sm:$0xff] %v188
  %217 = vst [vmem:[%s4 + $0x20] sm:$0xff] %v189
  %218 = vst [vmem:[%s4 + $0x28] sm:$0xff] %v190
  %219 = vst [vmem:[%s4 + $0x30] sm:$0xff] %v191
  %220 = vst [vmem:[%s4 + $0x38] sm:$0xff] %v192
  %221 = vst [vmem:[%s4 + $0x40] sm:$0xff] %v193
  %222 = vst [vmem:[%s4 + $0x48] sm:$0xff] %v194
  %223 = vst [vmem:[%s4 + $0x50] sm:$0xff] %v195
  %224 = vst [vmem:[%s4 + $0x58] sm:$0xff] %v196
  %225 = vst [vmem:[%s4 + $0x60] sm:$0xff] %v197
  %226 = vst [vmem:[%s4 + $0x68] sm:$0xff] %v198
  %227 = vst [vmem:[%s4 + $0x70] sm:$0xff] %v199
  %228 = vst [vmem:[%s4 + $0x78] sm:$0xff] %v200
  %229 = vst [vmem:[%s4 + $0x80] sm:$0xff] %v201
  %230 = vst [vmem:[%s4 + $0x88] sm:$0xff] %v202
  %231 = vst [vmem:[%s4 + $0x90] sm:$0xff] %v203
  %232 = vst [vmem:[%s4 + $0x98] sm:$0xff] %v204
  %233 = vst [vmem:[%s4 + $0xa0] sm:$0xff] %v205
  %234 = vst [vmem:[%s4 + $0xa8] sm:$0xf] %v206
  %235 = vst [vmem:[%s4 + $0xb0] sm:$0xf] %v207
  %236 = vst [vmem:[%s4 + $0xb8] sm:$0xf] %v208
  %237 = vst [vmem:[%s4 + $0xc0] sm:$0xf] %v209
  %238 = vst [vmem:[%s4 + $0xc8] sm:$0xf] %v210
  %239 = vst [vmem:[%s4 + $0xd0] sm:$0xf] %v211
  %240 = vst [vmem:[%s4 + $0xd8] sm:$0xf] %v212
  // Predicated region
  $region18: #{cnn_forward.7} parent=0 // pred_check
    _
  $region19: #{cnn_forward.7} parent=0 // pred_check_branch
    %242 = sbr.rel (0) target = $region21
  $region20: #{cnn_forward.7} parent=0 // pred_region
    _
  $region21: #{cnn_forward.7} parent=0 // pred_fallthru
    _
  // Predicated region
  $region22: #{cnn_forward.7} parent=0 // pred_check
    _
  $region23: #{cnn_forward.7} parent=0 // pred_check_branch
    %244 = sbr.rel (0) target = $region25
  $region24: #{cnn_forward.7} parent=0 // pred_region
    _
  $region25: #{cnn_forward.7} parent=0 // pred_fallthru
    _

// kernel: cnn_forward.8
$region0: #{cnn_forward.8}
  #allocation0 [shape = 'u32[]', space=smem, size = 0x4, offset = 0x4, fixed_abs, tag = 'smem constant byte address 0x4 - core index']
  #allocation1 [shape = 'u32[72,128]{1,0:T(1,128)}', space=vmem, size = 0x9000, scoped, tag = 'internal scratch']
  %s0 = inlined_call_operand.vmem [shape: f32[512,1024], index: 0, kind: input, shape index: {}]
  %s1 = inlined_call_operand.vmem [shape: f32[1024,128], index: 1, kind: input, shape index: {}]
  %s2 = inlined_call_operand.vmem [shape: f32[1,128], index: 2, kind: input, shape index: {}]
  %s3 = inlined_call_operand.vmem [shape: f32[512,128], index: 3, kind: output, shape index: {}]
  %s4 = sld [smem:[#allocation0]]
  $region45: #{cnn_forward.8} parent=0
    _
  %s6 = ssub.s32 1, %s4
  %s7 = scalar_select 0, %s6, %s4
  loop: start=0, step=1, limit=4
  $region2: #{cnn_forward.8} parent=0 // loop_pre_header
    _
  $region3: #{cnn_forward.8} parent=0 // loop_header
    %s9 = sphi 0, %s13
    %p10 = scmp.ge.s32.totalorder %s9, 4
    %s16 = sphi 0, %s35
    %s17 = sphi 0, %s31
    %s18 = sphi 0, %s27
    %s19 = sphi 0, %s16
    %s20 = sphi 0, %s17
    %s21 = sphi 0, %s18
    %s22 = sphi 0, %s19
    %s23 = sphi 0, %s20
    %s24 = sphi 0, %s21
    %s40 = sphi 0, %s42
    %s43 = sphi 0, %s40
    %s44 = sphi 0, %s43
    %s60 = sphi 0, %s44
    %s68 = sphi 0, %s70
    %s71 = sphi 0, %s68
    %s72 = sphi 0, %s71
    %s88 = sphi 0, %s72
    %s94 = sphi 0, %s96
    %s97 = sphi 0, %s94
    %s98 = sphi 0, %s97
    %s114 = sphi 0, %s98
    %s122 = sphi 0, %s124
    %s125 = sphi 0, %s122
    %s126 = sphi 0, %s125
    %s142 = sphi 0, %s126
  $region4: #{cnn_forward.8} parent=0 // loop_header_branch
    %12 = sbr.rel (%p10) target = $region8
  $region5: #{cnn_forward.8} parent=0 // loop_body
    %s14 = ssub.s32 %s9, 1
    %s15 = ssub.s32 %s9, 2
    %s25 = sadd.s32 1, %s18
    %p26 = scmp.ge.s32.totalorder %s25, 1
    %s27 = scalar_select %p26, 0, %s25
    %s28 = sadd.s32 1, %s17
    %s29 = scalar_select %p26, %s28, %s17
    %p30 = scmp.ge.s32.totalorder %s29, 1
    %s31 = scalar_select %p30, 0, %s29
    %s32 = sadd.s32 1, %s16
    %s33 = scalar_select %p30, %s32, %s16
    %p34 = scmp.ge.s32.totalorder %s33, 2
    %s35 = scalar_select %p34, 0, %s33
    %s36 = ssub.s32 %s16, %s35
    %s37 = ssub.s32 %s18, %s27
    %s38 = sor.u32 %s36, %s37
    %p39 = scmp.eq.s32.totalorder %s38, 0
    %s41 = sadd.s32 %s40, 1
    %s42 = scalar_select %p39, %s40, %s41
    %p45 = pneg %p39
    %p46 = scmp.eq.s32.totalorder %s9, 1
    %p47 = por %p45, %p46
    %p48 = scmp.ne.s32.totalorder %s40, %s43
    %p49 = scmp.eq.s32.totalorder %s9, 0
    %p50 = por %p48, %p49
    %p51 = scmp.ne.s32.totalorder %s40, %s43
    %p52 = scmp.eq.s32.totalorder %s14, 1
    %p53 = por %p51, %p52
    %p54 = scmp.ne.s32.totalorder %s43, %s44
    %p55 = scmp.eq.s32.totalorder %s14, 0
    %p56 = por %p54, %p55
    %p57 = scmp.ne.s32.totalorder %s43, %s44
    %p58 = scmp.eq.s32.totalorder %s15, 1
    %p59 = por %p57, %p58
    %p61 = scmp.ne.s32.totalorder %s44, %s60
    %p62 = scmp.eq.s32.totalorder %s15, 0
    %p63 = por %p61, %p62
    %s64 = ssub.s32 %s18, %s27
    %s65 = ssub.s32 %s17, %s31
    %s66 = sor.u32 %s64, %s65
    %p67 = scmp.eq.s32.totalorder %s66, 0
    %s69 = sadd.s32 %s68, 1
    %s70 = scalar_select %p67, %s68, %s69
    %p73 = pneg %p67
    %p74 = scmp.eq.s32.totalorder %s9, 1
    %p75 = por %p73, %p74
    %p76 = scmp.ne.s32.totalorder %s68, %s71
    %p77 = scmp.eq.s32.totalorder %s9, 0
    %p78 = por %p76, %p77
    %p79 = scmp.ne.s32.totalorder %s68, %s71
    %p80 = scmp.eq.s32.totalorder %s14, 1
    %p81 = por %p79, %p80
    %p82 = scmp.ne.s32.totalorder %s71, %s72
    %p83 = scmp.eq.s32.totalorder %s14, 0
    %p84 = por %p82, %p83
    %p85 = scmp.ne.s32.totalorder %s71, %s72
    %p86 = scmp.eq.s32.totalorder %s15, 1
    %p87 = por %p85, %p86
    %p89 = scmp.ne.s32.totalorder %s72, %s88
    %p90 = scmp.eq.s32.totalorder %s15, 0
    %p91 = por %p89, %p90
    %s92 = ssub.s32 %s17, %s31
    %p93 = scmp.eq.s32.totalorder %s92, 0
    %s95 = sadd.s32 %s94, 1
    %s96 = scalar_select %p93, %s94, %s95
    %p99 = pneg %p93
    %p100 = scmp.eq.s32.totalorder %s9, 1
    %p101 = por %p99, %p100
    %p102 = scmp.ne.s32.totalorder %s94, %s97
    %p103 = scmp.eq.s32.totalorder %s9, 0
    %p104 = por %p102, %p103
    %p105 = scmp.ne.s32.totalorder %s94, %s97
    %p106 = scmp.eq.s32.totalorder %s14, 1
    %p107 = por %p105, %p106
    %p108 = scmp.ne.s32.totalorder %s97, %s98
    %p109 = scmp.eq.s32.totalorder %s14, 0
    %p110 = por %p108, %p109
    %p111 = scmp.ne.s32.totalorder %s97, %s98
    %p112 = scmp.eq.s32.totalorder %s15, 1
    %p113 = por %p111, %p112
    %p115 = scmp.ne.s32.totalorder %s98, %s114
    %p116 = scmp.eq.s32.totalorder %s15, 0
    %p117 = por %p115, %p116
    %s118 = ssub.s32 %s16, %s35
    %s119 = ssub.s32 %s17, %s31
    %s120 = sor.u32 %s118, %s119
    %p121 = scmp.eq.s32.totalorder %s120, 0
    %s123 = sadd.s32 %s122, 1
    %s124 = scalar_select %p121, %s122, %s123
    %p127 = pneg %p121
    %p128 = scmp.eq.s32.totalorder %s9, 1
    %p129 = por %p127, %p128
    %p130 = scmp.ne.s32.totalorder %s122, %s125
    %p131 = scmp.eq.s32.totalorder %s9, 0
    %p132 = por %p130, %p131
    %p133 = scmp.ne.s32.totalorder %s122, %s125
    %p134 = scmp.eq.s32.totalorder %s14, 1
    %p135 = por %p133, %p134
    %p136 = scmp.ne.s32.totalorder %s125, %s126
    %p137 = scmp.eq.s32.totalorder %s14, 0
    %p138 = por %p136, %p137
    %p139 = scmp.ne.s32.totalorder %s125, %s126
    %p140 = scmp.eq.s32.totalorder %s15, 1
    %p141 = por %p139, %p140
    %p143 = scmp.ne.s32.totalorder %s126, %s142
    %p144 = scmp.eq.s32.totalorder %s15, 0
    %p145 = por %p143, %p144
    %p146 = scmp.le.s32.totalorder 1, %s9
    %p147 = scmp.lt.s32.totalorder %s9, 3
    %p148 = pnand %p146, %p147
    %p149 = pneg %p148
    // Predicated region
    $region9: #{cnn_forward.8} parent=5 // pred_check
      _
    $region10: #{cnn_forward.8} parent=5 // pred_check_branch
      %151 = sbr.rel (%p148) target = $region12
    $region11: #{cnn_forward.8} parent=5 // pred_region
      %s152 = ssub.s32 %s9, 1
      // Predicated region
      $region13: #{cnn_forward.8} parent=11 // pred_check
        %p153 = pneg %p84
      $region14: #{cnn_forward.8} parent=11 // pred_check_branch
        %155 = sbr.rel (%p153) target = $region16
      $region15: #{cnn_forward.8} parent=11 // pred_region
        %s156 = smul.u32 128, %s21
        %p157 = scmp.lt.s32.totalorder %s156, 127
        %s158 = scalar_select %p157, %s156, 127
        %p159 = scmp.lt.s32.totalorder %s20, 0
        %s160 = scalar_select %p159, %s20, 0
        %s161 = sadd.s32 %s160, %s158
        %s162 = smul.addr %s161, 8
        %s163 = scalar_lea.vmem %s1, %s162
        %s164 = smul.u32 128, %s21
      $region16: #{cnn_forward.8} parent=11 // pred_fallthru
        _
      // Predicated region
      $region17: #{cnn_forward.8} parent=11 // pred_check
        %p165 = pneg %p110
      $region18: #{cnn_forward.8} parent=11 // pred_check_branch
        %167 = sbr.rel (%p165) target = $region20
      $region19: #{cnn_forward.8} parent=11 // pred_region
        %p168 = scmp.lt.s32.totalorder %s20, 0
        %s169 = scalar_select %p168, %s20, 0
        %s170 = scalar_lea.vmem %s2, %s169
      $region20: #{cnn_forward.8} parent=11 // pred_fallthru
        _
    $region12: #{cnn_forward.8} parent=5 // pred_fallthru
      _
    %p171 = scmp.lt.s32.totalorder %s9, 2
    // Predicated region
    $region21: #{cnn_forward.8} parent=5 // pred_check
      %p172 = pneg %p171
    $region22: #{cnn_forward.8} parent=5 // pred_check_branch
      %174 = sbr.rel (%p172) target = $region24
    $region23: #{cnn_forward.8} parent=5 // pred_region
      // Predicated region
      $region25: #{cnn_forward.8} parent=23 // pred_check
        %p175 = pneg %p50
      $region26: #{cnn_forward.8} parent=23 // pred_check_branch
        %177 = sbr.rel (%p175) target = $region28
      $region27: #{cnn_forward.8} parent=23 // pred_region
        %s178 = smul.u32 32, %s16
        %s179 = smul.u32 8, %s18
        %p180 = scmp.lt.s32.totalorder %s178, 63
        %s181 = scalar_select %p180, %s178, 63
        %p182 = scmp.lt.s32.totalorder %s179, 7
        %s183 = scalar_select %p182, %s179, 7
        %s184 = smul.addr %s181, 8
        %s185 = sadd.s32 %s183, %s184
        %s186 = smul.addr %s185, 8
        %s187 = scalar_lea.vmem %s0, %s186
        %s188 = smul.u32 32, %s16
        %s189 = smul.u32 8, %s18
      $region28: #{cnn_forward.8} parent=23 // pred_fallthru
        _
    $region24: #{cnn_forward.8} parent=5 // pred_fallthru
      _
    %p190 = scmp.le.s32.totalorder 1, %s9
    %p191 = scmp.lt.s32.totalorder %s9, 3
    %p192 = pnand %p190, %p191
    %p193 = pneg %p192
    // Predicated region
    $region29: #{cnn_forward.8} parent=5 // pred_check
      _
    $region30: #{cnn_forward.8} parent=5 // pred_check_branch
      %195 = sbr.rel (%p192) target = $region32
    $region31: #{cnn_forward.8} parent=5 // pred_region
      %s196 = ssub.s32 %s9, 1
      %s197 = smul.u32 32, %s19
      %s198 = smul.u32 8, %s21
      %p199 = scmp.lt.s32.totalorder %s197, 63
      %s200 = scalar_select %p199, %s197, 63
      %p201 = scmp.lt.s32.totalorder %s198, 7
      %s202 = scalar_select %p201, %s198, 7
      %s203 = smul.addr %s200, 8
      %s204 = sadd.s32 %s202, %s203
      %s205 = smul.addr %s204, 8
      %s206 = scalar_lea.vmem %s0, %s205
      %p207 = pneg %p56
      %p208 = pneg %p53
      %s209 = smul.u32 128, %s21
      %p210 = scmp.lt.s32.totalorder %s209, 127
      %s211 = scalar_select %p210, %s209, 127
      %p212 = scmp.lt.s32.totalorder %s20, 0
      %s213 = scalar_select %p212, %s20, 0
      %s214 = sadd.s32 %s213, %s211
      %s215 = smul.addr %s214, 8
      %s216 = scalar_lea.vmem %s1, %s215
      %p217 = pneg %p84
      %p218 = pneg %p81
      %p219 = scmp.lt.s32.totalorder %s20, 0
      %s220 = scalar_select %p219, %s20, 0
      %s221 = scalar_lea.vmem %s2, %s220
      %p222 = pneg %p110
      %p223 = pneg %p107
      %p224 = pneg %p138
      %p225 = pneg %p135
      %s226 = smul.u32 32, %s19
      %p227 = scmp.lt.s32.totalorder %s226, 63
      %s228 = scalar_select %p227, %s226, 63
      %p229 = scmp.lt.s32.totalorder %s20, 0
      %s230 = scalar_select %p229, %s20, 0
      %s231 = sadd.s32 %s230, %s228
      %s232 = smul.addr %s231, 8
      %s233 = scalar_lea.vmem %s3, %s232
      %s234 = smul.u32 32, %s19
      %s235 = smul.u32 8, %s21
      %p236 = scmp.lt.s32.totalorder %s234, 63
      %s237 = scalar_select %p236, %s234, 63
      %p238 = scmp.lt.s32.totalorder %s235, 7
      %s239 = scalar_select %p238, %s235, 7
      %s240 = smul.addr %s237, 8
      %s241 = sadd.s32 %s239, %s240
      %s242 = smul.addr %s241, 8
      %s243 = scalar_lea.vmem %s0, %s242
      %s244 = smul.u32 32, %s19
      %s245 = smul.u32 8, %s21
      %s246 = smul.u32 128, %s21
      %p247 = scmp.lt.s32.totalorder %s246, 127
      %s248 = scalar_select %p247, %s246, 127
      %p249 = scmp.lt.s32.totalorder %s20, 0
      %s250 = scalar_select %p249, %s20, 0
      %s251 = sadd.s32 %s250, %s248
      %s252 = smul.addr %s251, 8
      %s253 = scalar_lea.vmem %s1, %s252
      %s254 = smul.u32 128, %s21
      %p255 = scmp.lt.s32.totalorder %s20, 0
      %s256 = scalar_select %p255, %s20, 0
      %s257 = scalar_lea.vmem %s2, %s256
      %s258 = smul.u32 32, %s19
      %p259 = scmp.lt.s32.totalorder %s258, 63
      %s260 = scalar_select %p259, %s258, 63
      %p261 = scmp.lt.s32.totalorder %s20, 0
      %s262 = scalar_select %p261, %s20, 0
      %s263 = sadd.s32 %s262, %s260
      %s264 = smul.addr %s263, 8
      %s265 = scalar_lea.vmem %s3, %s264
      %s266 = smul.u32 32, %s19
      %v267 = vld [vmem:[%s243] sm:$0xff]
      %v268 = vld [vmem:[%s243 + $0x8] sm:$0xff]
      %v269 = vld [vmem:[%s243 + $0x10] sm:$0xff]
      %v270 = vld [vmem:[%s243 + $0x18] sm:$0xff]
      %v271 = vld [vmem:[%s243 + $0x20] sm:$0xff]
      %v272 = vld [vmem:[%s243 + $0x28] sm:$0xff]
      %v273 = vld [vmem:[%s243 + $0x30] sm:$0xff]
      %v274 = vld [vmem:[%s243 + $0x38] sm:$0xff]
      %v275 = vld [vmem:[%s243 + $0x40] sm:$0xff]
      %v276 = vld [vmem:[%s243 + $0x48] sm:$0xff]
      %v277 = vld [vmem:[%s243 + $0x50] sm:$0xff]
      %v278 = vld [vmem:[%s243 + $0x58] sm:$0xff]
      %v279 = vld [vmem:[%s243 + $0x60] sm:$0xff]
      %v280 = vld [vmem:[%s243 + $0x68] sm:$0xff]
      %v281 = vld [vmem:[%s243 + $0x70] sm:$0xff]
      %v282 = vld [vmem:[%s243 + $0x78] sm:$0xff]
      %v283 = vld [vmem:[%s243 + $0x80] sm:$0xff]
      %v284 = vld [vmem:[%s243 + $0x88] sm:$0xff]
      %v285 = vld [vmem:[%s243 + $0x90] sm:$0xff]
      %v286 = vld [vmem:[%s243 + $0x98] sm:$0xff]
      %v287 = vld [vmem:[%s243 + $0xa0] sm:$0xff]
      %v288 = vld [vmem:[%s243 + $0xa8] sm:$0xff]
      %v289 = vld [vmem:[%s243 + $0xb0] sm:$0xff]
      %v290 = vld [vmem:[%s243 + $0xb8] sm:$0xff]
      %v291 = vld [vmem:[%s243 + $0xc0] sm:$0xff]
      %v292 = vld [vmem:[%s243 + $0xc8] sm:$0xff]
      %v293 = vld [vmem:[%s243 + $0xd0] sm:$0xff]
      %v294 = vld [vmem:[%s243 + $0xd8] sm:$0xff]
      %v295 = vld [vmem:[%s243 + $0xe0] sm:$0xff]
      %v296 = vld [vmem:[%s243 + $0xe8] sm:$0xff]
      %v297 = vld [vmem:[%s243 + $0xf0] sm:$0xff]
      %v298 = vld [vmem:[%s243 + $0xf8] sm:$0xff]
      %v299 = vld [vmem:[%s243 + $0x100] sm:$0xff]
      %v300 = vld [vmem:[%s243 + $0x108] sm:$0xff]
      %v301 = vld [vmem:[%s243 + $0x110] sm:$0xff]
      %v302 = vld [vmem:[%s243 + $0x118] sm:$0xff]
      %v303 = vld [vmem:[%s243 + $0x120] sm:$0xff]
      %v304 = vld [vmem:[%s243 + $0x128] sm:$0xff]
      %v305 = vld [vmem:[%s243 + $0x130] sm:$0xff]
      %v306 = vld [vmem:[%s243 + $0x138] sm:$0xff]
      %v307 = vld [vmem:[%s243 + $0x140] sm:$0xff]
      %v308 = vld [vmem:[%s243 + $0x148] sm:$0xff]
      %v309 = vld [vmem:[%s243 + $0x150] sm:$0xff]
      %v310 = vld [vmem:[%s243 + $0x158] sm:$0xff]
      %v311 = vld [vmem:[%s243 + $0x160] sm:$0xff]
      %v312 = vld [vmem:[%s243 + $0x168] sm:$0xff]
      %v313 = vld [vmem:[%s243 + $0x170] sm:$0xff]
      %v314 = vld [vmem:[%s243 + $0x178] sm:$0xff]
      %v315 = vld [vmem:[%s243 + $0x180] sm:$0xff]
      %v316 = vld [vmem:[%s243 + $0x188] sm:$0xff]
      %v317 = vld [vmem:[%s243 + $0x190] sm:$0xff]
      %v318 = vld [vmem:[%s243 + $0x198] sm:$0xff]
      %v319 = vld [vmem:[%s243 + $0x1a0] sm:$0xff]
      %v320 = vld [vmem:[%s243 + $0x1a8] sm:$0xff]
      %v321 = vld [vmem:[%s243 + $0x1b0] sm:$0xff]
      %v322 = vld [vmem:[%s243 + $0x1b8] sm:$0xff]
      %v323 = vld [vmem:[%s243 + $0x1c0] sm:$0xff]
      %v324 = vld [vmem:[%s243 + $0x1c8] sm:$0xff]
      %v325 = vld [vmem:[%s243 + $0x1d0] sm:$0xff]
      %v326 = vld [vmem:[%s243 + $0x1d8] sm:$0xff]
      %v327 = vld [vmem:[%s243 + $0x1e0] sm:$0xff]
      %v328 = vld [vmem:[%s243 + $0x1e8] sm:$0xff]
      %v329 = vld [vmem:[%s243 + $0x1f0] sm:$0xff]
      %v330 = vld [vmem:[%s243 + $0x1f8] sm:$0xff]
      %v331 = vld [vmem:[%s243 + $0x200] sm:$0xff]
      %v332 = vld [vmem:[%s243 + $0x208] sm:$0xff]
      %v333 = vld [vmem:[%s243 + $0x210] sm:$0xff]
      %v334 = vld [vmem:[%s243 + $0x218] sm:$0xff]
      %v335 = vld [vmem:[%s243 + $0x220] sm:$0xff]
      %v336 = vld [vmem:[%s243 + $0x228] sm:$0xff]
      %v337 = vld [vmem:[%s243 + $0x230] sm:$0xff]
      %v338 = vld [vmem:[%s243 + $0x238] sm:$0xff]
      %v339 = vld [vmem:[%s243 + $0x240] sm:$0xff]
      %v340 = vld [vmem:[%s243 + $0x248] sm:$0xff]
      %v341 = vld [vmem:[%s243 + $0x250] sm:$0xff]
      %v342 = vld [vmem:[%s243 + $0x258] sm:$0xff]
      %v343 = vld [vmem:[%s243 + $0x260] sm:$0xff]
      %v344 = vld [vmem:[%s243 + $0x268] sm:$0xff]
      %v345 = vld [vmem:[%s243 + $0x270] sm:$0xff]
      %v346 = vld [vmem:[%s243 + $0x278] sm:$0xff]
      %v347 = vld [vmem:[%s243 + $0x280] sm:$0xff]
      %v348 = vld [vmem:[%s243 + $0x288] sm:$0xff]
      %v349 = vld [vmem:[%s243 + $0x290] sm:$0xff]
      %v350 = vld [vmem:[%s243 + $0x298] sm:$0xff]
      %v351 = vld [vmem:[%s243 + $0x2a0] sm:$0xff]
      %v352 = vld [vmem:[%s243 + $0x2a8] sm:$0xff]
      %v353 = vld [vmem:[%s243 + $0x2b0] sm:$0xff]
      %v354 = vld [vmem:[%s243 + $0x2b8] sm:$0xff]
      %v355 = vld [vmem:[%s243 + $0x2c0] sm:$0xff]
      %v356 = vld [vmem:[%s243 + $0x2c8] sm:$0xff]
      %v357 = vld [vmem:[%s243 + $0x2d0] sm:$0xff]
      %v358 = vld [vmem:[%s243 + $0x2d8] sm:$0xff]
      %v359 = vld [vmem:[%s243 + $0x2e0] sm:$0xff]
      %v360 = vld [vmem:[%s243 + $0x2e8] sm:$0xff]
      %v361 = vld [vmem:[%s243 + $0x2f0] sm:$0xff]
      %v362 = vld [vmem:[%s243 + $0x2f8] sm:$0xff]
      %v363 = vld [vmem:[%s243 + $0x300] sm:$0xff]
      %v364 = vld [vmem:[%s243 + $0x308] sm:$0xff]
      %v365 = vld [vmem:[%s243 + $0x310] sm:$0xff]
      %v366 = vld [vmem:[%s243 + $0x318] sm:$0xff]
      %v367 = vld [vmem:[%s243 + $0x320] sm:$0xff]
      %v368 = vld [vmem:[%s243 + $0x328] sm:$0xff]
      %v369 = vld [vmem:[%s243 + $0x330] sm:$0xff]
      %v370 = vld [vmem:[%s243 + $0x338] sm:$0xff]
      %v371 = vld [vmem:[%s243 + $0x340] sm:$0xff]
      %v372 = vld [vmem:[%s243 + $0x348] sm:$0xff]
      %v373 = vld [vmem:[%s243 + $0x350] sm:$0xff]
      %v374 = vld [vmem:[%s243 + $0x358] sm:$0xff]
      %v375 = vld [vmem:[%s243 + $0x360] sm:$0xff]
      %v376 = vld [vmem:[%s243 + $0x368] sm:$0xff]
      %v377 = vld [vmem:[%s243 + $0x370] sm:$0xff]
      %v378 = vld [vmem:[%s243 + $0x378] sm:$0xff]
      %v379 = vld [vmem:[%s243 + $0x380] sm:$0xff]
      %v380 = vld [vmem:[%s243 + $0x388] sm:$0xff]
      %v381 = vld [vmem:[%s243 + $0x390] sm:$0xff]
      %v382 = vld [vmem:[%s243 + $0x398] sm:$0xff]
      %v383 = vld [vmem:[%s243 + $0x3a0] sm:$0xff]
      %v384 = vld [vmem:[%s243 + $0x3a8] sm:$0xff]
      %v385 = vld [vmem:[%s243 + $0x3b0] sm:$0xff]
      %v386 = vld [vmem:[%s243 + $0x3b8] sm:$0xff]
      %v387 = vld [vmem:[%s243 + $0x3c0] sm:$0xff]
      %v388 = vld [vmem:[%s243 + $0x3c8] sm:$0xff]
      %v389 = vld [vmem:[%s243 + $0x3d0] sm:$0xff]
      %v390 = vld [vmem:[%s243 + $0x3d8] sm:$0xff]
      %v391 = vld [vmem:[%s243 + $0x3e0] sm:$0xff]
      %v392 = vld [vmem:[%s243 + $0x3e8] sm:$0xff]
      %v393 = vld [vmem:[%s243 + $0x3f0] sm:$0xff]
      %v394 = vld [vmem:[%s243 + $0x3f8] sm:$0xff]
      %v395 = vld [vmem:[%s243 + $0x400] sm:$0xff]
      %v396 = vld [vmem:[%s243 + $0x408] sm:$0xff]
      %v397 = vld [vmem:[%s243 + $0x410] sm:$0xff]
      %v398 = vld [vmem:[%s243 + $0x418] sm:$0xff]
      %v399 = vld [vmem:[%s243 + $0x420] sm:$0xff]
      %v400 = vld [vmem:[%s243 + $0x428] sm:$0xff]
      %v401 = vld [vmem:[%s243 + $0x430] sm:$0xff]
      %v402 = vld [vmem:[%s243 + $0x438] sm:$0xff]
      %v403 = vld [vmem:[%s243 + $0x440] sm:$0xff]
      %v404 = vld [vmem:[%s243 + $0x448] sm:$0xff]
      %v405 = vld [vmem:[%s243 + $0x450] sm:$0xff]
      %v406 = vld [vmem:[%s243 + $0x458] sm:$0xff]
      %v407 = vld [vmem:[%s243 + $0x460] sm:$0xff]
      %v408 = vld [vmem:[%s243 + $0x468] sm:$0xff]
      %v409 = vld [vmem:[%s243 + $0x470] sm:$0xff]
      %v410 = vld [vmem:[%s243 + $0x478] sm:$0xff]
      %v411 = vld [vmem:[%s243 + $0x480] sm:$0xff]
      %v412 = vld [vmem:[%s243 + $0x488] sm:$0xff]
      %v413 = vld [vmem:[%s243 + $0x490] sm:$0xff]
      %v414 = vld [vmem:[%s243 + $0x498] sm:$0xff]
      %v415 = vld [vmem:[%s243 + $0x4a0] sm:$0xff]
      %v416 = vld [vmem:[%s243 + $0x4a8] sm:$0xff]
      %v417 = vld [vmem:[%s243 + $0x4b0] sm:$0xff]
      %v418 = vld [vmem:[%s243 + $0x4b8] sm:$0xff]
      %v419 = vld [vmem:[%s243 + $0x4c0] sm:$0xff]
      %v420 = vld [vmem:[%s243 + $0x4c8] sm:$0xff]
      %v421 = vld [vmem:[%s243 + $0x4d0] sm:$0xff]
      %v422 = vld [vmem:[%s243 + $0x4d8] sm:$0xff]
      %v423 = vld [vmem:[%s243 + $0x4e0] sm:$0xff]
      %v424 = vld [vmem:[%s243 + $0x4e8] sm:$0xff]
      %v425 = vld [vmem:[%s243 + $0x4f0] sm:$0xff]
      %v426 = vld [vmem:[%s243 + $0x4f8] sm:$0xff]
      %v427 = vld [vmem:[%s243 + $0x500] sm:$0xff]
      %v428 = vld [vmem:[%s243 + $0x508] sm:$0xff]
      %v429 = vld [vmem:[%s243 + $0x510] sm:$0xff]
      %v430 = vld [vmem:[%s243 + $0x518] sm:$0xff]
      %v431 = vld [vmem:[%s243 + $0x520] sm:$0xff]
      %v432 = vld [vmem:[%s243 + $0x528] sm:$0xff]
      %v433 = vld [vmem:[%s243 + $0x530] sm:$0xff]
      %v434 = vld [vmem:[%s243 + $0x538] sm:$0xff]
      %v435 = vld [vmem:[%s243 + $0x540] sm:$0xff]
      %v436 = vld [vmem:[%s243 + $0x548] sm:$0xff]
      %v437 = vld [vmem:[%s243 + $0x550] sm:$0xff]
      %v438 = vld [vmem:[%s243 + $0x558] sm:$0xff]
      %v439 = vld [vmem:[%s243 + $0x560] sm:$0xff]
      %v440 = vld [vmem:[%s243 + $0x568] sm:$0xff]
      %v441 = vld [vmem:[%s243 + $0x570] sm:$0xff]
      %v442 = vld [vmem:[%s243 + $0x578] sm:$0xff]
      %v443 = vld [vmem:[%s243 + $0x580] sm:$0xff]
      %v444 = vld [vmem:[%s243 + $0x588] sm:$0xff]
      %v445 = vld [vmem:[%s243 + $0x590] sm:$0xff]
      %v446 = vld [vmem:[%s243 + $0x598] sm:$0xff]
      %v447 = vld [vmem:[%s243 + $0x5a0] sm:$0xff]
      %v448 = vld [vmem:[%s243 + $0x5a8] sm:$0xff]
      %v449 = vld [vmem:[%s243 + $0x5b0] sm:$0xff]
      %v450 = vld [vmem:[%s243 + $0x5b8] sm:$0xff]
      %v451 = vld [vmem:[%s243 + $0x5c0] sm:$0xff]
      %v452 = vld [vmem:[%s243 + $0x5c8] sm:$0xff]
      %v453 = vld [vmem:[%s243 + $0x5d0] sm:$0xff]
      %v454 = vld [vmem:[%s243 + $0x5d8] sm:$0xff]
      %v455 = vld [vmem:[%s243 + $0x5e0] sm:$0xff]
      %v456 = vld [vmem:[%s243 + $0x5e8] sm:$0xff]
      %v457 = vld [vmem:[%s243 + $0x5f0] sm:$0xff]
      %v458 = vld [vmem:[%s243 + $0x5f8] sm:$0xff]
      %v459 = vld [vmem:[%s243 + $0x600] sm:$0xff]
      %v460 = vld [vmem:[%s243 + $0x608] sm:$0xff]
      %v461 = vld [vmem:[%s243 + $0x610] sm:$0xff]
      %v462 = vld [vmem:[%s243 + $0x618] sm:$0xff]
      %v463 = vld [vmem:[%s243 + $0x620] sm:$0xff]
      %v464 = vld [vmem:[%s243 + $0x628] sm:$0xff]
      %v465 = vld [vmem:[%s243 + $0x630] sm:$0xff]
      %v466 = vld [vmem:[%s243 + $0x638] sm:$0xff]
      %v467 = vld [vmem:[%s243 + $0x640] sm:$0xff]
      %v468 = vld [vmem:[%s243 + $0x648] sm:$0xff]
      %v469 = vld [vmem:[%s243 + $0x650] sm:$0xff]
      %v470 = vld [vmem:[%s243 + $0x658] sm:$0xff]
      %v471 = vld [vmem:[%s243 + $0x660] sm:$0xff]
      %v472 = vld [vmem:[%s243 + $0x668] sm:$0xff]
      %v473 = vld [vmem:[%s243 + $0x670] sm:$0xff]
      %v474 = vld [vmem:[%s243 + $0x678] sm:$0xff]
      %v475 = vld [vmem:[%s243 + $0x680] sm:$0xff]
      %v476 = vld [vmem:[%s243 + $0x688] sm:$0xff]
      %v477 = vld [vmem:[%s243 + $0x690] sm:$0xff]
      %v478 = vld [vmem:[%s243 + $0x698] sm:$0xff]
      %v479 = vld [vmem:[%s243 + $0x6a0] sm:$0xff]
      %v480 = vld [vmem:[%s243 + $0x6a8] sm:$0xff]
      %v481 = vld [vmem:[%s243 + $0x6b0] sm:$0xff]
      %v482 = vld [vmem:[%s243 + $0x6b8] sm:$0xff]
      %v483 = vld [vmem:[%s243 + $0x6c0] sm:$0xff]
      %v484 = vld [vmem:[%s243 + $0x6c8] sm:$0xff]
      %v485 = vld [vmem:[%s243 + $0x6d0] sm:$0xff]
      %v486 = vld [vmem:[%s243 + $0x6d8] sm:$0xff]
      %v487 = vld [vmem:[%s243 + $0x6e0] sm:$0xff]
      %v488 = vld [vmem:[%s243 + $0x6e8] sm:$0xff]
      %v489 = vld [vmem:[%s243 + $0x6f0] sm:$0xff]
      %v490 = vld [vmem:[%s243 + $0x6f8] sm:$0xff]
      %v491 = vld [vmem:[%s243 + $0x700] sm:$0xff]
      %v492 = vld [vmem:[%s243 + $0x708] sm:$0xff]
      %v493 = vld [vmem:[%s243 + $0x710] sm:$0xff]
      %v494 = vld [vmem:[%s243 + $0x718] sm:$0xff]
      %v495 = vld [vmem:[%s243 + $0x720] sm:$0xff]
      %v496 = vld [vmem:[%s243 + $0x728] sm:$0xff]
      %v497 = vld [vmem:[%s243 + $0x730] sm:$0xff]
      %v498 = vld [vmem:[%s243 + $0x738] sm:$0xff]
      %v499 = vld [vmem:[%s243 + $0x740] sm:$0xff]
      %v500 = vld [vmem:[%s243 + $0x748] sm:$0xff]
      %v501 = vld [vmem:[%s243 + $0x750] sm:$0xff]
      %v502 = vld [vmem:[%s243 + $0x758] sm:$0xff]
      %v503 = vld [vmem:[%s243 + $0x760] sm:$0xff]
      %v504 = vld [vmem:[%s243 + $0x768] sm:$0xff]
      %v505 = vld [vmem:[%s243 + $0x770] sm:$0xff]
      %v506 = vld [vmem:[%s243 + $0x778] sm:$0xff]
      %v507 = vld [vmem:[%s243 + $0x780] sm:$0xff]
      %v508 = vld [vmem:[%s243 + $0x788] sm:$0xff]
      %v509 = vld [vmem:[%s243 + $0x790] sm:$0xff]
      %v510 = vld [vmem:[%s243 + $0x798] sm:$0xff]
      %v511 = vld [vmem:[%s243 + $0x7a0] sm:$0xff]
      %v512 = vld [vmem:[%s243 + $0x7a8] sm:$0xff]
      %v513 = vld [vmem:[%s243 + $0x7b0] sm:$0xff]
      %v514 = vld [vmem:[%s243 + $0x7b8] sm:$0xff]
      %v515 = vld [vmem:[%s243 + $0x7c0] sm:$0xff]
      %v516 = vld [vmem:[%s243 + $0x7c8] sm:$0xff]
      %v517 = vld [vmem:[%s243 + $0x7d0] sm:$0xff]
      %v518 = vld [vmem:[%s243 + $0x7d8] sm:$0xff]
      %v519 = vld [vmem:[%s243 + $0x7e0] sm:$0xff]
      %v520 = vld [vmem:[%s243 + $0x7e8] sm:$0xff]
      %v521 = vld [vmem:[%s243 + $0x7f0] sm:$0xff]
      %v522 = vld [vmem:[%s243 + $0x7f8] sm:$0xff]
      %v523 = vld [vmem:[%s253] sm:$0xff]
      %v524 = vld [vmem:[%s253 + $0x8] sm:$0xff]
      %v525 = vld [vmem:[%s253 + $0x10] sm:$0xff]
      %v526 = vld [vmem:[%s253 + $0x18] sm:$0xff]
      %v527 = vld [vmem:[%s253 + $0x20] sm:$0xff]
      %v528 = vld [vmem:[%s253 + $0x28] sm:$0xff]
      %v529 = vld [vmem:[%s253 + $0x30] sm:$0xff]
      %v530 = vld [vmem:[%s253 + $0x38] sm:$0xff]
      %v531 = vld [vmem:[%s253 + $0x40] sm:$0xff]
      %v532 = vld [vmem:[%s253 + $0x48] sm:$0xff]
      %v533 = vld [vmem:[%s253 + $0x50] sm:$0xff]
      %v534 = vld [vmem:[%s253 + $0x58] sm:$0xff]
      %v535 = vld [vmem:[%s253 + $0x60] sm:$0xff]
      %v536 = vld [vmem:[%s253 + $0x68] sm:$0xff]
      %v537 = vld [vmem:[%s253 + $0x70] sm:$0xff]
      %v538 = vld [vmem:[%s253 + $0x78] sm:$0xff]
      %v539 = vld [vmem:[%s253 + $0x80] sm:$0xff]
      %v540 = vld [vmem:[%s253 + $0x88] sm:$0xff]
      %v541 = vld [vmem:[%s253 + $0x90] sm:$0xff]
      %v542 = vld [vmem:[%s253 + $0x98] sm:$0xff]
      %v543 = vld [vmem:[%s253 + $0xa0] sm:$0xff]
      %v544 = vld [vmem:[%s253 + $0xa8] sm:$0xff]
      %v545 = vld [vmem:[%s253 + $0xb0] sm:$0xff]
      %v546 = vld [vmem:[%s253 + $0xb8] sm:$0xff]
      %v547 = vld [vmem:[%s253 + $0xc0] sm:$0xff]
      %v548 = vld [vmem:[%s253 + $0xc8] sm:$0xff]
      %v549 = vld [vmem:[%s253 + $0xd0] sm:$0xff]
      %v550 = vld [vmem:[%s253 + $0xd8] sm:$0xff]
      %v551 = vld [vmem:[%s253 + $0xe0] sm:$0xff]
      %v552 = vld [vmem:[%s253 + $0xe8] sm:$0xff]
      %v553 = vld [vmem:[%s253 + $0xf0] sm:$0xff]
      %v554 = vld [vmem:[%s253 + $0xf8] sm:$0xff]
      %v555 = vld [vmem:[%s253 + $0x100] sm:$0xff]
      %v556 = vld [vmem:[%s253 + $0x108] sm:$0xff]
      %v557 = vld [vmem:[%s253 + $0x110] sm:$0xff]
      %v558 = vld [vmem:[%s253 + $0x118] sm:$0xff]
      %v559 = vld [vmem:[%s253 + $0x120] sm:$0xff]
      %v560 = vld [vmem:[%s253 + $0x128] sm:$0xff]
      %v561 = vld [vmem:[%s253 + $0x130] sm:$0xff]
      %v562 = vld [vmem:[%s253 + $0x138] sm:$0xff]
      %v563 = vld [vmem:[%s253 + $0x140] sm:$0xff]
      %v564 = vld [vmem:[%s253 + $0x148] sm:$0xff]
      %v565 = vld [vmem:[%s253 + $0x150] sm:$0xff]
      %v566 = vld [vmem:[%s253 + $0x158] sm:$0xff]
      %v567 = vld [vmem:[%s253 + $0x160] sm:$0xff]
      %v568 = vld [vmem:[%s253 + $0x168] sm:$0xff]
      %v569 = vld [vmem:[%s253 + $0x170] sm:$0xff]
      %v570 = vld [vmem:[%s253 + $0x178] sm:$0xff]
      %v571 = vld [vmem:[%s253 + $0x180] sm:$0xff]
      %v572 = vld [vmem:[%s253 + $0x188] sm:$0xff]
      %v573 = vld [vmem:[%s253 + $0x190] sm:$0xff]
      %v574 = vld [vmem:[%s253 + $0x198] sm:$0xff]
      %v575 = vld [vmem:[%s253 + $0x1a0] sm:$0xff]
      %v576 = vld [vmem:[%s253 + $0x1a8] sm:$0xff]
      %v577 = vld [vmem:[%s253 + $0x1b0] sm:$0xff]
      %v578 = vld [vmem:[%s253 + $0x1b8] sm:$0xff]
      %v579 = vld [vmem:[%s253 + $0x1c0] sm:$0xff]
      %v580 = vld [vmem:[%s253 + $0x1c8] sm:$0xff]
      %v581 = vld [vmem:[%s253 + $0x1d0] sm:$0xff]
      %v582 = vld [vmem:[%s253 + $0x1d8] sm:$0xff]
      %v583 = vld [vmem:[%s253 + $0x1e0] sm:$0xff]
      %v584 = vld [vmem:[%s253 + $0x1e8] sm:$0xff]
      %v585 = vld [vmem:[%s253 + $0x1f0] sm:$0xff]
      %v586 = vld [vmem:[%s253 + $0x1f8] sm:$0xff]
      %v587 = vld [vmem:[%s253 + $0x200] sm:$0xff]
      %v588 = vld [vmem:[%s253 + $0x208] sm:$0xff]
      %v589 = vld [vmem:[%s253 + $0x210] sm:$0xff]
      %v590 = vld [vmem:[%s253 + $0x218] sm:$0xff]
      %v591 = vld [vmem:[%s253 + $0x220] sm:$0xff]
      %v592 = vld [vmem:[%s253 + $0x228] sm:$0xff]
      %v593 = vld [vmem:[%s253 + $0x230] sm:$0xff]
      %v594 = vld [vmem:[%s253 + $0x238] sm:$0xff]
      %v595 = vld [vmem:[%s253 + $0x240] sm:$0xff]
      %v596 = vld [vmem:[%s253 + $0x248] sm:$0xff]
      %v597 = vld [vmem:[%s253 + $0x250] sm:$0xff]
      %v598 = vld [vmem:[%s253 + $0x258] sm:$0xff]
      %v599 = vld [vmem:[%s253 + $0x260] sm:$0xff]
      %v600 = vld [vmem:[%s253 + $0x268] sm:$0xff]
      %v601 = vld [vmem:[%s253 + $0x270] sm:$0xff]
      %v602 = vld [vmem:[%s253 + $0x278] sm:$0xff]
      %v603 = vld [vmem:[%s253 + $0x280] sm:$0xff]
      %v604 = vld [vmem:[%s253 + $0x288] sm:$0xff]
      %v605 = vld [vmem:[%s253 + $0x290] sm:$0xff]
      %v606 = vld [vmem:[%s253 + $0x298] sm:$0xff]
      %v607 = vld [vmem:[%s253 + $0x2a0] sm:$0xff]
      %v608 = vld [vmem:[%s253 + $0x2a8] sm:$0xff]
      %v609 = vld [vmem:[%s253 + $0x2b0] sm:$0xff]
      %v610 = vld [vmem:[%s253 + $0x2b8] sm:$0xff]
      %v611 = vld [vmem:[%s253 + $0x2c0] sm:$0xff]
      %v612 = vld [vmem:[%s253 + $0x2c8] sm:$0xff]
      %v613 = vld [vmem:[%s253 + $0x2d0] sm:$0xff]
      %v614 = vld [vmem:[%s253 + $0x2d8] sm:$0xff]
      %v615 = vld [vmem:[%s253 + $0x2e0] sm:$0xff]
      %v616 = vld [vmem:[%s253 + $0x2e8] sm:$0xff]
      %v617 = vld [vmem:[%s253 + $0x2f0] sm:$0xff]
      %v618 = vld [vmem:[%s253 + $0x2f8] sm:$0xff]
      %v619 = vld [vmem:[%s253 + $0x300] sm:$0xff]
      %v620 = vld [vmem:[%s253 + $0x308] sm:$0xff]
      %v621 = vld [vmem:[%s253 + $0x310] sm:$0xff]
      %v622 = vld [vmem:[%s253 + $0x318] sm:$0xff]
      %v623 = vld [vmem:[%s253 + $0x320] sm:$0xff]
      %v624 = vld [vmem:[%s253 + $0x328] sm:$0xff]
      %v625 = vld [vmem:[%s253 + $0x330] sm:$0xff]
      %v626 = vld [vmem:[%s253 + $0x338] sm:$0xff]
      %v627 = vld [vmem:[%s253 + $0x340] sm:$0xff]
      %v628 = vld [vmem:[%s253 + $0x348] sm:$0xff]
      %v629 = vld [vmem:[%s253 + $0x350] sm:$0xff]
      %v630 = vld [vmem:[%s253 + $0x358] sm:$0xff]
      %v631 = vld [vmem:[%s253 + $0x360] sm:$0xff]
      %v632 = vld [vmem:[%s253 + $0x368] sm:$0xff]
      %v633 = vld [vmem:[%s253 + $0x370] sm:$0xff]
      %v634 = vld [vmem:[%s253 + $0x378] sm:$0xff]
      %v635 = vld [vmem:[%s253 + $0x380] sm:$0xff]
      %v636 = vld [vmem:[%s253 + $0x388] sm:$0xff]
      %v637 = vld [vmem:[%s253 + $0x390] sm:$0xff]
      %v638 = vld [vmem:[%s253 + $0x398] sm:$0xff]
      %v639 = vld [vmem:[%s253 + $0x3a0] sm:$0xff]
      %v640 = vld [vmem:[%s253 + $0x3a8] sm:$0xff]
      %v641 = vld [vmem:[%s253 + $0x3b0] sm:$0xff]
      %v642 = vld [vmem:[%s253 + $0x3b8] sm:$0xff]
      %v643 = vld [vmem:[%s253 + $0x3c0] sm:$0xff]
      %v644 = vld [vmem:[%s253 + $0x3c8] sm:$0xff]
      %v645 = vld [vmem:[%s253 + $0x3d0] sm:$0xff]
      %v646 = vld [vmem:[%s253 + $0x3d8] sm:$0xff]
      %v647 = vld [vmem:[%s253 + $0x3e0] sm:$0xff]
      %v648 = vld [vmem:[%s253 + $0x3e8] sm:$0xff]
      %v649 = vld [vmem:[%s253 + $0x3f0] sm:$0xff]
      %v650 = vld [vmem:[%s253 + $0x3f8] sm:$0xff]
      %v651 = vld [vmem:[%s257] sm:$0x1]
      %v653 = vperm.slane %v651, 0
      %655 = vmatpush.msra.mxu0 %v538
      %656 = vmatpush.msra.mxu0 %v537
      %657 = vmatpush.msra.mxu0 %v536
      %658 = vmatpush.msra.mxu0 %v535
      %659 = vmatpush.msra.mxu0 %v534
      %660 = vmatpush.msra.mxu0 %v533
      %661 = vmatpush.msra.mxu0 %v532
      %662 = vmatpush.msra.mxu0 %v531
      %663 = vmatpush.msra.mxu0 %v530
      %664 = vmatpush.msra.mxu0 %v529
      %665 = vmatpush.msra.mxu0 %v528
      %666 = vmatpush.msra.mxu0 %v527
      %667 = vmatpush.msra.mxu0 %v526
      %668 = vmatpush.msra.mxu0 %v525
      %669 = vmatpush.msra.mxu0 %v524
      %670 = vmatpush.msra.mxu0 %v523
      %671 = vmatmul.f32.gmra.mxu0 %v267
      %v672 = vpop.f32.mrf.mxu0
      %v673 = vadd.f32 %v653, %v672
      %674 = vmatmul.f32.gmra.mxu0 %v275
      %v675 = vpop.f32.mrf.mxu0
      %v676 = vadd.f32 %v653, %v675
      %677 = vmatmul.f32.gmra.mxu0 %v283
      %v678 = vpop.f32.mrf.mxu0
      %v679 = vadd.f32 %v653, %v678
      %680 = vmatmul.f32.gmra.mxu0 %v291
      %v681 = vpop.f32.mrf.mxu0
      %v682 = vadd.f32 %v653, %v681
      %683 = vmatmul.f32.gmra.mxu0 %v299
      %v684 = vpop.f32.mrf.mxu0
      %v685 = vadd.f32 %v653, %v684
      %686 = vmatmul.f32.gmra.mxu0 %v307
      %v687 = vpop.f32.mrf.mxu0
      %v688 = vadd.f32 %v653, %v687
      %689 = vmatmul.f32.gmra.mxu0 %v315
      %v690 = vpop.f32.mrf.mxu0
      %v691 = vadd.f32 %v653, %v690
      %692 = vmatmul.f32.gmra.mxu0 %v323
      %v693 = vpop.f32.mrf.mxu0
      %v694 = vadd.f32 %v653, %v693
      %695 = vmatmul.f32.gmra.mxu0 %v331
      %v696 = vpop.f32.mrf.mxu0
      %v697 = vadd.f32 %v653, %v696
      %698 = vmatmul.f32.gmra.mxu0 %v339
      %v699 = vpop.f32.mrf.mxu0
      %v700 = vadd.f32 %v653, %v699
      %701 = vmatmul.f32.gmra.mxu0 %v347
      %v702 = vpop.f32.mrf.mxu0
      %v703 = vadd.f32 %v653, %v702
      %704 = vmatmul.f32.gmra.mxu0 %v355
      %v705 = vpop.f32.mrf.mxu0
      %v706 = vadd.f32 %v653, %v705
      %707 = vmatmul.f32.gmra.mxu0 %v363
      %v708 = vpop.f32.mrf.mxu0
      %v709 = vadd.f32 %v653, %v708
      %710 = vmatmul.f32.gmra.mxu0 %v371
      %v711 = vpop.f32.mrf.mxu0
      %v712 = vadd.f32 %v653, %v711
      %713 = vmatmul.f32.gmra.mxu0 %v379
      %v714 = vpop.f32.mrf.mxu0
      %v715 = vadd.f32 %v653, %v714
      %716 = vmatmul.f32.gmra.mxu0 %v387
      %v717 = vpop.f32.mrf.mxu0
      %v718 = vadd.f32 %v653, %v717
      %719 = vmatmul.f32.gmra.mxu0 %v395
      %v720 = vpop.f32.mrf.mxu0
      %v721 = vadd.f32 %v653, %v720
      %722 = vmatmul.f32.gmra.mxu0 %v403
      %v723 = vpop.f32.mrf.mxu0
      %v724 = vadd.f32 %v653, %v723
      %725 = vmatmul.f32.gmra.mxu0 %v411
      %v726 = vpop.f32.mrf.mxu0
      %v727 = vadd.f32 %v653, %v726
      %728 = vmatmul.f32.gmra.mxu0 %v419
      %v729 = vpop.f32.mrf.mxu0
      %v730 = vadd.f32 %v653, %v729
      %731 = vmatmul.f32.gmra.mxu0 %v427
      %v732 = vpop.f32.mrf.mxu0
      %v733 = vadd.f32 %v653, %v732
      %734 = vmatmul.f32.gmra.mxu0 %v435
      %v735 = vpop.f32.mrf.mxu0
      %v736 = vadd.f32 %v653, %v735
      %737 = vmatmul.f32.gmra.mxu0 %v443
      %v738 = vpop.f32.mrf.mxu0
      %v739 = vadd.f32 %v653, %v738
      %740 = vmatmul.f32.gmra.mxu0 %v451
      %v741 = vpop.f32.mrf.mxu0
      %v742 = vadd.f32 %v653, %v741
      %743 = vmatmul.f32.gmra.mxu0 %v459
      %v744 = vpop.f32.mrf.mxu0
      %v745 = vadd.f32 %v653, %v744
      %746 = vmatmul.f32.gmra.mxu0 %v467
      %v747 = vpop.f32.mrf.mxu0
      %v748 = vadd.f32 %v653, %v747
      %749 = vmatmul.f32.gmra.mxu0 %v475
      %v750 = vpop.f32.mrf.mxu0
      %v751 = vadd.f32 %v653, %v750
      %752 = vmatmul.f32.gmra.mxu0 %v483
      %v753 = vpop.f32.mrf.mxu0
      %v754 = vadd.f32 %v653, %v753
      %755 = vmatmul.f32.gmra.mxu0 %v491
      %v756 = vpop.f32.mrf.mxu0
      %v757 = vadd.f32 %v653, %v756
      %758 = vmatmul.f32.gmra.mxu0 %v499
      %v759 = vpop.f32.mrf.mxu0
      %v760 = vadd.f32 %v653, %v759
      %761 = vmatmul.f32.gmra.mxu0 %v507
      %v762 = vpop.f32.mrf.mxu0
      %v763 = vadd.f32 %v653, %v762
      %764 = vmatmul.f32.gmra.mxu0 %v515
      %v765 = vpop.f32.mrf.mxu0
      %v766 = vadd.f32 %v653, %v765
      %767 = vdwg.mxu0
      %768 = vmatpush.msra.mxu0 %v554
      %769 = vmatpush.msra.mxu0 %v553
      %770 = vmatpush.msra.mxu0 %v552
      %771 = vmatpush.msra.mxu0 %v551
      %772 = vmatpush.msra.mxu0 %v550
      %773 = vmatpush.msra.mxu0 %v549
      %774 = vmatpush.msra.mxu0 %v548
      %775 = vmatpush.msra.mxu0 %v547
      %776 = vmatpush.msra.mxu0 %v546
      %777 = vmatpush.msra.mxu0 %v545
      %778 = vmatpush.msra.mxu0 %v544
      %779 = vmatpush.msra.mxu0 %v543
      %780 = vmatpush.msra.mxu0 %v542
      %781 = vmatpush.msra.mxu0 %v541
      %782 = vmatpush.msra.mxu0 %v540
      %783 = vmatpush.msra.mxu0 %v539
      %784 = vmatmul.f32.gmra.mxu0 %v268
      %v785 = vpop.f32.mrf.mxu0
      %v786 = vadd.f32 %v673, %v785
      %787 = vmatmul.f32.gmra.mxu0 %v276
      %v788 = vpop.f32.mrf.mxu0
      %v789 = vadd.f32 %v676, %v788
      %790 = vmatmul.f32.gmra.mxu0 %v284
      %v791 = vpop.f32.mrf.mxu0
      %v792 = vadd.f32 %v679, %v791
      %793 = vmatmul.f32.gmra.mxu0 %v292
      %v794 = vpop.f32.mrf.mxu0
      %v795 = vadd.f32 %v682, %v794
      %796 = vmatmul.f32.gmra.mxu0 %v300
      %v797 = vpop.f32.mrf.mxu0
      %v798 = vadd.f32 %v685, %v797
      %799 = vmatmul.f32.gmra.mxu0 %v308
      %v800 = vpop.f32.mrf.mxu0
      %v801 = vadd.f32 %v688, %v800
      %802 = vmatmul.f32.gmra.mxu0 %v316
      %v803 = vpop.f32.mrf.mxu0
      %v804 = vadd.f32 %v691, %v803
      %805 = vmatmul.f32.gmra.mxu0 %v324
      %v806 = vpop.f32.mrf.mxu0
      %v807 = vadd.f32 %v694, %v806
      %808 = vmatmul.f32.gmra.mxu0 %v332
      %v809 = vpop.f32.mrf.mxu0
      %v810 = vadd.f32 %v697, %v809
      %811 = vmatmul.f32.gmra.mxu0 %v340
      %v812 = vpop.f32.mrf.mxu0
      %v813 = vadd.f32 %v700, %v812
      %814 = vmatmul.f32.gmra.mxu0 %v348
      %v815 = vpop.f32.mrf.mxu0
      %v816 = vadd.f32 %v703, %v815
      %817 = vmatmul.f32.gmra.mxu0 %v356
      %v818 = vpop.f32.mrf.mxu0
      %v819 = vadd.f32 %v706, %v818
      %820 = vmatmul.f32.gmra.mxu0 %v364
      %v821 = vpop.f32.mrf.mxu0
      %v822 = vadd.f32 %v709, %v821
      %823 = vmatmul.f32.gmra.mxu0 %v372
      %v824 = vpop.f32.mrf.mxu0
      %v825 = vadd.f32 %v712, %v824
      %826 = vmatmul.f32.gmra.mxu0 %v380
      %v827 = vpop.f32.mrf.mxu0
      %v828 = vadd.f32 %v715, %v827
      %829 = vmatmul.f32.gmra.mxu0 %v388
      %v830 = vpop.f32.mrf.mxu0
      %v831 = vadd.f32 %v718, %v830
      %832 = vmatmul.f32.gmra.mxu0 %v396
      %v833 = vpop.f32.mrf.mxu0
      %v834 = vadd.f32 %v721, %v833
      %835 = vmatmul.f32.gmra.mxu0 %v404
      %v836 = vpop.f32.mrf.mxu0
      %v837 = vadd.f32 %v724, %v836
      %838 = vmatmul.f32.gmra.mxu0 %v412
      %v839 = vpop.f32.mrf.mxu0
      %v840 = vadd.f32 %v727, %v839
      %841 = vmatmul.f32.gmra.mxu0 %v420
      %v842 = vpop.f32.mrf.mxu0
      %v843 = vadd.f32 %v730, %v842
      %844 = vmatmul.f32.gmra.mxu0 %v428
      %v845 = vpop.f32.mrf.mxu0
      %v846 = vadd.f32 %v733, %v845
      %847 = vmatmul.f32.gmra.mxu0 %v436
      %v848 = vpop.f32.mrf.mxu0
      %v849 = vadd.f32 %v736, %v848
      %850 = vmatmul.f32.gmra.mxu0 %v444
      %v851 = vpop.f32.mrf.mxu0
      %v852 = vadd.f32 %v739, %v851
      %853 = vmatmul.f32.gmra.mxu0 %v452
      %v854 = vpop.f32.mrf.mxu0
      %v855 = vadd.f32 %v742, %v854
      %856 = vmatmul.f32.gmra.mxu0 %v460
      %v857 = vpop.f32.mrf.mxu0
      %v858 = vadd.f32 %v745, %v857
      %859 = vmatmul.f32.gmra.mxu0 %v468
      %v860 = vpop.f32.mrf.mxu0
      %v861 = vadd.f32 %v748, %v860
      %862 = vmatmul.f32.gmra.mxu0 %v476
      %v863 = vpop.f32.mrf.mxu0
      %v864 = vadd.f32 %v751, %v863
      %865 = vmatmul.f32.gmra.mxu0 %v484
      %v866 = vpop.f32.mrf.mxu0
      %v867 = vadd.f32 %v754, %v866
      %868 = vmatmul.f32.gmra.mxu0 %v492
      %v869 = vpop.f32.mrf.mxu0
      %v870 = vadd.f32 %v757, %v869
      %871 = vmatmul.f32.gmra.mxu0 %v500
      %v872 = vpop.f32.mrf.mxu0
      %v873 = vadd.f32 %v760, %v872
      %874 = vmatmul.f32.gmra.mxu0 %v508
      %v875 = vpop.f32.mrf.mxu0
      %v876 = vadd.f32 %v763, %v875
      %877 = vmatmul.f32.gmra.mxu0 %v516
      %v878 = vpop.f32.mrf.mxu0
      %v879 = vadd.f32 %v766, %v878
      %880 = vdwg.mxu0
      %881 = vmatpush.msra.mxu0 %v570
      %882 = vmatpush.msra.mxu0 %v569
      %883 = vmatpush.msra.mxu0 %v568
      %884 = vmatpush.msra.mxu0 %v567
      %885 = vmatpush.msra.mxu0 %v566
      %886 = vmatpush.msra.mxu0 %v565
      %887 = vmatpush.msra.mxu0 %v564
      %888 = vmatpush.msra.mxu0 %v563
      %889 = vmatpush.msra.mxu0 %v562
      %890 = vmatpush.msra.mxu0 %v561
      %891 = vmatpush.msra.mxu0 %v560
      %892 = vmatpush.msra.mxu0 %v559
      %893 = vmatpush.msra.mxu0 %v558
      %894 = vmatpush.msra.mxu0 %v557
      %895 = vmatpush.msra.mxu0 %v556
      %896 = vmatpush.msra.mxu0 %v555
      %897 = vmatmul.f32.gmra.mxu0 %v269
      %v898 = vpop.f32.mrf.mxu0
      %v899 = vadd.f32 %v786, %v898
      %900 = vmatmul.f32.gmra.mxu0 %v277
      %v901 = vpop.f32.mrf.mxu0
      %v902 = vadd.f32 %v789, %v901
      %903 = vmatmul.f32.gmra.mxu0 %v285
      %v904 = vpop.f32.mrf.mxu0
      %v905 = vadd.f32 %v792, %v904
      %906 = vmatmul.f32.gmra.mxu0 %v293
      %v907 = vpop.f32.mrf.mxu0
      %v908 = vadd.f32 %v795, %v907
      %909 = vmatmul.f32.gmra.mxu0 %v301
      %v910 = vpop.f32.mrf.mxu0
      %v911 = vadd.f32 %v798, %v910
      %912 = vmatmul.f32.gmra.mxu0 %v309
      %v913 = vpop.f32.mrf.mxu0
      %v914 = vadd.f32 %v801, %v913
      %915 = vmatmul.f32.gmra.mxu0 %v317
      %v916 = vpop.f32.mrf.mxu0
      %v917 = vadd.f32 %v804, %v916
      %918 = vmatmul.f32.gmra.mxu0 %v325
      %v919 = vpop.f32.mrf.mxu0
      %v920 = vadd.f32 %v807, %v919
      %921 = vmatmul.f32.gmra.mxu0 %v333
      %v922 = vpop.f32.mrf.mxu0
      %v923 = vadd.f32 %v810, %v922
      %924 = vmatmul.f32.gmra.mxu0 %v341
      %v925 = vpop.f32.mrf.mxu0
      %v926 = vadd.f32 %v813, %v925
      %927 = vmatmul.f32.gmra.mxu0 %v349
      %v928 = vpop.f32.mrf.mxu0
      %v929 = vadd.f32 %v816, %v928
      %930 = vmatmul.f32.gmra.mxu0 %v357
      %v931 = vpop.f32.mrf.mxu0
      %v932 = vadd.f32 %v819, %v931
      %933 = vmatmul.f32.gmra.mxu0 %v365
      %v934 = vpop.f32.mrf.mxu0
      %v935 = vadd.f32 %v822, %v934
      %936 = vmatmul.f32.gmra.mxu0 %v373
      %v937 = vpop.f32.mrf.mxu0
      %v938 = vadd.f32 %v825, %v937
      %939 = vmatmul.f32.gmra.mxu0 %v381
      %v940 = vpop.f32.mrf.mxu0
      %v941 = vadd.f32 %v828, %v940
      %942 = vmatmul.f32.gmra.mxu0 %v389
      %v943 = vpop.f32.mrf.mxu0
      %v944 = vadd.f32 %v831, %v943
      %945 = vmatmul.f32.gmra.mxu0 %v397
      %v946 = vpop.f32.mrf.mxu0
      %v947 = vadd.f32 %v834, %v946
      %948 = vmatmul.f32.gmra.mxu0 %v405
      %v949 = vpop.f32.mrf.mxu0
      %v950 = vadd.f32 %v837, %v949
      %951 = vmatmul.f32.gmra.mxu0 %v413
      %v952 = vpop.f32.mrf.mxu0
      %v953 = vadd.f32 %v840, %v952
      %954 = vmatmul.f32.gmra.mxu0 %v421
      %v955 = vpop.f32.mrf.mxu0
      %v956 = vadd.f32 %v843, %v955
      %957 = vmatmul.f32.gmra.mxu0 %v429
      %v958 = vpop.f32.mrf.mxu0
      %v959 = vadd.f32 %v846, %v958
      %960 = vmatmul.f32.gmra.mxu0 %v437
      %v961 = vpop.f32.mrf.mxu0
      %v962 = vadd.f32 %v849, %v961
      %963 = vmatmul.f32.gmra.mxu0 %v445
      %v964 = vpop.f32.mrf.mxu0
      %v965 = vadd.f32 %v852, %v964
      %966 = vmatmul.f32.gmra.mxu0 %v453
      %v967 = vpop.f32.mrf.mxu0
      %v968 = vadd.f32 %v855, %v967
      %969 = vmatmul.f32.gmra.mxu0 %v461
      %v970 = vpop.f32.mrf.mxu0
      %v971 = vadd.f32 %v858, %v970
      %972 = vmatmul.f32.gmra.mxu0 %v469
      %v973 = vpop.f32.mrf.mxu0
      %v974 = vadd.f32 %v861, %v973
      %975 = vmatmul.f32.gmra.mxu0 %v477
      %v976 = vpop.f32.mrf.mxu0
      %v977 = vadd.f32 %v864, %v976
      %978 = vmatmul.f32.gmra.mxu0 %v485
      %v979 = vpop.f32.mrf.mxu0
      %v980 = vadd.f32 %v867, %v979
      %981 = vmatmul.f32.gmra.mxu0 %v493
      %v982 = vpop.f32.mrf.mxu0
      %v983 = vadd.f32 %v870, %v982
      %984 = vmatmul.f32.gmra.mxu0 %v501
      %v985 = vpop.f32.mrf.mxu0
      %v986 = vadd.f32 %v873, %v985
      %987 = vmatmul.f32.gmra.mxu0 %v509
      %v988 = vpop.f32.mrf.mxu0
      %v989 = vadd.f32 %v876, %v988
      %990 = vmatmul.f32.gmra.mxu0 %v517
      %v991 = vpop.f32.mrf.mxu0
      %v992 = vadd.f32 %v879, %v991
      %993 = vdwg.mxu0
      %994 = vmatpush.msra.mxu0 %v586
      %995 = vmatpush.msra.mxu0 %v585
      %996 = vmatpush.msra.mxu0 %v584
      %997 = vmatpush.msra.mxu0 %v583
      %998 = vmatpush.msra.mxu0 %v582
      %999 = vmatpush.msra.mxu0 %v581
      %1000 = vmatpush.msra.mxu0 %v580
      %1001 = vmatpush.msra.mxu0 %v579
      %1002 = vmatpush.msra.mxu0 %v578
      %1003 = vmatpush.msra.mxu0 %v577
      %1004 = vmatpush.msra.mxu0 %v576
      %1005 = vmatpush.msra.mxu0 %v575
      %1006 = vmatpush.msra.mxu0 %v574
      %1007 = vmatpush.msra.mxu0 %v573
      %1008 = vmatpush.msra.mxu0 %v572
      %1009 = vmatpush.msra.mxu0 %v571
      %1010 = vmatmul.f32.gmra.mxu0 %v270
      %v1011 = vpop.f32.mrf.mxu0
      %v1012 = vadd.f32 %v899, %v1011
      %1013 = vmatmul.f32.gmra.mxu0 %v278
      %v1014 = vpop.f32.mrf.mxu0
      %v1015 = vadd.f32 %v902, %v1014
      %1016 = vmatmul.f32.gmra.mxu0 %v286
      %v1017 = vpop.f32.mrf.mxu0
      %v1018 = vadd.f32 %v905, %v1017
      %1019 = vmatmul.f32.gmra.mxu0 %v294
      %v1020 = vpop.f32.mrf.mxu0
      %v1021 = vadd.f32 %v908, %v1020
      %1022 = vmatmul.f32.gmra.mxu0 %v302
      %v1023 = vpop.f32.mrf.mxu0
      %v1024 = vadd.f32 %v911, %v1023
      %1025 = vmatmul.f32.gmra.mxu0 %v310
      %v1026 = vpop.f32.mrf.mxu0
      %v1027 = vadd.f32 %v914, %v1026
      %1028 = vmatmul.f32.gmra.mxu0 %v318
      %v1029 = vpop.f32.mrf.mxu0
      %v1030 = vadd.f32 %v917, %v1029
      %1031 = vmatmul.f32.gmra.mxu0 %v326
      %v1032 = vpop.f32.mrf.mxu0
      %v1033 = vadd.f32 %v920, %v1032
      %1034 = vmatmul.f32.gmra.mxu0 %v334
      %v1035 = vpop.f32.mrf.mxu0
      %v1036 = vadd.f32 %v923, %v1035
      %1037 = vmatmul.f32.gmra.mxu0 %v342
      %v1038 = vpop.f32.mrf.mxu0
      %v1039 = vadd.f32 %v926, %v1038
      %1040 = vmatmul.f32.gmra.mxu0 %v350
      %v1041 = vpop.f32.mrf.mxu0
      %v1042 = vadd.f32 %v929, %v1041
      %1043 = vmatmul.f32.gmra.mxu0 %v358
      %v1044 = vpop.f32.mrf.mxu0
      %v1045 = vadd.f32 %v932, %v1044
      %1046 = vmatmul.f32.gmra.mxu0 %v366
      %v1047 = vpop.f32.mrf.mxu0
      %v1048 = vadd.f32 %v935, %v1047
      %1049 = vmatmul.f32.gmra.mxu0 %v374
      %v1050 = vpop.f32.mrf.mxu0
      %v1051 = vadd.f32 %v938, %v1050
      %1052 = vmatmul.f32.gmra.mxu0 %v382
      %v1053 = vpop.f32.mrf.mxu0
      %v1054 = vadd.f32 %v941, %v1053
      %1055 = vmatmul.f32.gmra.mxu0 %v390
      %v1056 = vpop.f32.mrf.mxu0
      %v1057 = vadd.f32 %v944, %v1056
      %1058 = vmatmul.f32.gmra.mxu0 %v398
      %v1059 = vpop.f32.mrf.mxu0
      %v1060 = vadd.f32 %v947, %v1059
      %1061 = vmatmul.f32.gmra.mxu0 %v406
      %v1062 = vpop.f32.mrf.mxu0
      %v1063 = vadd.f32 %v950, %v1062
      %1064 = vmatmul.f32.gmra.mxu0 %v414
      %v1065 = vpop.f32.mrf.mxu0
      %v1066 = vadd.f32 %v953, %v1065
      %1067 = vmatmul.f32.gmra.mxu0 %v422
      %v1068 = vpop.f32.mrf.mxu0
      %v1069 = vadd.f32 %v956, %v1068
      %1070 = vmatmul.f32.gmra.mxu0 %v430
      %v1071 = vpop.f32.mrf.mxu0
      %v1072 = vadd.f32 %v959, %v1071
      %1073 = vmatmul.f32.gmra.mxu0 %v438
      %v1074 = vpop.f32.mrf.mxu0
      %v1075 = vadd.f32 %v962, %v1074
      %1076 = vmatmul.f32.gmra.mxu0 %v446
      %v1077 = vpop.f32.mrf.mxu0
      %v1078 = vadd.f32 %v965, %v1077
      %1079 = vmatmul.f32.gmra.mxu0 %v454
      %v1080 = vpop.f32.mrf.mxu0
      %v1081 = vadd.f32 %v968, %v1080
      %1082 = vmatmul.f32.gmra.mxu0 %v462
      %v1083 = vpop.f32.mrf.mxu0
      %v1084 = vadd.f32 %v971, %v1083
      %1085 = vmatmul.f32.gmra.mxu0 %v470
      %v1086 = vpop.f32.mrf.mxu0
      %v1087 = vadd.f32 %v974, %v1086
      %1088 = vmatmul.f32.gmra.mxu0 %v478
      %v1089 = vpop.f32.mrf.mxu0
      %v1090 = vadd.f32 %v977, %v1089
      %1091 = vmatmul.f32.gmra.mxu0 %v486
      %v1092 = vpop.f32.mrf.mxu0
      %v1093 = vadd.f32 %v980, %v1092
      %1094 = vmatmul.f32.gmra.mxu0 %v494
      %v1095 = vpop.f32.mrf.mxu0
      %v1096 = vadd.f32 %v983, %v1095
      %1097 = vmatmul.f32.gmra.mxu0 %v502
      %v1098 = vpop.f32.mrf.mxu0
      %v1099 = vadd.f32 %v986, %v1098
      %1100 = vmatmul.f32.gmra.mxu0 %v510
      %v1101 = vpop.f32.mrf.mxu0
      %v1102 = vadd.f32 %v989, %v1101
      %1103 = vmatmul.f32.gmra.mxu0 %v518
      %v1104 = vpop.f32.mrf.mxu0
      %v1105 = vadd.f32 %v992, %v1104
      %1106 = vdwg.mxu0
      %1107 = vmatpush.msra.mxu0 %v602
      %1108 = vmatpush.msra.mxu0 %v601
      %1109 = vmatpush.msra.mxu0 %v600
      %1110 = vmatpush.msra.mxu0 %v599
      %1111 = vmatpush.msra.mxu0 %v598
      %1112 = vmatpush.msra.mxu0 %v597
      %1113 = vmatpush.msra.mxu0 %v596
      %1114 = vmatpush.msra.mxu0 %v595
      %1115 = vmatpush.msra.mxu0 %v594
      %1116 = vmatpush.msra.mxu0 %v593
      %1117 = vmatpush.msra.mxu0 %v592
      %1118 = vmatpush.msra.mxu0 %v591
      %1119 = vmatpush.msra.mxu0 %v590
      %1120 = vmatpush.msra.mxu0 %v589
      %1121 = vmatpush.msra.mxu0 %v588
      %1122 = vmatpush.msra.mxu0 %v587
      %1123 = vmatmul.f32.gmra.mxu0 %v271
      %v1124 = vpop.f32.mrf.mxu0
      %v1125 = vadd.f32 %v1012, %v1124
      %1126 = vmatmul.f32.gmra.mxu0 %v279
      %v1127 = vpop.f32.mrf.mxu0
      %v1128 = vadd.f32 %v1015, %v1127
      %1129 = vmatmul.f32.gmra.mxu0 %v287
      %v1130 = vpop.f32.mrf.mxu0
      %v1131 = vadd.f32 %v1018, %v1130
      %1132 = vmatmul.f32.gmra.mxu0 %v295
      %v1133 = vpop.f32.mrf.mxu0
      %v1134 = vadd.f32 %v1021, %v1133
      %1135 = vmatmul.f32.gmra.mxu0 %v303
      %v1136 = vpop.f32.mrf.mxu0
      %v1137 = vadd.f32 %v1024, %v1136
      %1138 = vmatmul.f32.gmra.mxu0 %v311
      %v1139 = vpop.f32.mrf.mxu0
      %v1140 = vadd.f32 %v1027, %v1139
      %1141 = vmatmul.f32.gmra.mxu0 %v319
      %v1142 = vpop.f32.mrf.mxu0
      %v1143 = vadd.f32 %v1030, %v1142
      %1144 = vmatmul.f32.gmra.mxu0 %v327
      %v1145 = vpop.f32.mrf.mxu0
      %v1146 = vadd.f32 %v1033, %v1145
      %1147 = vmatmul.f32.gmra.mxu0 %v335
      %v1148 = vpop.f32.mrf.mxu0
      %v1149 = vadd.f32 %v1036, %v1148
      %1150 = vmatmul.f32.gmra.mxu0 %v343
      %v1151 = vpop.f32.mrf.mxu0
      %v1152 = vadd.f32 %v1039, %v1151
      %1153 = vmatmul.f32.gmra.mxu0 %v351
      %v1154 = vpop.f32.mrf.mxu0
      %v1155 = vadd.f32 %v1042, %v1154
      %1156 = vmatmul.f32.gmra.mxu0 %v359
      %v1157 = vpop.f32.mrf.mxu0
      %v1158 = vadd.f32 %v1045, %v1157
      %1159 = vmatmul.f32.gmra.mxu0 %v367
      %v1160 = vpop.f32.mrf.mxu0
      %v1161 = vadd.f32 %v1048, %v1160
      %1162 = vmatmul.f32.gmra.mxu0 %v375
      %v1163 = vpop.f32.mrf.mxu0
      %v1164 = vadd.f32 %v1051, %v1163
      %1165 = vmatmul.f32.gmra.mxu0 %v383
      %v1166 = vpop.f32.mrf.mxu0
      %v1167 = vadd.f32 %v1054, %v1166
      %1168 = vmatmul.f32.gmra.mxu0 %v391
      %v1169 = vpop.f32.mrf.mxu0
      %v1170 = vadd.f32 %v1057, %v1169
      %1171 = vmatmul.f32.gmra.mxu0 %v399
      %v1172 = vpop.f32.mrf.mxu0
      %v1173 = vadd.f32 %v1060, %v1172
      %1174 = vmatmul.f32.gmra.mxu0 %v407
      %v1175 = vpop.f32.mrf.mxu0
      %v1176 = vadd.f32 %v1063, %v1175
      %1177 = vmatmul.f32.gmra.mxu0 %v415
      %v1178 = vpop.f32.mrf.mxu0
      %v1179 = vadd.f32 %v1066, %v1178
      %1180 = vmatmul.f32.gmra.mxu0 %v423
      %v1181 = vpop.f32.mrf.mxu0
      %v1182 = vadd.f32 %v1069, %v1181
      %1183 = vmatmul.f32.gmra.mxu0 %v431
      %v1184 = vpop.f32.mrf.mxu0
      %v1185 = vadd.f32 %v1072, %v1184
      %1186 = vmatmul.f32.gmra.mxu0 %v439
      %v1187 = vpop.f32.mrf.mxu0
      %v1188 = vadd.f32 %v1075, %v1187
      %1189 = vmatmul.f32.gmra.mxu0 %v447
      %v1190 = vpop.f32.mrf.mxu0
      %v1191 = vadd.f32 %v1078, %v1190
      %1192 = vmatmul.f32.gmra.mxu0 %v455
      %v1193 = vpop.f32.mrf.mxu0
      %v1194 = vadd.f32 %v1081, %v1193
      %1195 = vmatmul.f32.gmra.mxu0 %v463
      %v1196 = vpop.f32.mrf.mxu0
      %v1197 = vadd.f32 %v1084, %v1196
      %1198 = vmatmul.f32.gmra.mxu0 %v471
      %v1199 = vpop.f32.mrf.mxu0
      %v1200 = vadd.f32 %v1087, %v1199
      %1201 = vmatmul.f32.gmra.mxu0 %v479
      %v1202 = vpop.f32.mrf.mxu0
      %v1203 = vadd.f32 %v1090, %v1202
      %1204 = vmatmul.f32.gmra.mxu0 %v487
      %v1205 = vpop.f32.mrf.mxu0
      %v1206 = vadd.f32 %v1093, %v1205
      %1207 = vmatmul.f32.gmra.mxu0 %v495
      %v1208 = vpop.f32.mrf.mxu0
      %v1209 = vadd.f32 %v1096, %v1208
      %1210 = vmatmul.f32.gmra.mxu0 %v503
      %v1211 = vpop.f32.mrf.mxu0
      %v1212 = vadd.f32 %v1099, %v1211
      %1213 = vmatmul.f32.gmra.mxu0 %v511
      %v1214 = vpop.f32.mrf.mxu0
      %v1215 = vadd.f32 %v1102, %v1214
      %1216 = vmatmul.f32.gmra.mxu0 %v519
      %v1217 = vpop.f32.mrf.mxu0
      %v1218 = vadd.f32 %v1105, %v1217
      %1219 = vdwg.mxu0
      %1220 = vmatpush.msra.mxu0 %v618
      %1221 = vmatpush.msra.mxu0 %v617
      %1222 = vmatpush.msra.mxu0 %v616
      %1223 = vmatpush.msra.mxu0 %v615
      %1224 = vmatpush.msra.mxu0 %v614
      %1225 = vmatpush.msra.mxu0 %v613
      %1226 = vmatpush.msra.mxu0 %v612
      %1227 = vmatpush.msra.mxu0 %v611
      %1228 = vmatpush.msra.mxu0 %v610
      %1229 = vmatpush.msra.mxu0 %v609
      %1230 = vmatpush.msra.mxu0 %v608
      %1231 = vmatpush.msra.mxu0 %v607
      %1232 = vmatpush.msra.mxu0 %v606
      %1233 = vmatpush.msra.mxu0 %v605
      %1234 = vmatpush.msra.mxu0 %v604
      %1235 = vmatpush.msra.mxu0 %v603
      %1236 = vmatmul.f32.gmra.mxu0 %v272
      %v1237 = vpop.f32.mrf.mxu0
      %v1238 = vadd.f32 %v1125, %v1237
      %1239 = vmatmul.f32.gmra.mxu0 %v280
      %v1240 = vpop.f32.mrf.mxu0
      %v1241 = vadd.f32 %v1128, %v1240
      %1242 = vmatmul.f32.gmra.mxu0 %v288
      %v1243 = vpop.f32.mrf.mxu0
      %v1244 = vadd.f32 %v1131, %v1243
      %1245 = vmatmul.f32.gmra.mxu0 %v296
      %v1246 = vpop.f32.mrf.mxu0
      %v1247 = vadd.f32 %v1134, %v1246
      %1248 = vmatmul.f32.gmra.mxu0 %v304
      %v1249 = vpop.f32.mrf.mxu0
      %v1250 = vadd.f32 %v1137, %v1249
      %1251 = vmatmul.f32.gmra.mxu0 %v312
      %v1252 = vpop.f32.mrf.mxu0
      %v1253 = vadd.f32 %v1140, %v1252
      %1254 = vmatmul.f32.gmra.mxu0 %v320
      %v1255 = vpop.f32.mrf.mxu0
      %v1256 = vadd.f32 %v1143, %v1255
      %1257 = vmatmul.f32.gmra.mxu0 %v328
      %v1258 = vpop.f32.mrf.mxu0
      %v1259 = vadd.f32 %v1146, %v1258
      %1260 = vmatmul.f32.gmra.mxu0 %v336
      %v1261 = vpop.f32.mrf.mxu0
      %v1262 = vadd.f32 %v1149, %v1261
      %1263 = vmatmul.f32.gmra.mxu0 %v344
      %v1264 = vpop.f32.mrf.mxu0
      %v1265 = vadd.f32 %v1152, %v1264
      %1266 = vmatmul.f32.gmra.mxu0 %v352
      %v1267 = vpop.f32.mrf.mxu0
      %v1268 = vadd.f32 %v1155, %v1267
      %1269 = vmatmul.f32.gmra.mxu0 %v360
      %v1270 = vpop.f32.mrf.mxu0
      %v1271 = vadd.f32 %v1158, %v1270
      %1272 = vmatmul.f32.gmra.mxu0 %v368
      %v1273 = vpop.f32.mrf.mxu0
      %v1274 = vadd.f32 %v1161, %v1273
      %1275 = vmatmul.f32.gmra.mxu0 %v376
      %v1276 = vpop.f32.mrf.mxu0
      %v1277 = vadd.f32 %v1164, %v1276
      %1278 = vmatmul.f32.gmra.mxu0 %v384
      %v1279 = vpop.f32.mrf.mxu0
      %v1280 = vadd.f32 %v1167, %v1279
      %1281 = vmatmul.f32.gmra.mxu0 %v392
      %v1282 = vpop.f32.mrf.mxu0
      %v1283 = vadd.f32 %v1170, %v1282
      %1284 = vmatmul.f32.gmra.mxu0 %v400
      %v1285 = vpop.f32.mrf.mxu0
      %v1286 = vadd.f32 %v1173, %v1285
      %1287 = vmatmul.f32.gmra.mxu0 %v408
      %v1288 = vpop.f32.mrf.mxu0
      %v1289 = vadd.f32 %v1176, %v1288
      %1290 = vmatmul.f32.gmra.mxu0 %v416
      %v1291 = vpop.f32.mrf.mxu0
      %v1292 = vadd.f32 %v1179, %v1291
      %1293 = vmatmul.f32.gmra.mxu0 %v424
      %v1294 = vpop.f32.mrf.mxu0
      %v1295 = vadd.f32 %v1182, %v1294
      %1296 = vmatmul.f32.gmra.mxu0 %v432
      %v1297 = vpop.f32.mrf.mxu0
      %v1298 = vadd.f32 %v1185, %v1297
      %1299 = vmatmul.f32.gmra.mxu0 %v440
      %v1300 = vpop.f32.mrf.mxu0
      %v1301 = vadd.f32 %v1188, %v1300
      %1302 = vmatmul.f32.gmra.mxu0 %v448
      %v1303 = vpop.f32.mrf.mxu0
      %v1304 = vadd.f32 %v1191, %v1303
      %1305 = vmatmul.f32.gmra.mxu0 %v456
      %v1306 = vpop.f32.mrf.mxu0
      %v1307 = vadd.f32 %v1194, %v1306
      %1308 = vmatmul.f32.gmra.mxu0 %v464
      %v1309 = vpop.f32.mrf.mxu0
      %v1310 = vadd.f32 %v1197, %v1309
      %1311 = vmatmul.f32.gmra.mxu0 %v472
      %v1312 = vpop.f32.mrf.mxu0
      %v1313 = vadd.f32 %v1200, %v1312
      %1314 = vmatmul.f32.gmra.mxu0 %v480
      %v1315 = vpop.f32.mrf.mxu0
      %v1316 = vadd.f32 %v1203, %v1315
      %1317 = vmatmul.f32.gmra.mxu0 %v488
      %v1318 = vpop.f32.mrf.mxu0
      %v1319 = vadd.f32 %v1206, %v1318
      %1320 = vmatmul.f32.gmra.mxu0 %v496
      %v1321 = vpop.f32.mrf.mxu0
      %v1322 = vadd.f32 %v1209, %v1321
      %1323 = vmatmul.f32.gmra.mxu0 %v504
      %v1324 = vpop.f32.mrf.mxu0
      %v1325 = vadd.f32 %v1212, %v1324
      %1326 = vmatmul.f32.gmra.mxu0 %v512
      %v1327 = vpop.f32.mrf.mxu0
      %v1328 = vadd.f32 %v1215, %v1327
      %1329 = vmatmul.f32.gmra.mxu0 %v520
      %v1330 = vpop.f32.mrf.mxu0
      %v1331 = vadd.f32 %v1218, %v1330
      %1332 = vdwg.mxu0
      %1333 = vmatpush.msra.mxu0 %v634
      %1334 = vmatpush.msra.mxu0 %v633
      %1335 = vmatpush.msra.mxu0 %v632
      %1336 = vmatpush.msra.mxu0 %v631
      %1337 = vmatpush.msra.mxu0 %v630
      %1338 = vmatpush.msra.mxu0 %v629
      %1339 = vmatpush.msra.mxu0 %v628
      %1340 = vmatpush.msra.mxu0 %v627
      %1341 = vmatpush.msra.mxu0 %v626
      %1342 = vmatpush.msra.mxu0 %v625
      %1343 = vmatpush.msra.mxu0 %v624
      %1344 = vmatpush.msra.mxu0 %v623
      %1345 = vmatpush.msra.mxu0 %v622
      %1346 = vmatpush.msra.mxu0 %v621
      %1347 = vmatpush.msra.mxu0 %v620
      %1348 = vmatpush.msra.mxu0 %v619
      %1349 = vmatmul.f32.gmra.mxu0 %v273
      %v1350 = vpop.f32.mrf.mxu0
      %v1351 = vadd.f32 %v1238, %v1350
      %1352 = vmatmul.f32.gmra.mxu0 %v281
      %v1353 = vpop.f32.mrf.mxu0
      %v1354 = vadd.f32 %v1241, %v1353
      %1355 = vmatmul.f32.gmra.mxu0 %v289
      %v1356 = vpop.f32.mrf.mxu0
      %v1357 = vadd.f32 %v1244, %v1356
      %1358 = vmatmul.f32.gmra.mxu0 %v297
      %v1359 = vpop.f32.mrf.mxu0
      %v1360 = vadd.f32 %v1247, %v1359
      %1361 = vmatmul.f32.gmra.mxu0 %v305
      %v1362 = vpop.f32.mrf.mxu0
      %v1363 = vadd.f32 %v1250, %v1362
      %1364 = vmatmul.f32.gmra.mxu0 %v313
      %v1365 = vpop.f32.mrf.mxu0
      %v1366 = vadd.f32 %v1253, %v1365
      %1367 = vmatmul.f32.gmra.mxu0 %v321
      %v1368 = vpop.f32.mrf.mxu0
      %v1369 = vadd.f32 %v1256, %v1368
      %1370 = vmatmul.f32.gmra.mxu0 %v329
      %v1371 = vpop.f32.mrf.mxu0
      %v1372 = vadd.f32 %v1259, %v1371
      %1373 = vmatmul.f32.gmra.mxu0 %v337
      %v1374 = vpop.f32.mrf.mxu0
      %v1375 = vadd.f32 %v1262, %v1374
      %1376 = vmatmul.f32.gmra.mxu0 %v345
      %v1377 = vpop.f32.mrf.mxu0
      %v1378 = vadd.f32 %v1265, %v1377
      %1379 = vmatmul.f32.gmra.mxu0 %v353
      %v1380 = vpop.f32.mrf.mxu0
      %v1381 = vadd.f32 %v1268, %v1380
      %1382 = vmatmul.f32.gmra.mxu0 %v361
      %v1383 = vpop.f32.mrf.mxu0
      %v1384 = vadd.f32 %v1271, %v1383
      %1385 = vmatmul.f32.gmra.mxu0 %v369
      %v1386 = vpop.f32.mrf.mxu0
      %v1387 = vadd.f32 %v1274, %v1386
      %1388 = vmatmul.f32.gmra.mxu0 %v377
      %v1389 = vpop.f32.mrf.mxu0
      %v1390 = vadd.f32 %v1277, %v1389
      %1391 = vmatmul.f32.gmra.mxu0 %v385
      %v1392 = vpop.f32.mrf.mxu0
      %v1393 = vadd.f32 %v1280, %v1392
      %1394 = vmatmul.f32.gmra.mxu0 %v393
      %v1395 = vpop.f32.mrf.mxu0
      %v1396 = vadd.f32 %v1283, %v1395
      %1397 = vmatmul.f32.gmra.mxu0 %v401
      %v1398 = vpop.f32.mrf.mxu0
      %v1399 = vadd.f32 %v1286, %v1398
      %1400 = vmatmul.f32.gmra.mxu0 %v409
      %v1401 = vpop.f32.mrf.mxu0
      %v1402 = vadd.f32 %v1289, %v1401
      %1403 = vmatmul.f32.gmra.mxu0 %v417
      %v1404 = vpop.f32.mrf.mxu0
      %v1405 = vadd.f32 %v1292, %v1404
      %1406 = vmatmul.f32.gmra.mxu0 %v425
      %v1407 = vpop.f32.mrf.mxu0
      %v1408 = vadd.f32 %v1295, %v1407
      %1409 = vmatmul.f32.gmra.mxu0 %v433
      %v1410 = vpop.f32.mrf.mxu0
      %v1411 = vadd.f32 %v1298, %v1410
      %1412 = vmatmul.f32.gmra.mxu0 %v441
      %v1413 = vpop.f32.mrf.mxu0
      %v1414 = vadd.f32 %v1301, %v1413
      %1415 = vmatmul.f32.gmra.mxu0 %v449
      %v1416 = vpop.f32.mrf.mxu0
      %v1417 = vadd.f32 %v1304, %v1416
      %1418 = vmatmul.f32.gmra.mxu0 %v457
      %v1419 = vpop.f32.mrf.mxu0
      %v1420 = vadd.f32 %v1307, %v1419
      %1421 = vmatmul.f32.gmra.mxu0 %v465
      %v1422 = vpop.f32.mrf.mxu0
      %v1423 = vadd.f32 %v1310, %v1422
      %1424 = vmatmul.f32.gmra.mxu0 %v473
      %v1425 = vpop.f32.mrf.mxu0
      %v1426 = vadd.f32 %v1313, %v1425
      %1427 = vmatmul.f32.gmra.mxu0 %v481
      %v1428 = vpop.f32.mrf.mxu0
      %v1429 = vadd.f32 %v1316, %v1428
      %1430 = vmatmul.f32.gmra.mxu0 %v489
      %v1431 = vpop.f32.mrf.mxu0
      %v1432 = vadd.f32 %v1319, %v1431
      %1433 = vmatmul.f32.gmra.mxu0 %v497
      %v1434 = vpop.f32.mrf.mxu0
      %v1435 = vadd.f32 %v1322, %v1434
      %1436 = vmatmul.f32.gmra.mxu0 %v505
      %v1437 = vpop.f32.mrf.mxu0
      %v1438 = vadd.f32 %v1325, %v1437
      %1439 = vmatmul.f32.gmra.mxu0 %v513
      %v1440 = vpop.f32.mrf.mxu0
      %v1441 = vadd.f32 %v1328, %v1440
      %1442 = vmatmul.f32.gmra.mxu0 %v521
      %v1443 = vpop.f32.mrf.mxu0
      %v1444 = vadd.f32 %v1331, %v1443
      %1445 = vdwg.mxu0
      %1446 = vmatpush.msra.mxu0 %v650
      %1447 = vmatpush.msra.mxu0 %v649
      %1448 = vmatpush.msra.mxu0 %v648
      %1449 = vmatpush.msra.mxu0 %v647
      %1450 = vmatpush.msra.mxu0 %v646
      %1451 = vmatpush.msra.mxu0 %v645
      %1452 = vmatpush.msra.mxu0 %v644
      %1453 = vmatpush.msra.mxu0 %v643
      %1454 = vmatpush.msra.mxu0 %v642
      %1455 = vmatpush.msra.mxu0 %v641
      %1456 = vmatpush.msra.mxu0 %v640
      %1457 = vmatpush.msra.mxu0 %v639
      %1458 = vmatpush.msra.mxu0 %v638
      %1459 = vmatpush.msra.mxu0 %v637
      %1460 = vmatpush.msra.mxu0 %v636
      %1461 = vmatpush.msra.mxu0 %v635
      %1462 = vmatmul.f32.gmra.mxu0 %v274
      %v1463 = vpop.f32.mrf.mxu0
      %v1464 = vadd.f32 %v1351, %v1463
      %1465 = vmatmul.f32.gmra.mxu0 %v282
      %v1466 = vpop.f32.mrf.mxu0
      %v1467 = vadd.f32 %v1354, %v1466
      %1468 = vmatmul.f32.gmra.mxu0 %v290
      %v1469 = vpop.f32.mrf.mxu0
      %v1470 = vadd.f32 %v1357, %v1469
      %1471 = vmatmul.f32.gmra.mxu0 %v298
      %v1472 = vpop.f32.mrf.mxu0
      %v1473 = vadd.f32 %v1360, %v1472
      %1474 = vmatmul.f32.gmra.mxu0 %v306
      %v1475 = vpop.f32.mrf.mxu0
      %v1476 = vadd.f32 %v1363, %v1475
      %1477 = vmatmul.f32.gmra.mxu0 %v314
      %v1478 = vpop.f32.mrf.mxu0
      %v1479 = vadd.f32 %v1366, %v1478
      %1480 = vmatmul.f32.gmra.mxu0 %v322
      %v1481 = vpop.f32.mrf.mxu0
      %v1482 = vadd.f32 %v1369, %v1481
      %1483 = vmatmul.f32.gmra.mxu0 %v330
      %v1484 = vpop.f32.mrf.mxu0
      %v1485 = vadd.f32 %v1372, %v1484
      %1486 = vmatmul.f32.gmra.mxu0 %v338
      %v1487 = vpop.f32.mrf.mxu0
      %v1488 = vadd.f32 %v1375, %v1487
      %1489 = vmatmul.f32.gmra.mxu0 %v346
      %v1490 = vpop.f32.mrf.mxu0
      %v1491 = vadd.f32 %v1378, %v1490
      %1492 = vmatmul.f32.gmra.mxu0 %v354
      %v1493 = vpop.f32.mrf.mxu0
      %v1494 = vadd.f32 %v1381, %v1493
      %1495 = vmatmul.f32.gmra.mxu0 %v362
      %v1496 = vpop.f32.mrf.mxu0
      %v1497 = vadd.f32 %v1384, %v1496
      %1498 = vmatmul.f32.gmra.mxu0 %v370
      %v1499 = vpop.f32.mrf.mxu0
      %v1500 = vadd.f32 %v1387, %v1499
      %1501 = vmatmul.f32.gmra.mxu0 %v378
      %v1502 = vpop.f32.mrf.mxu0
      %v1503 = vadd.f32 %v1390, %v1502
      %1504 = vmatmul.f32.gmra.mxu0 %v386
      %v1505 = vpop.f32.mrf.mxu0
      %v1506 = vadd.f32 %v1393, %v1505
      %1507 = vmatmul.f32.gmra.mxu0 %v394
      %v1508 = vpop.f32.mrf.mxu0
      %v1509 = vadd.f32 %v1396, %v1508
      %1510 = vmatmul.f32.gmra.mxu0 %v402
      %v1511 = vpop.f32.mrf.mxu0
      %v1512 = vadd.f32 %v1399, %v1511
      %1513 = vmatmul.f32.gmra.mxu0 %v410
      %v1514 = vpop.f32.mrf.mxu0
      %v1515 = vadd.f32 %v1402, %v1514
      %1516 = vmatmul.f32.gmra.mxu0 %v418
      %v1517 = vpop.f32.mrf.mxu0
      %v1518 = vadd.f32 %v1405, %v1517
      %1519 = vmatmul.f32.gmra.mxu0 %v426
      %v1520 = vpop.f32.mrf.mxu0
      %v1521 = vadd.f32 %v1408, %v1520
      %1522 = vmatmul.f32.gmra.mxu0 %v434
      %v1523 = vpop.f32.mrf.mxu0
      %v1524 = vadd.f32 %v1411, %v1523
      %1525 = vmatmul.f32.gmra.mxu0 %v442
      %v1526 = vpop.f32.mrf.mxu0
      %v1527 = vadd.f32 %v1414, %v1526
      %1528 = vmatmul.f32.gmra.mxu0 %v450
      %v1529 = vpop.f32.mrf.mxu0
      %v1530 = vadd.f32 %v1417, %v1529
      %1531 = vmatmul.f32.gmra.mxu0 %v458
      %v1532 = vpop.f32.mrf.mxu0
      %v1533 = vadd.f32 %v1420, %v1532
      %1534 = vmatmul.f32.gmra.mxu0 %v466
      %v1535 = vpop.f32.mrf.mxu0
      %v1536 = vadd.f32 %v1423, %v1535
      %1537 = vmatmul.f32.gmra.mxu0 %v474
      %v1538 = vpop.f32.mrf.mxu0
      %v1539 = vadd.f32 %v1426, %v1538
      %1540 = vmatmul.f32.gmra.mxu0 %v482
      %v1541 = vpop.f32.mrf.mxu0
      %v1542 = vadd.f32 %v1429, %v1541
      %1543 = vmatmul.f32.gmra.mxu0 %v490
      %v1544 = vpop.f32.mrf.mxu0
      %v1545 = vadd.f32 %v1432, %v1544
      %1546 = vmatmul.f32.gmra.mxu0 %v498
      %v1547 = vpop.f32.mrf.mxu0
      %v1548 = vadd.f32 %v1435, %v1547
      %1549 = vmatmul.f32.gmra.mxu0 %v506
      %v1550 = vpop.f32.mrf.mxu0
      %v1551 = vadd.f32 %v1438, %v1550
      %1552 = vmatmul.f32.gmra.mxu0 %v514
      %v1553 = vpop.f32.mrf.mxu0
      %v1554 = vadd.f32 %v1441, %v1553
      %1555 = vmatmul.f32.gmra.mxu0 %v522
      %v1556 = vpop.f32.mrf.mxu0
      %v1557 = vadd.f32 %v1444, %v1556
      %1558 = vdwg.mxu0
      %v1559 = vmax.f32 %v1464, 0.0
      %v1560 = vmax.f32 %v1467, 0.0
      %v1561 = vmax.f32 %v1470, 0.0
      %v1562 = vmax.f32 %v1473, 0.0
      %v1563 = vmax.f32 %v1476, 0.0
      %v1564 = vmax.f32 %v1479, 0.0
      %v1565 = vmax.f32 %v1482, 0.0
      %v1566 = vmax.f32 %v1485, 0.0
      %v1567 = vmax.f32 %v1488, 0.0
      %v1568 = vmax.f32 %v1491, 0.0
      %v1569 = vmax.f32 %v1494, 0.0
      %v1570 = vmax.f32 %v1497, 0.0
      %v1571 = vmax.f32 %v1500, 0.0
      %v1572 = vmax.f32 %v1503, 0.0
      %v1573 = vmax.f32 %v1506, 0.0
      %v1574 = vmax.f32 %v1509, 0.0
      %v1575 = vmax.f32 %v1512, 0.0
      %v1576 = vmax.f32 %v1515, 0.0
      %v1577 = vmax.f32 %v1518, 0.0
      %v1578 = vmax.f32 %v1521, 0.0
      %v1579 = vmax.f32 %v1524, 0.0
      %v1580 = vmax.f32 %v1527, 0.0
      %v1581 = vmax.f32 %v1530, 0.0
      %v1582 = vmax.f32 %v1533, 0.0
      %v1583 = vmax.f32 %v1536, 0.0
      %v1584 = vmax.f32 %v1539, 0.0
      %v1585 = vmax.f32 %v1542, 0.0
      %v1586 = vmax.f32 %v1545, 0.0
      %v1587 = vmax.f32 %v1548, 0.0
      %v1588 = vmax.f32 %v1551, 0.0
      %v1589 = vmax.f32 %v1554, 0.0
      %v1590 = vmax.f32 %v1557, 0.0
      %1591 = vst [vmem:[%s265] sm:$0xff] %v1559
      %1592 = vst [vmem:[%s265 + $0x8] sm:$0xff] %v1560
      %1593 = vst [vmem:[%s265 + $0x10] sm:$0xff] %v1561
      %1594 = vst [vmem:[%s265 + $0x18] sm:$0xff] %v1562
      %1595 = vst [vmem:[%s265 + $0x20] sm:$0xff] %v1563
      %1596 = vst [vmem:[%s265 + $0x28] sm:$0xff] %v1564
      %1597 = vst [vmem:[%s265 + $0x30] sm:$0xff] %v1565
      %1598 = vst [vmem:[%s265 + $0x38] sm:$0xff] %v1566
      %1599 = vst [vmem:[%s265 + $0x40] sm:$0xff] %v1567
      %1600 = vst [vmem:[%s265 + $0x48] sm:$0xff] %v1568
      %1601 = vst [vmem:[%s265 + $0x50] sm:$0xff] %v1569
      %1602 = vst [vmem:[%s265 + $0x58] sm:$0xff] %v1570
      %1603 = vst [vmem:[%s265 + $0x60] sm:$0xff] %v1571
      %1604 = vst [vmem:[%s265 + $0x68] sm:$0xff] %v1572
      %1605 = vst [vmem:[%s265 + $0x70] sm:$0xff] %v1573
      %1606 = vst [vmem:[%s265 + $0x78] sm:$0xff] %v1574
      %1607 = vst [vmem:[%s265 + $0x80] sm:$0xff] %v1575
      %1608 = vst [vmem:[%s265 + $0x88] sm:$0xff] %v1576
      %1609 = vst [vmem:[%s265 + $0x90] sm:$0xff] %v1577
      %1610 = vst [vmem:[%s265 + $0x98] sm:$0xff] %v1578
      %1611 = vst [vmem:[%s265 + $0xa0] sm:$0xff] %v1579
      %1612 = vst [vmem:[%s265 + $0xa8] sm:$0xff] %v1580
      %1613 = vst [vmem:[%s265 + $0xb0] sm:$0xff] %v1581
      %1614 = vst [vmem:[%s265 + $0xb8] sm:$0xff] %v1582
      %1615 = vst [vmem:[%s265 + $0xc0] sm:$0xff] %v1583
      %1616 = vst [vmem:[%s265 + $0xc8] sm:$0xff] %v1584
      %1617 = vst [vmem:[%s265 + $0xd0] sm:$0xff] %v1585
      %1618 = vst [vmem:[%s265 + $0xd8] sm:$0xff] %v1586
      %1619 = vst [vmem:[%s265 + $0xe0] sm:$0xff] %v1587
      %1620 = vst [vmem:[%s265 + $0xe8] sm:$0xff] %v1588
      %1621 = vst [vmem:[%s265 + $0xf0] sm:$0xff] %v1589
      %1622 = vst [vmem:[%s265 + $0xf8] sm:$0xff] %v1590
      %s1623 = smul.u32 32, %s19
      %p1624 = scmp.lt.s32.totalorder %s1623, 63
      %s1625 = scalar_select %p1624, %s1623, 63
      %p1626 = scmp.lt.s32.totalorder %s20, 0
      %s1627 = scalar_select %p1626, %s20, 0
      %s1628 = sadd.s32 %s1627, %s1625
      %s1629 = smul.addr %s1628, 8
      %s1630 = scalar_lea.vmem %s3, %s1629
      // Predicated region
      $region33: #{cnn_forward.8} parent=31 // pred_check
        %p1631 = pneg %p135
      $region34: #{cnn_forward.8} parent=31 // pred_check_branch
        %1633 = sbr.rel (%p1631) target = $region36
      $region35: #{cnn_forward.8} parent=31 // pred_region
        %s1634 = smul.u32 32, %s19
      $region36: #{cnn_forward.8} parent=31 // pred_fallthru
        _
    $region32: #{cnn_forward.8} parent=5 // pred_fallthru
      _
    %p1635 = scmp.le.s32.totalorder 2, %s9
    // Predicated region
    $region37: #{cnn_forward.8} parent=5 // pred_check
      %p1636 = pneg %p1635
    $region38: #{cnn_forward.8} parent=5 // pred_check_branch
      %1638 = sbr.rel (%p1636) target = $region40
    $region39: #{cnn_forward.8} parent=5 // pred_region
      %s1639 = ssub.s32 %s9, 2
      // Predicated region
      $region41: #{cnn_forward.8} parent=39 // pred_check
        %p1640 = pneg %p141
      $region42: #{cnn_forward.8} parent=39 // pred_check_branch
        %1642 = sbr.rel (%p1640) target = $region44
      $region43: #{cnn_forward.8} parent=39 // pred_region
        %s1643 = smul.u32 32, %s22
        %p1644 = scmp.lt.s32.totalorder %s1643, 63
        %s1645 = scalar_select %p1644, %s1643, 63
        %p1646 = scmp.lt.s32.totalorder %s23, 0
        %s1647 = scalar_select %p1646, %s23, 0
        %s1648 = sadd.s32 %s1647, %s1645
        %s1649 = smul.addr %s1648, 8
        %s1650 = scalar_lea.vmem %s3, %s1649
      $region44: #{cnn_forward.8} parent=39 // pred_fallthru
        _
    $region40: #{cnn_forward.8} parent=5 // pred_fallthru
      _
  $region6: #{cnn_forward.8} parent=0 // loop_footer
    %s13 = sadd.s32 1, %s9
  $region7: #{cnn_forward.8} parent=0 // loop_footer_branch
    %8 = sbr.rel target = $region3
  $region8: #{cnn_forward.8} parent=0 // loop_exit
    _

// kernel: cnn_forward.9
$region0: #{cnn_forward.9}
  #allocation0 [shape = 'u32[]', space=smem, size = 0x4, offset = 0x4, fixed_abs, tag = 'smem constant byte address 0x4 - core index']
  #allocation1 [shape = 'u32[72,128]{1,0:T(1,128)}', space=vmem, size = 0x9000, scoped, tag = 'internal scratch']
  %s0 = inlined_call_operand.vmem [shape: f32[14,896], index: 0, kind: input, shape index: {}]
  %s1 = inlined_call_operand.vmem [shape: f32[14,896], index: 1, kind: input, shape index: {}]
  %s2 = inlined_call_operand.vmem [shape: f32[14,896], index: 2, kind: input, shape index: {}]
  %s3 = inlined_call_operand.vmem [shape: f32[14,896], index: 3, kind: input, shape index: {}]
  %s4 = inlined_call_operand.vmem [shape: f32[14,896], index: 4, kind: output, shape index: {}]
  %s5 = sld [smem:[#allocation0]]
  $region26: #{cnn_forward.9} parent=0
    _
  %s7 = ssub.s32 1, %s5
  %s8 = scalar_select 0, %s7, %s5
  // Predicated region
  $region2: #{cnn_forward.9} parent=0 // pred_check
    _
  $region3: #{cnn_forward.9} parent=0 // pred_check_branch
    %10 = sbr.rel (0) target = $region5
  $region4: #{cnn_forward.9} parent=0 // pred_region
    _
  $region5: #{cnn_forward.9} parent=0 // pred_fallthru
    _
  // Predicated region
  $region6: #{cnn_forward.9} parent=0 // pred_check
    _
  $region7: #{cnn_forward.9} parent=0 // pred_check_branch
    %12 = sbr.rel (0) target = $region9
  $region8: #{cnn_forward.9} parent=0 // pred_region
    _
  $region9: #{cnn_forward.9} parent=0 // pred_fallthru
    _
  // Predicated region
  $region10: #{cnn_forward.9} parent=0 // pred_check
    _
  $region11: #{cnn_forward.9} parent=0 // pred_check_branch
    %14 = sbr.rel (0) target = $region13
  $region12: #{cnn_forward.9} parent=0 // pred_region
    _
  $region13: #{cnn_forward.9} parent=0 // pred_fallthru
    _
  // Predicated region
  $region14: #{cnn_forward.9} parent=0 // pred_check
    _
  $region15: #{cnn_forward.9} parent=0 // pred_check_branch
    %16 = sbr.rel (0) target = $region17
  $region16: #{cnn_forward.9} parent=0 // pred_region
    _
  $region17: #{cnn_forward.9} parent=0 // pred_fallthru
    _
  %v17 = vld [vmem:[%s0] sm:$0xff]
  %v18 = vld [vmem:[%s0 + $0x8] sm:$0xff]
  %v19 = vld [vmem:[%s0 + $0x10] sm:$0xff]
  %v20 = vld [vmem:[%s0 + $0x18] sm:$0xff]
  %v21 = vld [vmem:[%s0 + $0x20] sm:$0xff]
  %v22 = vld [vmem:[%s0 + $0x28] sm:$0xff]
  %v23 = vld [vmem:[%s0 + $0x30] sm:$0xff]
  %v24 = vld [vmem:[%s0 + $0x38] sm:$0x3f]
  %v25 = vld [vmem:[%s0 + $0x40] sm:$0x3f]
  %v26 = vld [vmem:[%s0 + $0x48] sm:$0x3f]
  %v27 = vld [vmem:[%s0 + $0x50] sm:$0x3f]
  %v28 = vld [vmem:[%s0 + $0x58] sm:$0x3f]
  %v29 = vld [vmem:[%s0 + $0x60] sm:$0x3f]
  %v30 = vld [vmem:[%s0 + $0x68] sm:$0x3f]
  %v31 = vld [vmem:[%s1] sm:$0xff]
  %v32 = vld [vmem:[%s1 + $0x8] sm:$0xff]
  %v33 = vld [vmem:[%s1 + $0x10] sm:$0xff]
  %v34 = vld [vmem:[%s1 + $0x18] sm:$0xff]
  %v35 = vld [vmem:[%s1 + $0x20] sm:$0xff]
  %v36 = vld [vmem:[%s1 + $0x28] sm:$0xff]
  %v37 = vld [vmem:[%s1 + $0x30] sm:$0xff]
  %v38 = vld [vmem:[%s1 + $0x38] sm:$0x3f]
  %v39 = vld [vmem:[%s1 + $0x40] sm:$0x3f]
  %v40 = vld [vmem:[%s1 + $0x48] sm:$0x3f]
  %v41 = vld [vmem:[%s1 + $0x50] sm:$0x3f]
  %v42 = vld [vmem:[%s1 + $0x58] sm:$0x3f]
  %v43 = vld [vmem:[%s1 + $0x60] sm:$0x3f]
  %v44 = vld [vmem:[%s1 + $0x68] sm:$0x3f]
  %v45 = vmax.f32 %v17, %v31
  %v46 = vmax.f32 %v18, %v32
  %v47 = vmax.f32 %v19, %v33
  %v48 = vmax.f32 %v20, %v34
  %v49 = vmax.f32 %v21, %v35
  %v50 = vmax.f32 %v22, %v36
  %v51 = vmax.f32 %v23, %v37
  %v52 = vmax.f32 %v24, %v38
  %v53 = vmax.f32 %v25, %v39
  %v54 = vmax.f32 %v26, %v40
  %v55 = vmax.f32 %v27, %v41
  %v56 = vmax.f32 %v28, %v42
  %v57 = vmax.f32 %v29, %v43
  %v58 = vmax.f32 %v30, %v44
  %v59 = vld [vmem:[%s2] sm:$0xff]
  %v60 = vld [vmem:[%s2 + $0x8] sm:$0xff]
  %v61 = vld [vmem:[%s2 + $0x10] sm:$0xff]
  %v62 = vld [vmem:[%s2 + $0x18] sm:$0xff]
  %v63 = vld [vmem:[%s2 + $0x20] sm:$0xff]
  %v64 = vld [vmem:[%s2 + $0x28] sm:$0xff]
  %v65 = vld [vmem:[%s2 + $0x30] sm:$0xff]
  %v66 = vld [vmem:[%s2 + $0x38] sm:$0x3f]
  %v67 = vld [vmem:[%s2 + $0x40] sm:$0x3f]
  %v68 = vld [vmem:[%s2 + $0x48] sm:$0x3f]
  %v69 = vld [vmem:[%s2 + $0x50] sm:$0x3f]
  %v70 = vld [vmem:[%s2 + $0x58] sm:$0x3f]
  %v71 = vld [vmem:[%s2 + $0x60] sm:$0x3f]
  %v72 = vld [vmem:[%s2 + $0x68] sm:$0x3f]
  %v73 = vld [vmem:[%s3] sm:$0xff]
  %v74 = vld [vmem:[%s3 + $0x8] sm:$0xff]
  %v75 = vld [vmem:[%s3 + $0x10] sm:$0xff]
  %v76 = vld [vmem:[%s3 + $0x18] sm:$0xff]
  %v77 = vld [vmem:[%s3 + $0x20] sm:$0xff]
  %v78 = vld [vmem:[%s3 + $0x28] sm:$0xff]
  %v79 = vld [vmem:[%s3 + $0x30] sm:$0xff]
  %v80 = vld [vmem:[%s3 + $0x38] sm:$0x3f]
  %v81 = vld [vmem:[%s3 + $0x40] sm:$0x3f]
  %v82 = vld [vmem:[%s3 + $0x48] sm:$0x3f]
  %v83 = vld [vmem:[%s3 + $0x50] sm:$0x3f]
  %v84 = vld [vmem:[%s3 + $0x58] sm:$0x3f]
  %v85 = vld [vmem:[%s3 + $0x60] sm:$0x3f]
  %v86 = vld [vmem:[%s3 + $0x68] sm:$0x3f]
  %v87 = vmax.f32 %v59, %v73
  %v88 = vmax.f32 %v60, %v74
  %v89 = vmax.f32 %v61, %v75
  %v90 = vmax.f32 %v62, %v76
  %v91 = vmax.f32 %v63, %v77
  %v92 = vmax.f32 %v64, %v78
  %v93 = vmax.f32 %v65, %v79
  %v94 = vmax.f32 %v66, %v80
  %v95 = vmax.f32 %v67, %v81
  %v96 = vmax.f32 %v68, %v82
  %v97 = vmax.f32 %v69, %v83
  %v98 = vmax.f32 %v70, %v84
  %v99 = vmax.f32 %v71, %v85
  %v100 = vmax.f32 %v72, %v86
  %v101 = vmax.f32 %v45, %v87
  %v102 = vmax.f32 %v46, %v88
  %v103 = vmax.f32 %v47, %v89
  %v104 = vmax.f32 %v48, %v90
  %v105 = vmax.f32 %v49, %v91
  %v106 = vmax.f32 %v50, %v92
  %v107 = vmax.f32 %v51, %v93
  %v108 = vmax.f32 %v52, %v94
  %v109 = vmax.f32 %v53, %v95
  %v110 = vmax.f32 %v54, %v96
  %v111 = vmax.f32 %v55, %v97
  %v112 = vmax.f32 %v56, %v98
  %v113 = vmax.f32 %v57, %v99
  %v114 = vmax.f32 %v58, %v100
  %115 = vst [vmem:[%s4] sm:$0xff] %v101
  %116 = vst [vmem:[%s4 + $0x8] sm:$0xff] %v102
  %117 = vst [vmem:[%s4 + $0x10] sm:$0xff] %v103
  %118 = vst [vmem:[%s4 + $0x18] sm:$0xff] %v104
  %119 = vst [vmem:[%s4 + $0x20] sm:$0xff] %v105
  %120 = vst [vmem:[%s4 + $0x28] sm:$0xff] %v106
  %121 = vst [vmem:[%s4 + $0x30] sm:$0xff] %v107
  %122 = vst [vmem:[%s4 + $0x38] sm:$0x3f] %v108
  %123 = vst [vmem:[%s4 + $0x40] sm:$0x3f] %v109
  %124 = vst [vmem:[%s4 + $0x48] sm:$0x3f] %v110
  %125 = vst [vmem:[%s4 + $0x50] sm:$0x3f] %v111
  %126 = vst [vmem:[%s4 + $0x58] sm:$0x3f] %v112
  %127 = vst [vmem:[%s4 + $0x60] sm:$0x3f] %v113
  %128 = vst [vmem:[%s4 + $0x68] sm:$0x3f] %v114
  // Predicated region
  $region18: #{cnn_forward.9} parent=0 // pred_check
    _
  $region19: #{cnn_forward.9} parent=0 // pred_check_branch
    %130 = sbr.rel (0) target = $region21
  $region20: #{cnn_forward.9} parent=0 // pred_region
    _
  $region21: #{cnn_forward.9} parent=0 // pred_fallthru
    _
  // Predicated region
  $region22: #{cnn_forward.9} parent=0 // pred_check
    _
  $region23: #{cnn_forward.9} parent=0 // pred_check_branch
    %132 = sbr.rel (0) target = $region25
  $region24: #{cnn_forward.9} parent=0 // pred_region
    _
  $region25: #{cnn_forward.9} parent=0 // pred_fallthru
    _

// kernel: cnn_forward.10
$region0: #{cnn_forward.10}
  #allocation0 [shape = 'u32[]', space=smem, size = 0x4, offset = 0x4, fixed_abs, tag = 'smem constant byte address 0x4 - core index']
  #allocation1 [shape = 'u32[72,128]{1,0:T(1,128)}', space=vmem, size = 0x9000, scoped, tag = 'internal scratch']
  #allocation2 [shape = 'f32[8,640]{1,0:T(8,128)}', space=vmem, size = 0x5000, scoped, tag = 'scratch operand']
  %s0 = inlined_call_operand.vmem [shape: f32[8,6272], index: 0, kind: input, shape index: {}]
  %s1 = inlined_call_operand.hbm [shape: f32[6272,3200], index: 1, kind: input, shape index: {}]
  %s2 = inlined_call_operand.vmem [shape: f32[1,3200], index: 2, kind: input, shape index: {}]
  %s3 = inlined_call_operand.vmem [shape: f32[8,3200], index: 3, kind: output, shape index: {}]
  %s4 = sld [smem:[#allocation0]]
  $region57: #{cnn_forward.10} parent=0
    _
  %s6 = ssub.s32 1, %s4
  %s7 = scalar_select 0, %s6, %s4
  $region1: #{cnn_forward.10} parent=0
    #allocation3 [shape = 'u8[4587520]{0}', space=vmem, size = 0x460000, scoped, tag = 'input window, operand 1']
    #allocation4 [shape = 's32[2]{0}', space=sflag, size = 0x8, scoped, tag = 'scoped memory for cnn_forward.10']
    %8 = vsyncpa [#allocation4], 0
    %s9 = scalar_lea.sflag [#allocation4], 1
    %10 = vsyncpa %s9, 0
    loop: start=0, step=1, limit=37
    $region2: #{cnn_forward.10} parent=1 // loop_pre_header
      _
    $region3: #{cnn_forward.10} parent=1 // loop_header
      %s12 = sphi 0, %s16
      %p13 = scmp.ge.s32.totalorder %s12, 37
      %s19 = sphi 0, %s38
      %s20 = sphi 0, %s34
      %s21 = sphi 0, %s30
      %s22 = sphi 0, %s19
      %s23 = sphi 0, %s20
      %s24 = sphi 0, %s21
      %s25 = sphi 0, %s22
      %s26 = sphi 0, %s23
      %s27 = sphi 0, %s24
      %s43 = sphi 0, %s45
      %s46 = sphi 0, %s43
      %s47 = sphi 0, %s46
      %s63 = sphi 0, %s47
      %s71 = sphi 0, %s73
      %s74 = sphi 0, %s71
      %s75 = sphi 0, %s74
      %s91 = sphi 0, %s75
      %s97 = sphi 0, %s99
      %s100 = sphi 0, %s97
      %s101 = sphi 0, %s100
      %s117 = sphi 0, %s101
      %s125 = sphi 0, %s127
      %s128 = sphi 0, %s125
      %s129 = sphi 0, %s128
      %s145 = sphi 0, %s129
    $region4: #{cnn_forward.10} parent=1 // loop_header_branch
      %15 = sbr.rel (%p13) target = $region8
    $region5: #{cnn_forward.10} parent=1 // loop_body
      %s17 = ssub.s32 %s12, 1
      %s18 = ssub.s32 %s12, 2
      %s28 = sadd.s32 1, %s21
      %p29 = scmp.ge.s32.totalorder %s28, 7
      %s30 = scalar_select %p29, 0, %s28
      %s31 = sadd.s32 1, %s20
      %s32 = scalar_select %p29, %s31, %s20
      %p33 = scmp.ge.s32.totalorder %s32, 5
      %s34 = scalar_select %p33, 0, %s32
      %s35 = sadd.s32 1, %s19
      %s36 = scalar_select %p33, %s35, %s19
      %p37 = scmp.ge.s32.totalorder %s36, 1
      %s38 = scalar_select %p37, 0, %s36
      %s39 = ssub.s32 %s19, %s38
      %s40 = ssub.s32 %s21, %s30
      %s41 = sor.u32 %s39, %s40
      %p42 = scmp.eq.s32.totalorder %s41, 0
      %s44 = sadd.s32 %s43, 1
      %s45 = scalar_select %p42, %s43, %s44
      %p48 = pneg %p42
      %p49 = scmp.eq.s32.totalorder %s12, 34
      %p50 = por %p48, %p49
      %p51 = scmp.ne.s32.totalorder %s43, %s46
      %p52 = scmp.eq.s32.totalorder %s12, 0
      %p53 = por %p51, %p52
      %p54 = scmp.ne.s32.totalorder %s43, %s46
      %p55 = scmp.eq.s32.totalorder %s17, 34
      %p56 = por %p54, %p55
      %p57 = scmp.ne.s32.totalorder %s46, %s47
      %p58 = scmp.eq.s32.totalorder %s17, 0
      %p59 = por %p57, %p58
      %p60 = scmp.ne.s32.totalorder %s46, %s47
      %p61 = scmp.eq.s32.totalorder %s18, 34
      %p62 = por %p60, %p61
      %p64 = scmp.ne.s32.totalorder %s47, %s63
      %p65 = scmp.eq.s32.totalorder %s18, 0
      %p66 = por %p64, %p65
      %s67 = ssub.s32 %s21, %s30
      %s68 = ssub.s32 %s20, %s34
      %s69 = sor.u32 %s67, %s68
      %p70 = scmp.eq.s32.totalorder %s69, 0
      %s72 = sadd.s32 %s71, 1
      %s73 = scalar_select %p70, %s71, %s72
      %p76 = pneg %p70
      %p77 = scmp.eq.s32.totalorder %s12, 34
      %p78 = por %p76, %p77
      %p79 = scmp.ne.s32.totalorder %s71, %s74
      %p80 = scmp.eq.s32.totalorder %s12, 0
      %p81 = por %p79, %p80
      %p82 = scmp.ne.s32.totalorder %s71, %s74
      %p83 = scmp.eq.s32.totalorder %s17, 34
      %p84 = por %p82, %p83
      %p85 = scmp.ne.s32.totalorder %s74, %s75
      %p86 = scmp.eq.s32.totalorder %s17, 0
      %p87 = por %p85, %p86
      %p88 = scmp.ne.s32.totalorder %s74, %s75
      %p89 = scmp.eq.s32.totalorder %s18, 34
      %p90 = por %p88, %p89
      %p92 = scmp.ne.s32.totalorder %s75, %s91
      %p93 = scmp.eq.s32.totalorder %s18, 0
      %p94 = por %p92, %p93
      %s95 = ssub.s32 %s20, %s34
      %p96 = scmp.eq.s32.totalorder %s95, 0
      %s98 = sadd.s32 %s97, 1
      %s99 = scalar_select %p96, %s97, %s98
      %p102 = pneg %p96
      %p103 = scmp.eq.s32.totalorder %s12, 34
      %p104 = por %p102, %p103
      %p105 = scmp.ne.s32.totalorder %s97, %s100
      %p106 = scmp.eq.s32.totalorder %s12, 0
      %p107 = por %p105, %p106
      %p108 = scmp.ne.s32.totalorder %s97, %s100
      %p109 = scmp.eq.s32.totalorder %s17, 34
      %p110 = por %p108, %p109
      %p111 = scmp.ne.s32.totalorder %s100, %s101
      %p112 = scmp.eq.s32.totalorder %s17, 0
      %p113 = por %p111, %p112
      %p114 = scmp.ne.s32.totalorder %s100, %s101
      %p115 = scmp.eq.s32.totalorder %s18, 34
      %p116 = por %p114, %p115
      %p118 = scmp.ne.s32.totalorder %s101, %s117
      %p119 = scmp.eq.s32.totalorder %s18, 0
      %p120 = por %p118, %p119
      %s121 = ssub.s32 %s19, %s38
      %s122 = ssub.s32 %s20, %s34
      %s123 = sor.u32 %s121, %s122
      %p124 = scmp.eq.s32.totalorder %s123, 0
      %s126 = sadd.s32 %s125, 1
      %s127 = scalar_select %p124, %s125, %s126
      %p130 = pneg %p124
      %p131 = scmp.eq.s32.totalorder %s12, 34
      %p132 = por %p130, %p131
      %p133 = scmp.ne.s32.totalorder %s125, %s128
      %p134 = scmp.eq.s32.totalorder %s12, 0
      %p135 = por %p133, %p134
      %p136 = scmp.ne.s32.totalorder %s125, %s128
      %p137 = scmp.eq.s32.totalorder %s17, 34
      %p138 = por %p136, %p137
      %p139 = scmp.ne.s32.totalorder %s128, %s129
      %p140 = scmp.eq.s32.totalorder %s17, 0
      %p141 = por %p139, %p140
      %p142 = scmp.ne.s32.totalorder %s128, %s129
      %p143 = scmp.eq.s32.totalorder %s18, 34
      %p144 = por %p142, %p143
      %p146 = scmp.ne.s32.totalorder %s129, %s145
      %p147 = scmp.eq.s32.totalorder %s18, 0
      %p148 = por %p146, %p147
      %p149 = scmp.le.s32.totalorder 1, %s12
      %p150 = scmp.lt.s32.totalorder %s12, 36
      %p151 = pnand %p149, %p150
      %p152 = pneg %p151
      // Predicated region
      $region9: #{cnn_forward.10} parent=5 // pred_check
        _
      $region10: #{cnn_forward.10} parent=5 // pred_check_branch
        %154 = sbr.rel (%p151) target = $region12
      $region11: #{cnn_forward.10} parent=5 // pred_region
        %s155 = ssub.s32 %s12, 1
      $region12: #{cnn_forward.10} parent=5 // pred_fallthru
        _
      %p156 = scmp.lt.s32.totalorder %s12, 35
      // Predicated region
      $region13: #{cnn_forward.10} parent=5 // pred_check
        %p157 = pneg %p156
      $region14: #{cnn_forward.10} parent=5 // pred_check_branch
        %159 = sbr.rel (%p157) target = $region16
      $region15: #{cnn_forward.10} parent=5 // pred_region
        // Predicated region
        $region17: #{cnn_forward.10} parent=15 // pred_check
          %p160 = pneg %p53
        $region18: #{cnn_forward.10} parent=15 // pred_check_branch
          %162 = sbr.rel (%p160) target = $region20
        $region19: #{cnn_forward.10} parent=15 // pred_region
          %s163 = smul.u32 7, %s21
          %p164 = scmp.lt.s32.totalorder %s19, 0
          %s165 = scalar_select %p164, %s19, 0
          %p166 = scmp.lt.s32.totalorder %s163, 48
          %s167 = scalar_select %p166, %s163, 48
          %s168 = smul.addr %s165, 49
          %s169 = sadd.s32 %s167, %s168
          %s170 = smul.addr %s169, 8
          %s171 = scalar_lea.vmem %s0, %s170
          %s172 = smul.u32 7, %s21
        $region20: #{cnn_forward.10} parent=15 // pred_fallthru
          _
        // Predicated region
        $region21: #{cnn_forward.10} parent=15 // pred_check
          %p173 = pneg %p81
        $region22: #{cnn_forward.10} parent=15 // pred_check_branch
          %175 = sbr.rel (%p173) target = $region24
        $region23: #{cnn_forward.10} parent=15 // pred_region
          %s176 = sand.u32 %s71, 1
          %s177 = scalar_lea.sflag [#allocation4], %s176
          %s178 = sand.u32 %s71, 1
          %s179 = smul.addr %s178, 4480
          %s180 = scalar_lea.vmem [#allocation3], %s179
          %s181 = smul.u32 112, %s21
          %s182 = smul.u32 5, %s20
          %184 = vsyncadd %s177, 0
          %s185 = smul.addr %s181, 25
          %s186 = sadd.s32 %s182, %s185
          %s187 = smul.addr %s186, 8
          %s188 = scalar_lea.hbm %s1, %s187
          %s189 = sshll.u32 %s188, 4
          %s190 = int_to_ptr.hbm [resolvable:$true] %s189
          %s191 = sshll.u32 %s180, 4
          %s192 = int_to_ptr.vmem [resolvable:$true] %s191
          %197 = dma.hbm_to_vmem [thread:$0]  %s190, 71680, %s192, %s177, 3200, 640, 40
        $region24: #{cnn_forward.10} parent=15 // pred_fallthru
          _
        // Predicated region
        $region25: #{cnn_forward.10} parent=15 // pred_check
          %p198 = pneg %p107
        $region26: #{cnn_forward.10} parent=15 // pred_check_branch
          %200 = sbr.rel (%p198) target = $region28
        $region27: #{cnn_forward.10} parent=15 // pred_region
          %s201 = smul.u32 5, %s20
          %p202 = scmp.lt.s32.totalorder %s201, 24
          %s203 = scalar_select %p202, %s201, 24
          %s204 = scalar_lea.vmem %s2, %s203
          %s205 = smul.u32 5, %s20
        $region28: #{cnn_forward.10} parent=15 // pred_fallthru
          _
      $region16: #{cnn_forward.10} parent=5 // pred_fallthru
        _
      %p206 = scmp.le.s32.totalorder 1, %s12
      %p207 = scmp.lt.s32.totalorder %s12, 36
      %p208 = pnand %p206, %p207
      %p209 = pneg %p208
      // Predicated region
      $region29: #{cnn_forward.10} parent=5 // pred_check
        _
      $region30: #{cnn_forward.10} parent=5 // pred_check_branch
        %211 = sbr.rel (%p208) target = $region32
      $region31: #{cnn_forward.10} parent=5 // pred_region
        %s212 = ssub.s32 %s12, 1
        %s213 = sand.u32 %s74, 1
        %s214 = scalar_lea.sflag [#allocation4], %s213
        %s215 = sand.u32 %s74, 1
        %s216 = smul.addr %s215, 4480
        %s217 = scalar_lea.vmem [#allocation3], %s216
        // Predicated region
        $region33: #{cnn_forward.10} parent=31 // pred_check
          %p218 = pneg %p87
        $region34: #{cnn_forward.10} parent=31 // pred_check_branch
          %220 = sbr.rel (%p218) target = $region36
        $region35: #{cnn_forward.10} parent=31 // pred_region
          %222 = dma.done %s214, 71680
        $region36: #{cnn_forward.10} parent=31 // pred_fallthru
          _
        %s223 = smul.u32 7, %s24
        %p224 = scmp.lt.s32.totalorder %s22, 0
        %s225 = scalar_select %p224, %s22, 0
        %p226 = scmp.lt.s32.totalorder %s223, 48
        %s227 = scalar_select %p226, %s223, 48
        %s228 = smul.addr %s225, 49
        %s229 = sadd.s32 %s227, %s228
        %s230 = smul.addr %s229, 8
        %s231 = scalar_lea.vmem %s0, %s230
        %p232 = pneg %p59
        %p233 = pneg %p56
        %s234 = sand.u32 %s74, 1
        %s235 = scalar_lea.sflag [#allocation4], %s234
        %s236 = sand.u32 %s74, 1
        %s237 = smul.addr %s236, 4480
        %s238 = scalar_lea.vmem [#allocation3], %s237
        %p239 = pneg %p87
        %p240 = pneg %p84
        %s241 = smul.u32 5, %s23
        %p242 = scmp.lt.s32.totalorder %s241, 24
        %s243 = scalar_select %p242, %s241, 24
        %s244 = scalar_lea.vmem %s2, %s243
        %p245 = pneg %p113
        %p246 = pneg %p110
        %p247 = pneg %p141
        %p248 = pneg %p138
        %s249 = smul.u32 5, %s23
        %p250 = scmp.lt.s32.totalorder %s22, 0
        %s251 = scalar_select %p250, %s22, 0
        %p252 = scmp.lt.s32.totalorder %s249, 24
        %s253 = scalar_select %p252, %s249, 24
        %s254 = smul.addr %s251, 25
        %s255 = sadd.s32 %s253, %s254
        %s256 = smul.addr %s255, 8
        %s257 = scalar_lea.vmem %s3, %s256
        %s258 = smul.u32 7, %s24
        %p259 = scmp.lt.s32.totalorder %s22, 0
        %s260 = scalar_select %p259, %s22, 0
        %p261 = scmp.lt.s32.totalorder %s258, 48
        %s262 = scalar_select %p261, %s258, 48
        %s263 = smul.addr %s260, 49
        %s264 = sadd.s32 %s262, %s263
        %s265 = smul.addr %s264, 8
        %s266 = scalar_lea.vmem %s0, %s265
        %s267 = smul.u32 7, %s24
        %s268 = smul.u32 112, %s24
        %s269 = smul.u32 5, %s23
        %s270 = smul.u32 5, %s23
        %p271 = scmp.lt.s32.totalorder %s270, 24
        %s272 = scalar_select %p271, %s270, 24
        %s273 = scalar_lea.vmem %s2, %s272
        %s274 = smul.u32 5, %s23
        %s275 = smul.u32 5, %s23
        %p276 = scmp.lt.s32.totalorder %s22, 0
        %s277 = scalar_select %p276, %s22, 0
        %p278 = scmp.lt.s32.totalorder %s275, 24
        %s279 = scalar_select %p278, %s275, 24
        %s280 = smul.addr %s277, 25
        %s281 = sadd.s32 %s279, %s280
        %s282 = smul.addr %s281, 8
        %s283 = scalar_lea.vmem %s3, %s282
        %s284 = smul.u32 5, %s23
        %p285 = scmp.eq.s32.totalorder %s24, 0
        // Predicated region
        $region37: #{cnn_forward.10} parent=31 // pred_check
          %p286 = pneg %p285
        $region38: #{cnn_forward.10} parent=31 // pred_check_branch
          %288 = sbr.rel (%p286) target = $region40
        $region39: #{cnn_forward.10} parent=31 // pred_region
          %289 = vst [vmem:[#allocation2] sm:$0xff] 0.0
          %290 = vst [vmem:[#allocation2 + $0x8] sm:$0xff] 0.0
          %291 = vst [vmem:[#allocation2 + $0x10] sm:$0xff] 0.0
          %292 = vst [vmem:[#allocation2 + $0x18] sm:$0xff] 0.0
          %293 = vst [vmem:[#allocation2 + $0x20] sm:$0xff] 0.0
        $region40: #{cnn_forward.10} parent=31 // pred_fallthru
          _
        %v294 = vld [vmem:[#allocation2] sm:$0xff]
        %v295 = vld [vmem:[#allocation2 + $0x8] sm:$0xff]
        %v296 = vld [vmem:[#allocation2 + $0x10] sm:$0xff]
        %v297 = vld [vmem:[#allocation2 + $0x18] sm:$0xff]
        %v298 = vld [vmem:[#allocation2 + $0x20] sm:$0xff]
        %v299 = vld [vmem:[%s266] sm:$0xff]
        %v300 = vld [vmem:[%s266 + $0x8] sm:$0xff]
        %v301 = vld [vmem:[%s266 + $0x10] sm:$0xff]
        %v302 = vld [vmem:[%s266 + $0x18] sm:$0xff]
        %v303 = vld [vmem:[%s266 + $0x20] sm:$0xff]
        %v304 = vld [vmem:[%s266 + $0x28] sm:$0xff]
        %v305 = vld [vmem:[%s266 + $0x30] sm:$0xff]
        %v306 = vld [vmem:[%s217] sm:$0xff]
        %v307 = vld [vmem:[%s217 + $0x8] sm:$0xff]
        %v308 = vld [vmem:[%s217 + $0x10] sm:$0xff]
        %v309 = vld [vmem:[%s217 + $0x18] sm:$0xff]
        %v310 = vld [vmem:[%s217 + $0x20] sm:$0xff]
        %v311 = vld [vmem:[%s217 + $0x28] sm:$0xff]
        %v312 = vld [vmem:[%s217 + $0x30] sm:$0xff]
        %v313 = vld [vmem:[%s217 + $0x38] sm:$0xff]
        %v314 = vld [vmem:[%s217 + $0x40] sm:$0xff]
        %v315 = vld [vmem:[%s217 + $0x48] sm:$0xff]
        %v316 = vld [vmem:[%s217 + $0x50] sm:$0xff]
        %v317 = vld [vmem:[%s217 + $0x58] sm:$0xff]
        %v318 = vld [vmem:[%s217 + $0x60] sm:$0xff]
        %v319 = vld [vmem:[%s217 + $0x68] sm:$0xff]
        %v320 = vld [vmem:[%s217 + $0x70] sm:$0xff]
        %v321 = vld [vmem:[%s217 + $0x78] sm:$0xff]
        %v322 = vld [vmem:[%s217 + $0x80] sm:$0xff]
        %v323 = vld [vmem:[%s217 + $0x88] sm:$0xff]
        %v324 = vld [vmem:[%s217 + $0x90] sm:$0xff]
        %v325 = vld [vmem:[%s217 + $0x98] sm:$0xff]
        %v326 = vld [vmem:[%s217 + $0xa0] sm:$0xff]
        %v327 = vld [vmem:[%s217 + $0xa8] sm:$0xff]
        %v328 = vld [vmem:[%s217 + $0xb0] sm:$0xff]
        %v329 = vld [vmem:[%s217 + $0xb8] sm:$0xff]
        %v330 = vld [vmem:[%s217 + $0xc0] sm:$0xff]
        %v331 = vld [vmem:[%s217 + $0xc8] sm:$0xff]
        %v332 = vld [vmem:[%s217 + $0xd0] sm:$0xff]
        %v333 = vld [vmem:[%s217 + $0xd8] sm:$0xff]
        %v334 = vld [vmem:[%s217 + $0xe0] sm:$0xff]
        %v335 = vld [vmem:[%s217 + $0xe8] sm:$0xff]
        %v336 = vld [vmem:[%s217 + $0xf0] sm:$0xff]
        %v337 = vld [vmem:[%s217 + $0xf8] sm:$0xff]
        %v338 = vld [vmem:[%s217 + $0x100] sm:$0xff]
        %v339 = vld [vmem:[%s217 + $0x108] sm:$0xff]
        %v340 = vld [vmem:[%s217 + $0x110] sm:$0xff]
        %v341 = vld [vmem:[%s217 + $0x118] sm:$0xff]
        %v342 = vld [vmem:[%s217 + $0x120] sm:$0xff]
        %v343 = vld [vmem:[%s217 + $0x128] sm:$0xff]
        %v344 = vld [vmem:[%s217 + $0x130] sm:$0xff]
        %v345 = vld [vmem:[%s217 + $0x138] sm:$0xff]
        %v346 = vld [vmem:[%s217 + $0x140] sm:$0xff]
        %v347 = vld [vmem:[%s217 + $0x148] sm:$0xff]
        %v348 = vld [vmem:[%s217 + $0x150] sm:$0xff]
        %v349 = vld [vmem:[%s217 + $0x158] sm:$0xff]
        %v350 = vld [vmem:[%s217 + $0x160] sm:$0xff]
        %v351 = vld [vmem:[%s217 + $0x168] sm:$0xff]
        %v352 = vld [vmem:[%s217 + $0x170] sm:$0xff]
        %v353 = vld [vmem:[%s217 + $0x178] sm:$0xff]
        %v354 = vld [vmem:[%s217 + $0x180] sm:$0xff]
        %v355 = vld [vmem:[%s217 + $0x188] sm:$0xff]
        %v356 = vld [vmem:[%s217 + $0x190] sm:$0xff]
        %v357 = vld [vmem:[%s217 + $0x198] sm:$0xff]
        %v358 = vld [vmem:[%s217 + $0x1a0] sm:$0xff]
        %v359 = vld [vmem:[%s217 + $0x1a8] sm:$0xff]
        %v360 = vld [vmem:[%s217 + $0x1b0] sm:$0xff]
        %v361 = vld [vmem:[%s217 + $0x1b8] sm:$0xff]
        %v362 = vld [vmem:[%s217 + $0x1c0] sm:$0xff]
        %v363 = vld [vmem:[%s217 + $0x1c8] sm:$0xff]
        %v364 = vld [vmem:[%s217 + $0x1d0] sm:$0xff]
        %v365 = vld [vmem:[%s217 + $0x1d8] sm:$0xff]
        %v366 = vld [vmem:[%s217 + $0x1e0] sm:$0xff]
        %v367 = vld [vmem:[%s217 + $0x1e8] sm:$0xff]
        %v368 = vld [vmem:[%s217 + $0x1f0] sm:$0xff]
        %v369 = vld [vmem:[%s217 + $0x1f8] sm:$0xff]
        %v370 = vld [vmem:[%s217 + $0x200] sm:$0xff]
        %v371 = vld [vmem:[%s217 + $0x208] sm:$0xff]
        %v372 = vld [vmem:[%s217 + $0x210] sm:$0xff]
        %v373 = vld [vmem:[%s217 + $0x218] sm:$0xff]
        %v374 = vld [vmem:[%s217 + $0x220] sm:$0xff]
        %v375 = vld [vmem:[%s217 + $0x228] sm:$0xff]
        %v376 = vld [vmem:[%s217 + $0x230] sm:$0xff]
        %v377 = vld [vmem:[%s217 + $0x238] sm:$0xff]
        %v378 = vld [vmem:[%s217 + $0x240] sm:$0xff]
        %v379 = vld [vmem:[%s217 + $0x248] sm:$0xff]
        %v380 = vld [vmem:[%s217 + $0x250] sm:$0xff]
        %v381 = vld [vmem:[%s217 + $0x258] sm:$0xff]
        %v382 = vld [vmem:[%s217 + $0x260] sm:$0xff]
        %v383 = vld [vmem:[%s217 + $0x268] sm:$0xff]
        %v384 = vld [vmem:[%s217 + $0x270] sm:$0xff]
        %v385 = vld [vmem:[%s217 + $0x278] sm:$0xff]
        %v386 = vld [vmem:[%s217 + $0x280] sm:$0xff]
        %v387 = vld [vmem:[%s217 + $0x288] sm:$0xff]
        %v388 = vld [vmem:[%s217 + $0x290] sm:$0xff]
        %v389 = vld [vmem:[%s217 + $0x298] sm:$0xff]
        %v390 = vld [vmem:[%s217 + $0x2a0] sm:$0xff]
        %v391 = vld [vmem:[%s217 + $0x2a8] sm:$0xff]
        %v392 = vld [vmem:[%s217 + $0x2b0] sm:$0xff]
        %v393 = vld [vmem:[%s217 + $0x2b8] sm:$0xff]
        %v394 = vld [vmem:[%s217 + $0x2c0] sm:$0xff]
        %v395 = vld [vmem:[%s217 + $0x2c8] sm:$0xff]
        %v396 = vld [vmem:[%s217 + $0x2d0] sm:$0xff]
        %v397 = vld [vmem:[%s217 + $0x2d8] sm:$0xff]
        %v398 = vld [vmem:[%s217 + $0x2e0] sm:$0xff]
        %v399 = vld [vmem:[%s217 + $0x2e8] sm:$0xff]
        %v400 = vld [vmem:[%s217 + $0x2f0] sm:$0xff]
        %v401 = vld [vmem:[%s217 + $0x2f8] sm:$0xff]
        %v402 = vld [vmem:[%s217 + $0x300] sm:$0xff]
        %v403 = vld [vmem:[%s217 + $0x308] sm:$0xff]
        %v404 = vld [vmem:[%s217 + $0x310] sm:$0xff]
        %v405 = vld [vmem:[%s217 + $0x318] sm:$0xff]
        %v406 = vld [vmem:[%s217 + $0x320] sm:$0xff]
        %v407 = vld [vmem:[%s217 + $0x328] sm:$0xff]
        %v408 = vld [vmem:[%s217 + $0x330] sm:$0xff]
        %v409 = vld [vmem:[%s217 + $0x338] sm:$0xff]
        %v410 = vld [vmem:[%s217 + $0x340] sm:$0xff]
        %v411 = vld [vmem:[%s217 + $0x348] sm:$0xff]
        %v412 = vld [vmem:[%s217 + $0x350] sm:$0xff]
        %v413 = vld [vmem:[%s217 + $0x358] sm:$0xff]
        %v414 = vld [vmem:[%s217 + $0x360] sm:$0xff]
        %v415 = vld [vmem:[%s217 + $0x368] sm:$0xff]
        %v416 = vld [vmem:[%s217 + $0x370] sm:$0xff]
        %v417 = vld [vmem:[%s217 + $0x378] sm:$0xff]
        %v418 = vld [vmem:[%s217 + $0x380] sm:$0xff]
        %v419 = vld [vmem:[%s217 + $0x388] sm:$0xff]
        %v420 = vld [vmem:[%s217 + $0x390] sm:$0xff]
        %v421 = vld [vmem:[%s217 + $0x398] sm:$0xff]
        %v422 = vld [vmem:[%s217 + $0x3a0] sm:$0xff]
        %v423 = vld [vmem:[%s217 + $0x3a8] sm:$0xff]
        %v424 = vld [vmem:[%s217 + $0x3b0] sm:$0xff]
        %v425 = vld [vmem:[%s217 + $0x3b8] sm:$0xff]
        %v426 = vld [vmem:[%s217 + $0x3c0] sm:$0xff]
        %v427 = vld [vmem:[%s217 + $0x3c8] sm:$0xff]
        %v428 = vld [vmem:[%s217 + $0x3d0] sm:$0xff]
        %v429 = vld [vmem:[%s217 + $0x3d8] sm:$0xff]
        %v430 = vld [vmem:[%s217 + $0x3e0] sm:$0xff]
        %v431 = vld [vmem:[%s217 + $0x3e8] sm:$0xff]
        %v432 = vld [vmem:[%s217 + $0x3f0] sm:$0xff]
        %v433 = vld [vmem:[%s217 + $0x3f8] sm:$0xff]
        %v434 = vld [vmem:[%s217 + $0x400] sm:$0xff]
        %v435 = vld [vmem:[%s217 + $0x408] sm:$0xff]
        %v436 = vld [vmem:[%s217 + $0x410] sm:$0xff]
        %v437 = vld [vmem:[%s217 + $0x418] sm:$0xff]
        %v438 = vld [vmem:[%s217 + $0x420] sm:$0xff]
        %v439 = vld [vmem:[%s217 + $0x428] sm:$0xff]
        %v440 = vld [vmem:[%s217 + $0x430] sm:$0xff]
        %v441 = vld [vmem:[%s217 + $0x438] sm:$0xff]
        %v442 = vld [vmem:[%s217 + $0x440] sm:$0xff]
        %v443 = vld [vmem:[%s217 + $0x448] sm:$0xff]
        %v444 = vld [vmem:[%s217 + $0x450] sm:$0xff]
        %v445 = vld [vmem:[%s217 + $0x458] sm:$0xff]
        %v446 = vld [vmem:[%s217 + $0x460] sm:$0xff]
        %v447 = vld [vmem:[%s217 + $0x468] sm:$0xff]
        %v448 = vld [vmem:[%s217 + $0x470] sm:$0xff]
        %v449 = vld [vmem:[%s217 + $0x478] sm:$0xff]
        %v450 = vld [vmem:[%s217 + $0x480] sm:$0xff]
        %v451 = vld [vmem:[%s217 + $0x488] sm:$0xff]
        %v452 = vld [vmem:[%s217 + $0x490] sm:$0xff]
        %v453 = vld [vmem:[%s217 + $0x498] sm:$0xff]
        %v454 = vld [vmem:[%s217 + $0x4a0] sm:$0xff]
        %v455 = vld [vmem:[%s217 + $0x4a8] sm:$0xff]
        %v456 = vld [vmem:[%s217 + $0x4b0] sm:$0xff]
        %v457 = vld [vmem:[%s217 + $0x4b8] sm:$0xff]
        %v458 = vld [vmem:[%s217 + $0x4c0] sm:$0xff]
        %v459 = vld [vmem:[%s217 + $0x4c8] sm:$0xff]
        %v460 = vld [vmem:[%s217 + $0x4d0] sm:$0xff]
        %v461 = vld [vmem:[%s217 + $0x4d8] sm:$0xff]
        %v462 = vld [vmem:[%s217 + $0x4e0] sm:$0xff]
        %v463 = vld [vmem:[%s217 + $0x4e8] sm:$0xff]
        %v464 = vld [vmem:[%s217 + $0x4f0] sm:$0xff]
        %v465 = vld [vmem:[%s217 + $0x4f8] sm:$0xff]
        %v466 = vld [vmem:[%s217 + $0x500] sm:$0xff]
        %v467 = vld [vmem:[%s217 + $0x508] sm:$0xff]
        %v468 = vld [vmem:[%s217 + $0x510] sm:$0xff]
        %v469 = vld [vmem:[%s217 + $0x518] sm:$0xff]
        %v470 = vld [vmem:[%s217 + $0x520] sm:$0xff]
        %v471 = vld [vmem:[%s217 + $0x528] sm:$0xff]
        %v472 = vld [vmem:[%s217 + $0x530] sm:$0xff]
        %v473 = vld [vmem:[%s217 + $0x538] sm:$0xff]
        %v474 = vld [vmem:[%s217 + $0x540] sm:$0xff]
        %v475 = vld [vmem:[%s217 + $0x548] sm:$0xff]
        %v476 = vld [vmem:[%s217 + $0x550] sm:$0xff]
        %v477 = vld [vmem:[%s217 + $0x558] sm:$0xff]
        %v478 = vld [vmem:[%s217 + $0x560] sm:$0xff]
        %v479 = vld [vmem:[%s217 + $0x568] sm:$0xff]
        %v480 = vld [vmem:[%s217 + $0x570] sm:$0xff]
        %v481 = vld [vmem:[%s217 + $0x578] sm:$0xff]
        %v482 = vld [vmem:[%s217 + $0x580] sm:$0xff]
        %v483 = vld [vmem:[%s217 + $0x588] sm:$0xff]
        %v484 = vld [vmem:[%s217 + $0x590] sm:$0xff]
        %v485 = vld [vmem:[%s217 + $0x598] sm:$0xff]
        %v486 = vld [vmem:[%s217 + $0x5a0] sm:$0xff]
        %v487 = vld [vmem:[%s217 + $0x5a8] sm:$0xff]
        %v488 = vld [vmem:[%s217 + $0x5b0] sm:$0xff]
        %v489 = vld [vmem:[%s217 + $0x5b8] sm:$0xff]
        %v490 = vld [vmem:[%s217 + $0x5c0] sm:$0xff]
        %v491 = vld [vmem:[%s217 + $0x5c8] sm:$0xff]
        %v492 = vld [vmem:[%s217 + $0x5d0] sm:$0xff]
        %v493 = vld [vmem:[%s217 + $0x5d8] sm:$0xff]
        %v494 = vld [vmem:[%s217 + $0x5e0] sm:$0xff]
        %v495 = vld [vmem:[%s217 + $0x5e8] sm:$0xff]
        %v496 = vld [vmem:[%s217 + $0x5f0] sm:$0xff]
        %v497 = vld [vmem:[%s217 + $0x5f8] sm:$0xff]
        %v498 = vld [vmem:[%s217 + $0x600] sm:$0xff]
        %v499 = vld [vmem:[%s217 + $0x608] sm:$0xff]
        %v500 = vld [vmem:[%s217 + $0x610] sm:$0xff]
        %v501 = vld [vmem:[%s217 + $0x618] sm:$0xff]
        %v502 = vld [vmem:[%s217 + $0x620] sm:$0xff]
        %v503 = vld [vmem:[%s217 + $0x628] sm:$0xff]
        %v504 = vld [vmem:[%s217 + $0x630] sm:$0xff]
        %v505 = vld [vmem:[%s217 + $0x638] sm:$0xff]
        %v506 = vld [vmem:[%s217 + $0x640] sm:$0xff]
        %v507 = vld [vmem:[%s217 + $0x648] sm:$0xff]
        %v508 = vld [vmem:[%s217 + $0x650] sm:$0xff]
        %v509 = vld [vmem:[%s217 + $0x658] sm:$0xff]
        %v510 = vld [vmem:[%s217 + $0x660] sm:$0xff]
        %v511 = vld [vmem:[%s217 + $0x668] sm:$0xff]
        %v512 = vld [vmem:[%s217 + $0x670] sm:$0xff]
        %v513 = vld [vmem:[%s217 + $0x678] sm:$0xff]
        %v514 = vld [vmem:[%s217 + $0x680] sm:$0xff]
        %v515 = vld [vmem:[%s217 + $0x688] sm:$0xff]
        %v516 = vld [vmem:[%s217 + $0x690] sm:$0xff]
        %v517 = vld [vmem:[%s217 + $0x698] sm:$0xff]
        %v518 = vld [vmem:[%s217 + $0x6a0] sm:$0xff]
        %v519 = vld [vmem:[%s217 + $0x6a8] sm:$0xff]
        %v520 = vld [vmem:[%s217 + $0x6b0] sm:$0xff]
        %v521 = vld [vmem:[%s217 + $0x6b8] sm:$0xff]
        %v522 = vld [vmem:[%s217 + $0x6c0] sm:$0xff]
        %v523 = vld [vmem:[%s217 + $0x6c8] sm:$0xff]
        %v524 = vld [vmem:[%s217 + $0x6d0] sm:$0xff]
        %v525 = vld [vmem:[%s217 + $0x6d8] sm:$0xff]
        %v526 = vld [vmem:[%s217 + $0x6e0] sm:$0xff]
        %v527 = vld [vmem:[%s217 + $0x6e8] sm:$0xff]
        %v528 = vld [vmem:[%s217 + $0x6f0] sm:$0xff]
        %v529 = vld [vmem:[%s217 + $0x6f8] sm:$0xff]
        %v530 = vld [vmem:[%s217 + $0x700] sm:$0xff]
        %v531 = vld [vmem:[%s217 + $0x708] sm:$0xff]
        %v532 = vld [vmem:[%s217 + $0x710] sm:$0xff]
        %v533 = vld [vmem:[%s217 + $0x718] sm:$0xff]
        %v534 = vld [vmem:[%s217 + $0x720] sm:$0xff]
        %v535 = vld [vmem:[%s217 + $0x728] sm:$0xff]
        %v536 = vld [vmem:[%s217 + $0x730] sm:$0xff]
        %v537 = vld [vmem:[%s217 + $0x738] sm:$0xff]
        %v538 = vld [vmem:[%s217 + $0x740] sm:$0xff]
        %v539 = vld [vmem:[%s217 + $0x748] sm:$0xff]
        %v540 = vld [vmem:[%s217 + $0x750] sm:$0xff]
        %v541 = vld [vmem:[%s217 + $0x758] sm:$0xff]
        %v542 = vld [vmem:[%s217 + $0x760] sm:$0xff]
        %v543 = vld [vmem:[%s217 + $0x768] sm:$0xff]
        %v544 = vld [vmem:[%s217 + $0x770] sm:$0xff]
        %v545 = vld [vmem:[%s217 + $0x778] sm:$0xff]
        %v546 = vld [vmem:[%s217 + $0x780] sm:$0xff]
        %v547 = vld [vmem:[%s217 + $0x788] sm:$0xff]
        %v548 = vld [vmem:[%s217 + $0x790] sm:$0xff]
        %v549 = vld [vmem:[%s217 + $0x798] sm:$0xff]
        %v550 = vld [vmem:[%s217 + $0x7a0] sm:$0xff]
        %v551 = vld [vmem:[%s217 + $0x7a8] sm:$0xff]
        %v552 = vld [vmem:[%s217 + $0x7b0] sm:$0xff]
        %v553 = vld [vmem:[%s217 + $0x7b8] sm:$0xff]
        %v554 = vld [vmem:[%s217 + $0x7c0] sm:$0xff]
        %v555 = vld [vmem:[%s217 + $0x7c8] sm:$0xff]
        %v556 = vld [vmem:[%s217 + $0x7d0] sm:$0xff]
        %v557 = vld [vmem:[%s217 + $0x7d8] sm:$0xff]
        %v558 = vld [vmem:[%s217 + $0x7e0] sm:$0xff]
        %v559 = vld [vmem:[%s217 + $0x7e8] sm:$0xff]
        %v560 = vld [vmem:[%s217 + $0x7f0] sm:$0xff]
        %v561 = vld [vmem:[%s217 + $0x7f8] sm:$0xff]
        %v562 = vld [vmem:[%s217 + $0x800] sm:$0xff]
        %v563 = vld [vmem:[%s217 + $0x808] sm:$0xff]
        %v564 = vld [vmem:[%s217 + $0x810] sm:$0xff]
        %v565 = vld [vmem:[%s217 + $0x818] sm:$0xff]
        %v566 = vld [vmem:[%s217 + $0x820] sm:$0xff]
        %v567 = vld [vmem:[%s217 + $0x828] sm:$0xff]
        %v568 = vld [vmem:[%s217 + $0x830] sm:$0xff]
        %v569 = vld [vmem:[%s217 + $0x838] sm:$0xff]
        %v570 = vld [vmem:[%s217 + $0x840] sm:$0xff]
        %v571 = vld [vmem:[%s217 + $0x848] sm:$0xff]
        %v572 = vld [vmem:[%s217 + $0x850] sm:$0xff]
        %v573 = vld [vmem:[%s217 + $0x858] sm:$0xff]
        %v574 = vld [vmem:[%s217 + $0x860] sm:$0xff]
        %v575 = vld [vmem:[%s217 + $0x868] sm:$0xff]
        %v576 = vld [vmem:[%s217 + $0x870] sm:$0xff]
        %v577 = vld [vmem:[%s217 + $0x878] sm:$0xff]
        %v578 = vld [vmem:[%s217 + $0x880] sm:$0xff]
        %v579 = vld [vmem:[%s217 + $0x888] sm:$0xff]
        %v580 = vld [vmem:[%s217 + $0x890] sm:$0xff]
        %v581 = vld [vmem:[%s217 + $0x898] sm:$0xff]
        %v582 = vld [vmem:[%s217 + $0x8a0] sm:$0xff]
        %v583 = vld [vmem:[%s217 + $0x8a8] sm:$0xff]
        %v584 = vld [vmem:[%s217 + $0x8b0] sm:$0xff]
        %v585 = vld [vmem:[%s217 + $0x8b8] sm:$0xff]
        %v586 = vld [vmem:[%s217 + $0x8c0] sm:$0xff]
        %v587 = vld [vmem:[%s217 + $0x8c8] sm:$0xff]
        %v588 = vld [vmem:[%s217 + $0x8d0] sm:$0xff]
        %v589 = vld [vmem:[%s217 + $0x8d8] sm:$0xff]
        %v590 = vld [vmem:[%s217 + $0x8e0] sm:$0xff]
        %v591 = vld [vmem:[%s217 + $0x8e8] sm:$0xff]
        %v592 = vld [vmem:[%s217 + $0x8f0] sm:$0xff]
        %v593 = vld [vmem:[%s217 + $0x8f8] sm:$0xff]
        %v594 = vld [vmem:[%s217 + $0x900] sm:$0xff]
        %v595 = vld [vmem:[%s217 + $0x908] sm:$0xff]
        %v596 = vld [vmem:[%s217 + $0x910] sm:$0xff]
        %v597 = vld [vmem:[%s217 + $0x918] sm:$0xff]
        %v598 = vld [vmem:[%s217 + $0x920] sm:$0xff]
        %v599 = vld [vmem:[%s217 + $0x928] sm:$0xff]
        %v600 = vld [vmem:[%s217 + $0x930] sm:$0xff]
        %v601 = vld [vmem:[%s217 + $0x938] sm:$0xff]
        %v602 = vld [vmem:[%s217 + $0x940] sm:$0xff]
        %v603 = vld [vmem:[%s217 + $0x948] sm:$0xff]
        %v604 = vld [vmem:[%s217 + $0x950] sm:$0xff]
        %v605 = vld [vmem:[%s217 + $0x958] sm:$0xff]
        %v606 = vld [vmem:[%s217 + $0x960] sm:$0xff]
        %v607 = vld [vmem:[%s217 + $0x968] sm:$0xff]
        %v608 = vld [vmem:[%s217 + $0x970] sm:$0xff]
        %v609 = vld [vmem:[%s217 + $0x978] sm:$0xff]
        %v610 = vld [vmem:[%s217 + $0x980] sm:$0xff]
        %v611 = vld [vmem:[%s217 + $0x988] sm:$0xff]
        %v612 = vld [vmem:[%s217 + $0x990] sm:$0xff]
        %v613 = vld [vmem:[%s217 + $0x998] sm:$0xff]
        %v614 = vld [vmem:[%s217 + $0x9a0] sm:$0xff]
        %v615 = vld [vmem:[%s217 + $0x9a8] sm:$0xff]
        %v616 = vld [vmem:[%s217 + $0x9b0] sm:$0xff]
        %v617 = vld [vmem:[%s217 + $0x9b8] sm:$0xff]
        %v618 = vld [vmem:[%s217 + $0x9c0] sm:$0xff]
        %v619 = vld [vmem:[%s217 + $0x9c8] sm:$0xff]
        %v620 = vld [vmem:[%s217 + $0x9d0] sm:$0xff]
        %v621 = vld [vmem:[%s217 + $0x9d8] sm:$0xff]
        %v622 = vld [vmem:[%s217 + $0x9e0] sm:$0xff]
        %v623 = vld [vmem:[%s217 + $0x9e8] sm:$0xff]
        %v624 = vld [vmem:[%s217 + $0x9f0] sm:$0xff]
        %v625 = vld [vmem:[%s217 + $0x9f8] sm:$0xff]
        %v626 = vld [vmem:[%s217 + $0xa00] sm:$0xff]
        %v627 = vld [vmem:[%s217 + $0xa08] sm:$0xff]
        %v628 = vld [vmem:[%s217 + $0xa10] sm:$0xff]
        %v629 = vld [vmem:[%s217 + $0xa18] sm:$0xff]
        %v630 = vld [vmem:[%s217 + $0xa20] sm:$0xff]
        %v631 = vld [vmem:[%s217 + $0xa28] sm:$0xff]
        %v632 = vld [vmem:[%s217 + $0xa30] sm:$0xff]
        %v633 = vld [vmem:[%s217 + $0xa38] sm:$0xff]
        %v634 = vld [vmem:[%s217 + $0xa40] sm:$0xff]
        %v635 = vld [vmem:[%s217 + $0xa48] sm:$0xff]
        %v636 = vld [vmem:[%s217 + $0xa50] sm:$0xff]
        %v637 = vld [vmem:[%s217 + $0xa58] sm:$0xff]
        %v638 = vld [vmem:[%s217 + $0xa60] sm:$0xff]
        %v639 = vld [vmem:[%s217 + $0xa68] sm:$0xff]
        %v640 = vld [vmem:[%s217 + $0xa70] sm:$0xff]
        %v641 = vld [vmem:[%s217 + $0xa78] sm:$0xff]
        %v642 = vld [vmem:[%s217 + $0xa80] sm:$0xff]
        %v643 = vld [vmem:[%s217 + $0xa88] sm:$0xff]
        %v644 = vld [vmem:[%s217 + $0xa90] sm:$0xff]
        %v645 = vld [vmem:[%s217 + $0xa98] sm:$0xff]
        %v646 = vld [vmem:[%s217 + $0xaa0] sm:$0xff]
        %v647 = vld [vmem:[%s217 + $0xaa8] sm:$0xff]
        %v648 = vld [vmem:[%s217 + $0xab0] sm:$0xff]
        %v649 = vld [vmem:[%s217 + $0xab8] sm:$0xff]
        %v650 = vld [vmem:[%s217 + $0xac0] sm:$0xff]
        %v651 = vld [vmem:[%s217 + $0xac8] sm:$0xff]
        %v652 = vld [vmem:[%s217 + $0xad0] sm:$0xff]
        %v653 = vld [vmem:[%s217 + $0xad8] sm:$0xff]
        %v654 = vld [vmem:[%s217 + $0xae0] sm:$0xff]
        %v655 = vld [vmem:[%s217 + $0xae8] sm:$0xff]
        %v656 = vld [vmem:[%s217 + $0xaf0] sm:$0xff]
        %v657 = vld [vmem:[%s217 + $0xaf8] sm:$0xff]
        %v658 = vld [vmem:[%s217 + $0xb00] sm:$0xff]
        %v659 = vld [vmem:[%s217 + $0xb08] sm:$0xff]
        %v660 = vld [vmem:[%s217 + $0xb10] sm:$0xff]
        %v661 = vld [vmem:[%s217 + $0xb18] sm:$0xff]
        %v662 = vld [vmem:[%s217 + $0xb20] sm:$0xff]
        %v663 = vld [vmem:[%s217 + $0xb28] sm:$0xff]
        %v664 = vld [vmem:[%s217 + $0xb30] sm:$0xff]
        %v665 = vld [vmem:[%s217 + $0xb38] sm:$0xff]
        %v666 = vld [vmem:[%s217 + $0xb40] sm:$0xff]
        %v667 = vld [vmem:[%s217 + $0xb48] sm:$0xff]
        %v668 = vld [vmem:[%s217 + $0xb50] sm:$0xff]
        %v669 = vld [vmem:[%s217 + $0xb58] sm:$0xff]
        %v670 = vld [vmem:[%s217 + $0xb60] sm:$0xff]
        %v671 = vld [vmem:[%s217 + $0xb68] sm:$0xff]
        %v672 = vld [vmem:[%s217 + $0xb70] sm:$0xff]
        %v673 = vld [vmem:[%s217 + $0xb78] sm:$0xff]
        %v674 = vld [vmem:[%s217 + $0xb80] sm:$0xff]
        %v675 = vld [vmem:[%s217 + $0xb88] sm:$0xff]
        %v676 = vld [vmem:[%s217 + $0xb90] sm:$0xff]
        %v677 = vld [vmem:[%s217 + $0xb98] sm:$0xff]
        %v678 = vld [vmem:[%s217 + $0xba0] sm:$0xff]
        %v679 = vld [vmem:[%s217 + $0xba8] sm:$0xff]
        %v680 = vld [vmem:[%s217 + $0xbb0] sm:$0xff]
        %v681 = vld [vmem:[%s217 + $0xbb8] sm:$0xff]
        %v682 = vld [vmem:[%s217 + $0xbc0] sm:$0xff]
        %v683 = vld [vmem:[%s217 + $0xbc8] sm:$0xff]
        %v684 = vld [vmem:[%s217 + $0xbd0] sm:$0xff]
        %v685 = vld [vmem:[%s217 + $0xbd8] sm:$0xff]
        %v686 = vld [vmem:[%s217 + $0xbe0] sm:$0xff]
        %v687 = vld [vmem:[%s217 + $0xbe8] sm:$0xff]
        %v688 = vld [vmem:[%s217 + $0xbf0] sm:$0xff]
        %v689 = vld [vmem:[%s217 + $0xbf8] sm:$0xff]
        %v690 = vld [vmem:[%s217 + $0xc00] sm:$0xff]
        %v691 = vld [vmem:[%s217 + $0xc08] sm:$0xff]
        %v692 = vld [vmem:[%s217 + $0xc10] sm:$0xff]
        %v693 = vld [vmem:[%s217 + $0xc18] sm:$0xff]
        %v694 = vld [vmem:[%s217 + $0xc20] sm:$0xff]
        %v695 = vld [vmem:[%s217 + $0xc28] sm:$0xff]
        %v696 = vld [vmem:[%s217 + $0xc30] sm:$0xff]
        %v697 = vld [vmem:[%s217 + $0xc38] sm:$0xff]
        %v698 = vld [vmem:[%s217 + $0xc40] sm:$0xff]
        %v699 = vld [vmem:[%s217 + $0xc48] sm:$0xff]
        %v700 = vld [vmem:[%s217 + $0xc50] sm:$0xff]
        %v701 = vld [vmem:[%s217 + $0xc58] sm:$0xff]
        %v702 = vld [vmem:[%s217 + $0xc60] sm:$0xff]
        %v703 = vld [vmem:[%s217 + $0xc68] sm:$0xff]
        %v704 = vld [vmem:[%s217 + $0xc70] sm:$0xff]
        %v705 = vld [vmem:[%s217 + $0xc78] sm:$0xff]
        %v706 = vld [vmem:[%s217 + $0xc80] sm:$0xff]
        %v707 = vld [vmem:[%s217 + $0xc88] sm:$0xff]
        %v708 = vld [vmem:[%s217 + $0xc90] sm:$0xff]
        %v709 = vld [vmem:[%s217 + $0xc98] sm:$0xff]
        %v710 = vld [vmem:[%s217 + $0xca0] sm:$0xff]
        %v711 = vld [vmem:[%s217 + $0xca8] sm:$0xff]
        %v712 = vld [vmem:[%s217 + $0xcb0] sm:$0xff]
        %v713 = vld [vmem:[%s217 + $0xcb8] sm:$0xff]
        %v714 = vld [vmem:[%s217 + $0xcc0] sm:$0xff]
        %v715 = vld [vmem:[%s217 + $0xcc8] sm:$0xff]
        %v716 = vld [vmem:[%s217 + $0xcd0] sm:$0xff]
        %v717 = vld [vmem:[%s217 + $0xcd8] sm:$0xff]
        %v718 = vld [vmem:[%s217 + $0xce0] sm:$0xff]
        %v719 = vld [vmem:[%s217 + $0xce8] sm:$0xff]
        %v720 = vld [vmem:[%s217 + $0xcf0] sm:$0xff]
        %v721 = vld [vmem:[%s217 + $0xcf8] sm:$0xff]
        %v722 = vld [vmem:[%s217 + $0xd00] sm:$0xff]
        %v723 = vld [vmem:[%s217 + $0xd08] sm:$0xff]
        %v724 = vld [vmem:[%s217 + $0xd10] sm:$0xff]
        %v725 = vld [vmem:[%s217 + $0xd18] sm:$0xff]
        %v726 = vld [vmem:[%s217 + $0xd20] sm:$0xff]
        %v727 = vld [vmem:[%s217 + $0xd28] sm:$0xff]
        %v728 = vld [vmem:[%s217 + $0xd30] sm:$0xff]
        %v729 = vld [vmem:[%s217 + $0xd38] sm:$0xff]
        %v730 = vld [vmem:[%s217 + $0xd40] sm:$0xff]
        %v731 = vld [vmem:[%s217 + $0xd48] sm:$0xff]
        %v732 = vld [vmem:[%s217 + $0xd50] sm:$0xff]
        %v733 = vld [vmem:[%s217 + $0xd58] sm:$0xff]
        %v734 = vld [vmem:[%s217 + $0xd60] sm:$0xff]
        %v735 = vld [vmem:[%s217 + $0xd68] sm:$0xff]
        %v736 = vld [vmem:[%s217 + $0xd70] sm:$0xff]
        %v737 = vld [vmem:[%s217 + $0xd78] sm:$0xff]
        %v738 = vld [vmem:[%s217 + $0xd80] sm:$0xff]
        %v739 = vld [vmem:[%s217 + $0xd88] sm:$0xff]
        %v740 = vld [vmem:[%s217 + $0xd90] sm:$0xff]
        %v741 = vld [vmem:[%s217 + $0xd98] sm:$0xff]
        %v742 = vld [vmem:[%s217 + $0xda0] sm:$0xff]
        %v743 = vld [vmem:[%s217 + $0xda8] sm:$0xff]
        %v744 = vld [vmem:[%s217 + $0xdb0] sm:$0xff]
        %v745 = vld [vmem:[%s217 + $0xdb8] sm:$0xff]
        %v746 = vld [vmem:[%s217 + $0xdc0] sm:$0xff]
        %v747 = vld [vmem:[%s217 + $0xdc8] sm:$0xff]
        %v748 = vld [vmem:[%s217 + $0xdd0] sm:$0xff]
        %v749 = vld [vmem:[%s217 + $0xdd8] sm:$0xff]
        %v750 = vld [vmem:[%s217 + $0xde0] sm:$0xff]
        %v751 = vld [vmem:[%s217 + $0xde8] sm:$0xff]
        %v752 = vld [vmem:[%s217 + $0xdf0] sm:$0xff]
        %v753 = vld [vmem:[%s217 + $0xdf8] sm:$0xff]
        %v754 = vld [vmem:[%s217 + $0xe00] sm:$0xff]
        %v755 = vld [vmem:[%s217 + $0xe08] sm:$0xff]
        %v756 = vld [vmem:[%s217 + $0xe10] sm:$0xff]
        %v757 = vld [vmem:[%s217 + $0xe18] sm:$0xff]
        %v758 = vld [vmem:[%s217 + $0xe20] sm:$0xff]
        %v759 = vld [vmem:[%s217 + $0xe28] sm:$0xff]
        %v760 = vld [vmem:[%s217 + $0xe30] sm:$0xff]
        %v761 = vld [vmem:[%s217 + $0xe38] sm:$0xff]
        %v762 = vld [vmem:[%s217 + $0xe40] sm:$0xff]
        %v763 = vld [vmem:[%s217 + $0xe48] sm:$0xff]
        %v764 = vld [vmem:[%s217 + $0xe50] sm:$0xff]
        %v765 = vld [vmem:[%s217 + $0xe58] sm:$0xff]
        %v766 = vld [vmem:[%s217 + $0xe60] sm:$0xff]
        %v767 = vld [vmem:[%s217 + $0xe68] sm:$0xff]
        %v768 = vld [vmem:[%s217 + $0xe70] sm:$0xff]
        %v769 = vld [vmem:[%s217 + $0xe78] sm:$0xff]
        %v770 = vld [vmem:[%s217 + $0xe80] sm:$0xff]
        %v771 = vld [vmem:[%s217 + $0xe88] sm:$0xff]
        %v772 = vld [vmem:[%s217 + $0xe90] sm:$0xff]
        %v773 = vld [vmem:[%s217 + $0xe98] sm:$0xff]
        %v774 = vld [vmem:[%s217 + $0xea0] sm:$0xff]
        %v775 = vld [vmem:[%s217 + $0xea8] sm:$0xff]
        %v776 = vld [vmem:[%s217 + $0xeb0] sm:$0xff]
        %v777 = vld [vmem:[%s217 + $0xeb8] sm:$0xff]
        %v778 = vld [vmem:[%s217 + $0xec0] sm:$0xff]
        %v779 = vld [vmem:[%s217 + $0xec8] sm:$0xff]
        %v780 = vld [vmem:[%s217 + $0xed0] sm:$0xff]
        %v781 = vld [vmem:[%s217 + $0xed8] sm:$0xff]
        %v782 = vld [vmem:[%s217 + $0xee0] sm:$0xff]
        %v783 = vld [vmem:[%s217 + $0xee8] sm:$0xff]
        %v784 = vld [vmem:[%s217 + $0xef0] sm:$0xff]
        %v785 = vld [vmem:[%s217 + $0xef8] sm:$0xff]
        %v786 = vld [vmem:[%s217 + $0xf00] sm:$0xff]
        %v787 = vld [vmem:[%s217 + $0xf08] sm:$0xff]
        %v788 = vld [vmem:[%s217 + $0xf10] sm:$0xff]
        %v789 = vld [vmem:[%s217 + $0xf18] sm:$0xff]
        %v790 = vld [vmem:[%s217 + $0xf20] sm:$0xff]
        %v791 = vld [vmem:[%s217 + $0xf28] sm:$0xff]
        %v792 = vld [vmem:[%s217 + $0xf30] sm:$0xff]
        %v793 = vld [vmem:[%s217 + $0xf38] sm:$0xff]
        %v794 = vld [vmem:[%s217 + $0xf40] sm:$0xff]
        %v795 = vld [vmem:[%s217 + $0xf48] sm:$0xff]
        %v796 = vld [vmem:[%s217 + $0xf50] sm:$0xff]
        %v797 = vld [vmem:[%s217 + $0xf58] sm:$0xff]
        %v798 = vld [vmem:[%s217 + $0xf60] sm:$0xff]
        %v799 = vld [vmem:[%s217 + $0xf68] sm:$0xff]
        %v800 = vld [vmem:[%s217 + $0xf70] sm:$0xff]
        %v801 = vld [vmem:[%s217 + $0xf78] sm:$0xff]
        %v802 = vld [vmem:[%s217 + $0xf80] sm:$0xff]
        %v803 = vld [vmem:[%s217 + $0xf88] sm:$0xff]
        %v804 = vld [vmem:[%s217 + $0xf90] sm:$0xff]
        %v805 = vld [vmem:[%s217 + $0xf98] sm:$0xff]
        %v806 = vld [vmem:[%s217 + $0xfa0] sm:$0xff]
        %v807 = vld [vmem:[%s217 + $0xfa8] sm:$0xff]
        %v808 = vld [vmem:[%s217 + $0xfb0] sm:$0xff]
        %v809 = vld [vmem:[%s217 + $0xfb8] sm:$0xff]
        %v810 = vld [vmem:[%s217 + $0xfc0] sm:$0xff]
        %v811 = vld [vmem:[%s217 + $0xfc8] sm:$0xff]
        %v812 = vld [vmem:[%s217 + $0xfd0] sm:$0xff]
        %v813 = vld [vmem:[%s217 + $0xfd8] sm:$0xff]
        %v814 = vld [vmem:[%s217 + $0xfe0] sm:$0xff]
        %v815 = vld [vmem:[%s217 + $0xfe8] sm:$0xff]
        %v816 = vld [vmem:[%s217 + $0xff0] sm:$0xff]
        %v817 = vld [vmem:[%s217 + $0xff8] sm:$0xff]
        %v818 = vld [vmem:[%s217 + $0x1000] sm:$0xff]
        %v819 = vld [vmem:[%s217 + $0x1008] sm:$0xff]
        %v820 = vld [vmem:[%s217 + $0x1010] sm:$0xff]
        %v821 = vld [vmem:[%s217 + $0x1018] sm:$0xff]
        %v822 = vld [vmem:[%s217 + $0x1020] sm:$0xff]
        %v823 = vld [vmem:[%s217 + $0x1028] sm:$0xff]
        %v824 = vld [vmem:[%s217 + $0x1030] sm:$0xff]
        %v825 = vld [vmem:[%s217 + $0x1038] sm:$0xff]
        %v826 = vld [vmem:[%s217 + $0x1040] sm:$0xff]
        %v827 = vld [vmem:[%s217 + $0x1048] sm:$0xff]
        %v828 = vld [vmem:[%s217 + $0x1050] sm:$0xff]
        %v829 = vld [vmem:[%s217 + $0x1058] sm:$0xff]
        %v830 = vld [vmem:[%s217 + $0x1060] sm:$0xff]
        %v831 = vld [vmem:[%s217 + $0x1068] sm:$0xff]
        %v832 = vld [vmem:[%s217 + $0x1070] sm:$0xff]
        %v833 = vld [vmem:[%s217 + $0x1078] sm:$0xff]
        %v834 = vld [vmem:[%s217 + $0x1080] sm:$0xff]
        %v835 = vld [vmem:[%s217 + $0x1088] sm:$0xff]
        %v836 = vld [vmem:[%s217 + $0x1090] sm:$0xff]
        %v837 = vld [vmem:[%s217 + $0x1098] sm:$0xff]
        %v838 = vld [vmem:[%s217 + $0x10a0] sm:$0xff]
        %v839 = vld [vmem:[%s217 + $0x10a8] sm:$0xff]
        %v840 = vld [vmem:[%s217 + $0x10b0] sm:$0xff]
        %v841 = vld [vmem:[%s217 + $0x10b8] sm:$0xff]
        %v842 = vld [vmem:[%s217 + $0x10c0] sm:$0xff]
        %v843 = vld [vmem:[%s217 + $0x10c8] sm:$0xff]
        %v844 = vld [vmem:[%s217 + $0x10d0] sm:$0xff]
        %v845 = vld [vmem:[%s217 + $0x10d8] sm:$0xff]
        %v846 = vld [vmem:[%s217 + $0x10e0] sm:$0xff]
        %v847 = vld [vmem:[%s217 + $0x10e8] sm:$0xff]
        %v848 = vld [vmem:[%s217 + $0x10f0] sm:$0xff]
        %v849 = vld [vmem:[%s217 + $0x10f8] sm:$0xff]
        %v850 = vld [vmem:[%s217 + $0x1100] sm:$0xff]
        %v851 = vld [vmem:[%s217 + $0x1108] sm:$0xff]
        %v852 = vld [vmem:[%s217 + $0x1110] sm:$0xff]
        %v853 = vld [vmem:[%s217 + $0x1118] sm:$0xff]
        %v854 = vld [vmem:[%s217 + $0x1120] sm:$0xff]
        %v855 = vld [vmem:[%s217 + $0x1128] sm:$0xff]
        %v856 = vld [vmem:[%s217 + $0x1130] sm:$0xff]
        %v857 = vld [vmem:[%s217 + $0x1138] sm:$0xff]
        %v858 = vld [vmem:[%s217 + $0x1140] sm:$0xff]
        %v859 = vld [vmem:[%s217 + $0x1148] sm:$0xff]
        %v860 = vld [vmem:[%s217 + $0x1150] sm:$0xff]
        %v861 = vld [vmem:[%s217 + $0x1158] sm:$0xff]
        %v862 = vld [vmem:[%s217 + $0x1160] sm:$0xff]
        %v863 = vld [vmem:[%s217 + $0x1168] sm:$0xff]
        %v864 = vld [vmem:[%s217 + $0x1170] sm:$0xff]
        %v865 = vld [vmem:[%s217 + $0x1178] sm:$0xff]
        %866 = vmatpush.msra.mxu0 %v381
        %867 = vmatpush.msra.mxu0 %v376
        %868 = vmatpush.msra.mxu0 %v371
        %869 = vmatpush.msra.mxu0 %v366
        %870 = vmatpush.msra.mxu0 %v361
        %871 = vmatpush.msra.mxu0 %v356
        %872 = vmatpush.msra.mxu0 %v351
        %873 = vmatpush.msra.mxu0 %v346
        %874 = vmatpush.msra.mxu0 %v341
        %875 = vmatpush.msra.mxu0 %v336
        %876 = vmatpush.msra.mxu0 %v331
        %877 = vmatpush.msra.mxu0 %v326
        %878 = vmatpush.msra.mxu0 %v321
        %879 = vmatpush.msra.mxu0 %v316
        %880 = vmatpush.msra.mxu0 %v311
        %881 = vmatpush.msra.mxu0 %v306
        %882 = vmatmul.f32.gmra.mxu0 %v299
        %v883 = vpop.f32.mrf.mxu0
        %v884 = vadd.f32 0.0, %v883
        %885 = vdwg.mxu0
        %886 = vmatpush.msra.mxu0 %v461
        %887 = vmatpush.msra.mxu0 %v456
        %888 = vmatpush.msra.mxu0 %v451
        %889 = vmatpush.msra.mxu0 %v446
        %890 = vmatpush.msra.mxu0 %v441
        %891 = vmatpush.msra.mxu0 %v436
        %892 = vmatpush.msra.mxu0 %v431
        %893 = vmatpush.msra.mxu0 %v426
        %894 = vmatpush.msra.mxu0 %v421
        %895 = vmatpush.msra.mxu0 %v416
        %896 = vmatpush.msra.mxu0 %v411
        %897 = vmatpush.msra.mxu0 %v406
        %898 = vmatpush.msra.mxu0 %v401
        %899 = vmatpush.msra.mxu0 %v396
        %900 = vmatpush.msra.mxu0 %v391
        %901 = vmatpush.msra.mxu0 %v386
        %902 = vmatmul.f32.gmra.mxu0 %v300
        %v903 = vpop.f32.mrf.mxu0
        %v904 = vadd.f32 %v884, %v903
        %905 = vdwg.mxu0
        %906 = vmatpush.msra.mxu0 %v541
        %907 = vmatpush.msra.mxu0 %v536
        %908 = vmatpush.msra.mxu0 %v531
        %909 = vmatpush.msra.mxu0 %v526
        %910 = vmatpush.msra.mxu0 %v521
        %911 = vmatpush.msra.mxu0 %v516
        %912 = vmatpush.msra.mxu0 %v511
        %913 = vmatpush.msra.mxu0 %v506
        %914 = vmatpush.msra.mxu0 %v501
        %915 = vmatpush.msra.mxu0 %v496
        %916 = vmatpush.msra.mxu0 %v491
        %917 = vmatpush.msra.mxu0 %v486
        %918 = vmatpush.msra.mxu0 %v481
        %919 = vmatpush.msra.mxu0 %v476
        %920 = vmatpush.msra.mxu0 %v471
        %921 = vmatpush.msra.mxu0 %v466
        %922 = vmatmul.f32.gmra.mxu0 %v301
        %v923 = vpop.f32.mrf.mxu0
        %v924 = vadd.f32 %v904, %v923
        %925 = vdwg.mxu0
        %926 = vmatpush.msra.mxu0 %v621
        %927 = vmatpush.msra.mxu0 %v616
        %928 = vmatpush.msra.mxu0 %v611
        %929 = vmatpush.msra.mxu0 %v606
        %930 = vmatpush.msra.mxu0 %v601
        %931 = vmatpush.msra.mxu0 %v596
        %932 = vmatpush.msra.mxu0 %v591
        %933 = vmatpush.msra.mxu0 %v586
        %934 = vmatpush.msra.mxu0 %v581
        %935 = vmatpush.msra.mxu0 %v576
        %936 = vmatpush.msra.mxu0 %v571
        %937 = vmatpush.msra.mxu0 %v566
        %938 = vmatpush.msra.mxu0 %v561
        %939 = vmatpush.msra.mxu0 %v556
        %940 = vmatpush.msra.mxu0 %v551
        %941 = vmatpush.msra.mxu0 %v546
        %942 = vmatmul.f32.gmra.mxu0 %v302
        %v943 = vpop.f32.mrf.mxu0
        %v944 = vadd.f32 %v924, %v943
        %945 = vdwg.mxu0
        %946 = vmatpush.msra.mxu0 %v701
        %947 = vmatpush.msra.mxu0 %v696
        %948 = vmatpush.msra.mxu0 %v691
        %949 = vmatpush.msra.mxu0 %v686
        %950 = vmatpush.msra.mxu0 %v681
        %951 = vmatpush.msra.mxu0 %v676
        %952 = vmatpush.msra.mxu0 %v671
        %953 = vmatpush.msra.mxu0 %v666
        %954 = vmatpush.msra.mxu0 %v661
        %955 = vmatpush.msra.mxu0 %v656
        %956 = vmatpush.msra.mxu0 %v651
        %957 = vmatpush.msra.mxu0 %v646
        %958 = vmatpush.msra.mxu0 %v641
        %959 = vmatpush.msra.mxu0 %v636
        %960 = vmatpush.msra.mxu0 %v631
        %961 = vmatpush.msra.mxu0 %v626
        %962 = vmatmul.f32.gmra.mxu0 %v303
        %v963 = vpop.f32.mrf.mxu0
        %v964 = vadd.f32 %v944, %v963
        %965 = vdwg.mxu0
        %966 = vmatpush.msra.mxu0 %v781
        %967 = vmatpush.msra.mxu0 %v776
        %968 = vmatpush.msra.mxu0 %v771
        %969 = vmatpush.msra.mxu0 %v766
        %970 = vmatpush.msra.mxu0 %v761
        %971 = vmatpush.msra.mxu0 %v756
        %972 = vmatpush.msra.mxu0 %v751
        %973 = vmatpush.msra.mxu0 %v746
        %974 = vmatpush.msra.mxu0 %v741
        %975 = vmatpush.msra.mxu0 %v736
        %976 = vmatpush.msra.mxu0 %v731
        %977 = vmatpush.msra.mxu0 %v726
        %978 = vmatpush.msra.mxu0 %v721
        %979 = vmatpush.msra.mxu0 %v716
        %980 = vmatpush.msra.mxu0 %v711
        %981 = vmatpush.msra.mxu0 %v706
        %982 = vmatmul.f32.gmra.mxu0 %v304
        %v983 = vpop.f32.mrf.mxu0
        %v984 = vadd.f32 %v964, %v983
        %985 = vdwg.mxu0
        %986 = vmatpush.msra.mxu0 %v861
        %987 = vmatpush.msra.mxu0 %v856
        %988 = vmatpush.msra.mxu0 %v851
        %989 = vmatpush.msra.mxu0 %v846
        %990 = vmatpush.msra.mxu0 %v841
        %991 = vmatpush.msra.mxu0 %v836
        %992 = vmatpush.msra.mxu0 %v831
        %993 = vmatpush.msra.mxu0 %v826
        %994 = vmatpush.msra.mxu0 %v821
        %995 = vmatpush.msra.mxu0 %v816
        %996 = vmatpush.msra.mxu0 %v811
        %997 = vmatpush.msra.mxu0 %v806
        %998 = vmatpush.msra.mxu0 %v801
        %999 = vmatpush.msra.mxu0 %v796
        %1000 = vmatpush.msra.mxu0 %v791
        %1001 = vmatpush.msra.mxu0 %v786
        %1002 = vmatmul.f32.gmra.mxu0 %v305
        %v1003 = vpop.f32.mrf.mxu0
        %v1004 = vadd.f32 %v984, %v1003
        %1005 = vdwg.mxu0
        %1006 = vmatpush.msra.mxu0 %v382
        %1007 = vmatpush.msra.mxu0 %v377
        %1008 = vmatpush.msra.mxu0 %v372
        %1009 = vmatpush.msra.mxu0 %v367
        %1010 = vmatpush.msra.mxu0 %v362
        %1011 = vmatpush.msra.mxu0 %v357
        %1012 = vmatpush.msra.mxu0 %v352
        %1013 = vmatpush.msra.mxu0 %v347
        %1014 = vmatpush.msra.mxu0 %v342
        %1015 = vmatpush.msra.mxu0 %v337
        %1016 = vmatpush.msra.mxu0 %v332
        %1017 = vmatpush.msra.mxu0 %v327
        %1018 = vmatpush.msra.mxu0 %v322
        %1019 = vmatpush.msra.mxu0 %v317
        %1020 = vmatpush.msra.mxu0 %v312
        %1021 = vmatpush.msra.mxu0 %v307
        %1022 = vmatmul.f32.gmra.mxu0 %v299
        %v1023 = vpop.f32.mrf.mxu0
        %v1024 = vadd.f32 0.0, %v1023
        %1025 = vdwg.mxu0
        %1026 = vmatpush.msra.mxu0 %v462
        %1027 = vmatpush.msra.mxu0 %v457
        %1028 = vmatpush.msra.mxu0 %v452
        %1029 = vmatpush.msra.mxu0 %v447
        %1030 = vmatpush.msra.mxu0 %v442
        %1031 = vmatpush.msra.mxu0 %v437
        %1032 = vmatpush.msra.mxu0 %v432
        %1033 = vmatpush.msra.mxu0 %v427
        %1034 = vmatpush.msra.mxu0 %v422
        %1035 = vmatpush.msra.mxu0 %v417
        %1036 = vmatpush.msra.mxu0 %v412
        %1037 = vmatpush.msra.mxu0 %v407
        %1038 = vmatpush.msra.mxu0 %v402
        %1039 = vmatpush.msra.mxu0 %v397
        %1040 = vmatpush.msra.mxu0 %v392
        %1041 = vmatpush.msra.mxu0 %v387
        %1042 = vmatmul.f32.gmra.mxu0 %v300
        %v1043 = vpop.f32.mrf.mxu0
        %v1044 = vadd.f32 %v1024, %v1043
        %1045 = vdwg.mxu0
        %1046 = vmatpush.msra.mxu0 %v542
        %1047 = vmatpush.msra.mxu0 %v537
        %1048 = vmatpush.msra.mxu0 %v532
        %1049 = vmatpush.msra.mxu0 %v527
        %1050 = vmatpush.msra.mxu0 %v522
        %1051 = vmatpush.msra.mxu0 %v517
        %1052 = vmatpush.msra.mxu0 %v512
        %1053 = vmatpush.msra.mxu0 %v507
        %1054 = vmatpush.msra.mxu0 %v502
        %1055 = vmatpush.msra.mxu0 %v497
        %1056 = vmatpush.msra.mxu0 %v492
        %1057 = vmatpush.msra.mxu0 %v487
        %1058 = vmatpush.msra.mxu0 %v482
        %1059 = vmatpush.msra.mxu0 %v477
        %1060 = vmatpush.msra.mxu0 %v472
        %1061 = vmatpush.msra.mxu0 %v467
        %1062 = vmatmul.f32.gmra.mxu0 %v301
        %v1063 = vpop.f32.mrf.mxu0
        %v1064 = vadd.f32 %v1044, %v1063
        %1065 = vdwg.mxu0
        %1066 = vmatpush.msra.mxu0 %v622
        %1067 = vmatpush.msra.mxu0 %v617
        %1068 = vmatpush.msra.mxu0 %v612
        %1069 = vmatpush.msra.mxu0 %v607
        %1070 = vmatpush.msra.mxu0 %v602
        %1071 = vmatpush.msra.mxu0 %v597
        %1072 = vmatpush.msra.mxu0 %v592
        %1073 = vmatpush.msra.mxu0 %v587
        %1074 = vmatpush.msra.mxu0 %v582
        %1075 = vmatpush.msra.mxu0 %v577
        %1076 = vmatpush.msra.mxu0 %v572
        %1077 = vmatpush.msra.mxu0 %v567
        %1078 = vmatpush.msra.mxu0 %v562
        %1079 = vmatpush.msra.mxu0 %v557
        %1080 = vmatpush.msra.mxu0 %v552
        %1081 = vmatpush.msra.mxu0 %v547
        %1082 = vmatmul.f32.gmra.mxu0 %v302
        %v1083 = vpop.f32.mrf.mxu0
        %v1084 = vadd.f32 %v1064, %v1083
        %1085 = vdwg.mxu0
        %1086 = vmatpush.msra.mxu0 %v702
        %1087 = vmatpush.msra.mxu0 %v697
        %1088 = vmatpush.msra.mxu0 %v692
        %1089 = vmatpush.msra.mxu0 %v687
        %1090 = vmatpush.msra.mxu0 %v682
        %1091 = vmatpush.msra.mxu0 %v677
        %1092 = vmatpush.msra.mxu0 %v672
        %1093 = vmatpush.msra.mxu0 %v667
        %1094 = vmatpush.msra.mxu0 %v662
        %1095 = vmatpush.msra.mxu0 %v657
        %1096 = vmatpush.msra.mxu0 %v652
        %1097 = vmatpush.msra.mxu0 %v647
        %1098 = vmatpush.msra.mxu0 %v642
        %1099 = vmatpush.msra.mxu0 %v637
        %1100 = vmatpush.msra.mxu0 %v632
        %1101 = vmatpush.msra.mxu0 %v627
        %1102 = vmatmul.f32.gmra.mxu0 %v303
        %v1103 = vpop.f32.mrf.mxu0
        %v1104 = vadd.f32 %v1084, %v1103
        %1105 = vdwg.mxu0
        %1106 = vmatpush.msra.mxu0 %v782
        %1107 = vmatpush.msra.mxu0 %v777
        %1108 = vmatpush.msra.mxu0 %v772
        %1109 = vmatpush.msra.mxu0 %v767
        %1110 = vmatpush.msra.mxu0 %v762
        %1111 = vmatpush.msra.mxu0 %v757
        %1112 = vmatpush.msra.mxu0 %v752
        %1113 = vmatpush.msra.mxu0 %v747
        %1114 = vmatpush.msra.mxu0 %v742
        %1115 = vmatpush.msra.mxu0 %v737
        %1116 = vmatpush.msra.mxu0 %v732
        %1117 = vmatpush.msra.mxu0 %v727
        %1118 = vmatpush.msra.mxu0 %v722
        %1119 = vmatpush.msra.mxu0 %v717
        %1120 = vmatpush.msra.mxu0 %v712
        %1121 = vmatpush.msra.mxu0 %v707
        %1122 = vmatmul.f32.gmra.mxu0 %v304
        %v1123 = vpop.f32.mrf.mxu0
        %v1124 = vadd.f32 %v1104, %v1123
        %1125 = vdwg.mxu0
        %1126 = vmatpush.msra.mxu0 %v862
        %1127 = vmatpush.msra.mxu0 %v857
        %1128 = vmatpush.msra.mxu0 %v852
        %1129 = vmatpush.msra.mxu0 %v847
        %1130 = vmatpush.msra.mxu0 %v842
        %1131 = vmatpush.msra.mxu0 %v837
        %1132 = vmatpush.msra.mxu0 %v832
        %1133 = vmatpush.msra.mxu0 %v827
        %1134 = vmatpush.msra.mxu0 %v822
        %1135 = vmatpush.msra.mxu0 %v817
        %1136 = vmatpush.msra.mxu0 %v812
        %1137 = vmatpush.msra.mxu0 %v807
        %1138 = vmatpush.msra.mxu0 %v802
        %1139 = vmatpush.msra.mxu0 %v797
        %1140 = vmatpush.msra.mxu0 %v792
        %1141 = vmatpush.msra.mxu0 %v787
        %1142 = vmatmul.f32.gmra.mxu0 %v305
        %v1143 = vpop.f32.mrf.mxu0
        %v1144 = vadd.f32 %v1124, %v1143
        %1145 = vdwg.mxu0
        %1146 = vmatpush.msra.mxu0 %v383
        %1147 = vmatpush.msra.mxu0 %v378
        %1148 = vmatpush.msra.mxu0 %v373
        %1149 = vmatpush.msra.mxu0 %v368
        %1150 = vmatpush.msra.mxu0 %v363
        %1151 = vmatpush.msra.mxu0 %v358
        %1152 = vmatpush.msra.mxu0 %v353
        %1153 = vmatpush.msra.mxu0 %v348
        %1154 = vmatpush.msra.mxu0 %v343
        %1155 = vmatpush.msra.mxu0 %v338
        %1156 = vmatpush.msra.mxu0 %v333
        %1157 = vmatpush.msra.mxu0 %v328
        %1158 = vmatpush.msra.mxu0 %v323
        %1159 = vmatpush.msra.mxu0 %v318
        %1160 = vmatpush.msra.mxu0 %v313
        %1161 = vmatpush.msra.mxu0 %v308
        %1162 = vmatmul.f32.gmra.mxu0 %v299
        %v1163 = vpop.f32.mrf.mxu0
        %v1164 = vadd.f32 0.0, %v1163
        %1165 = vdwg.mxu0
        %1166 = vmatpush.msra.mxu0 %v463
        %1167 = vmatpush.msra.mxu0 %v458
        %1168 = vmatpush.msra.mxu0 %v453
        %1169 = vmatpush.msra.mxu0 %v448
        %1170 = vmatpush.msra.mxu0 %v443
        %1171 = vmatpush.msra.mxu0 %v438
        %1172 = vmatpush.msra.mxu0 %v433
        %1173 = vmatpush.msra.mxu0 %v428
        %1174 = vmatpush.msra.mxu0 %v423
        %1175 = vmatpush.msra.mxu0 %v418
        %1176 = vmatpush.msra.mxu0 %v413
        %1177 = vmatpush.msra.mxu0 %v408
        %1178 = vmatpush.msra.mxu0 %v403
        %1179 = vmatpush.msra.mxu0 %v398
        %1180 = vmatpush.msra.mxu0 %v393
        %1181 = vmatpush.msra.mxu0 %v388
        %1182 = vmatmul.f32.gmra.mxu0 %v300
        %v1183 = vpop.f32.mrf.mxu0
        %v1184 = vadd.f32 %v1164, %v1183
        %1185 = vdwg.mxu0
        %1186 = vmatpush.msra.mxu0 %v543
        %1187 = vmatpush.msra.mxu0 %v538
        %1188 = vmatpush.msra.mxu0 %v533
        %1189 = vmatpush.msra.mxu0 %v528
        %1190 = vmatpush.msra.mxu0 %v523
        %1191 = vmatpush.msra.mxu0 %v518
        %1192 = vmatpush.msra.mxu0 %v513
        %1193 = vmatpush.msra.mxu0 %v508
        %1194 = vmatpush.msra.mxu0 %v503
        %1195 = vmatpush.msra.mxu0 %v498
        %1196 = vmatpush.msra.mxu0 %v493
        %1197 = vmatpush.msra.mxu0 %v488
        %1198 = vmatpush.msra.mxu0 %v483
        %1199 = vmatpush.msra.mxu0 %v478
        %1200 = vmatpush.msra.mxu0 %v473
        %1201 = vmatpush.msra.mxu0 %v468
        %1202 = vmatmul.f32.gmra.mxu0 %v301
        %v1203 = vpop.f32.mrf.mxu0
        %v1204 = vadd.f32 %v1184, %v1203
        %1205 = vdwg.mxu0
        %1206 = vmatpush.msra.mxu0 %v623
        %1207 = vmatpush.msra.mxu0 %v618
        %1208 = vmatpush.msra.mxu0 %v613
        %1209 = vmatpush.msra.mxu0 %v608
        %1210 = vmatpush.msra.mxu0 %v603
        %1211 = vmatpush.msra.mxu0 %v598
        %1212 = vmatpush.msra.mxu0 %v593
        %1213 = vmatpush.msra.mxu0 %v588
        %1214 = vmatpush.msra.mxu0 %v583
        %1215 = vmatpush.msra.mxu0 %v578
        %1216 = vmatpush.msra.mxu0 %v573
        %1217 = vmatpush.msra.mxu0 %v568
        %1218 = vmatpush.msra.mxu0 %v563
        %1219 = vmatpush.msra.mxu0 %v558
        %1220 = vmatpush.msra.mxu0 %v553
        %1221 = vmatpush.msra.mxu0 %v548
        %1222 = vmatmul.f32.gmra.mxu0 %v302
        %v1223 = vpop.f32.mrf.mxu0
        %v1224 = vadd.f32 %v1204, %v1223
        %1225 = vdwg.mxu0
        %1226 = vmatpush.msra.mxu0 %v703
        %1227 = vmatpush.msra.mxu0 %v698
        %1228 = vmatpush.msra.mxu0 %v693
        %1229 = vmatpush.msra.mxu0 %v688
        %1230 = vmatpush.msra.mxu0 %v683
        %1231 = vmatpush.msra.mxu0 %v678
        %1232 = vmatpush.msra.mxu0 %v673
        %1233 = vmatpush.msra.mxu0 %v668
        %1234 = vmatpush.msra.mxu0 %v663
        %1235 = vmatpush.msra.mxu0 %v658
        %1236 = vmatpush.msra.mxu0 %v653
        %1237 = vmatpush.msra.mxu0 %v648
        %1238 = vmatpush.msra.mxu0 %v643
        %1239 = vmatpush.msra.mxu0 %v638
        %1240 = vmatpush.msra.mxu0 %v633
        %1241 = vmatpush.msra.mxu0 %v628
        %1242 = vmatmul.f32.gmra.mxu0 %v303
        %v1243 = vpop.f32.mrf.mxu0
        %v1244 = vadd.f32 %v1224, %v1243
        %1245 = vdwg.mxu0
        %1246 = vmatpush.msra.mxu0 %v783
        %1247 = vmatpush.msra.mxu0 %v778
        %1248 = vmatpush.msra.mxu0 %v773
        %1249 = vmatpush.msra.mxu0 %v768
        %1250 = vmatpush.msra.mxu0 %v763
        %1251 = vmatpush.msra.mxu0 %v758
        %1252 = vmatpush.msra.mxu0 %v753
        %1253 = vmatpush.msra.mxu0 %v748
        %1254 = vmatpush.msra.mxu0 %v743
        %1255 = vmatpush.msra.mxu0 %v738
        %1256 = vmatpush.msra.mxu0 %v733
        %1257 = vmatpush.msra.mxu0 %v728
        %1258 = vmatpush.msra.mxu0 %v723
        %1259 = vmatpush.msra.mxu0 %v718
        %1260 = vmatpush.msra.mxu0 %v713
        %1261 = vmatpush.msra.mxu0 %v708
        %1262 = vmatmul.f32.gmra.mxu0 %v304
        %v1263 = vpop.f32.mrf.mxu0
        %v1264 = vadd.f32 %v1244, %v1263
        %1265 = vdwg.mxu0
        %1266 = vmatpush.msra.mxu0 %v863
        %1267 = vmatpush.msra.mxu0 %v858
        %1268 = vmatpush.msra.mxu0 %v853
        %1269 = vmatpush.msra.mxu0 %v848
        %1270 = vmatpush.msra.mxu0 %v843
        %1271 = vmatpush.msra.mxu0 %v838
        %1272 = vmatpush.msra.mxu0 %v833
        %1273 = vmatpush.msra.mxu0 %v828
        %1274 = vmatpush.msra.mxu0 %v823
        %1275 = vmatpush.msra.mxu0 %v818
        %1276 = vmatpush.msra.mxu0 %v813
        %1277 = vmatpush.msra.mxu0 %v808
        %1278 = vmatpush.msra.mxu0 %v803
        %1279 = vmatpush.msra.mxu0 %v798
        %1280 = vmatpush.msra.mxu0 %v793
        %1281 = vmatpush.msra.mxu0 %v788
        %1282 = vmatmul.f32.gmra.mxu0 %v305
        %v1283 = vpop.f32.mrf.mxu0
        %v1284 = vadd.f32 %v1264, %v1283
        %1285 = vdwg.mxu0
        %1286 = vmatpush.msra.mxu0 %v384
        %1287 = vmatpush.msra.mxu0 %v379
        %1288 = vmatpush.msra.mxu0 %v374
        %1289 = vmatpush.msra.mxu0 %v369
        %1290 = vmatpush.msra.mxu0 %v364
        %1291 = vmatpush.msra.mxu0 %v359
        %1292 = vmatpush.msra.mxu0 %v354
        %1293 = vmatpush.msra.mxu0 %v349
        %1294 = vmatpush.msra.mxu0 %v344
        %1295 = vmatpush.msra.mxu0 %v339
        %1296 = vmatpush.msra.mxu0 %v334
        %1297 = vmatpush.msra.mxu0 %v329
        %1298 = vmatpush.msra.mxu0 %v324
        %1299 = vmatpush.msra.mxu0 %v319
        %1300 = vmatpush.msra.mxu0 %v314
        %1301 = vmatpush.msra.mxu0 %v309
        %1302 = vmatmul.f32.gmra.mxu0 %v299
        %v1303 = vpop.f32.mrf.mxu0
        %v1304 = vadd.f32 0.0, %v1303
        %1305 = vdwg.mxu0
        %1306 = vmatpush.msra.mxu0 %v464
        %1307 = vmatpush.msra.mxu0 %v459
        %1308 = vmatpush.msra.mxu0 %v454
        %1309 = vmatpush.msra.mxu0 %v449
        %1310 = vmatpush.msra.mxu0 %v444
        %1311 = vmatpush.msra.mxu0 %v439
        %1312 = vmatpush.msra.mxu0 %v434
        %1313 = vmatpush.msra.mxu0 %v429
        %1314 = vmatpush.msra.mxu0 %v424
        %1315 = vmatpush.msra.mxu0 %v419
        %1316 = vmatpush.msra.mxu0 %v414
        %1317 = vmatpush.msra.mxu0 %v409
        %1318 = vmatpush.msra.mxu0 %v404
        %1319 = vmatpush.msra.mxu0 %v399
        %1320 = vmatpush.msra.mxu0 %v394
        %1321 = vmatpush.msra.mxu0 %v389
        %1322 = vmatmul.f32.gmra.mxu0 %v300
        %v1323 = vpop.f32.mrf.mxu0
        %v1324 = vadd.f32 %v1304, %v1323
        %1325 = vdwg.mxu0
        %1326 = vmatpush.msra.mxu0 %v544
        %1327 = vmatpush.msra.mxu0 %v539
        %1328 = vmatpush.msra.mxu0 %v534
        %1329 = vmatpush.msra.mxu0 %v529
        %1330 = vmatpush.msra.mxu0 %v524
        %1331 = vmatpush.msra.mxu0 %v519
        %1332 = vmatpush.msra.mxu0 %v514
        %1333 = vmatpush.msra.mxu0 %v509
        %1334 = vmatpush.msra.mxu0 %v504
        %1335 = vmatpush.msra.mxu0 %v499
        %1336 = vmatpush.msra.mxu0 %v494
        %1337 = vmatpush.msra.mxu0 %v489
        %1338 = vmatpush.msra.mxu0 %v484
        %1339 = vmatpush.msra.mxu0 %v479
        %1340 = vmatpush.msra.mxu0 %v474
        %1341 = vmatpush.msra.mxu0 %v469
        %1342 = vmatmul.f32.gmra.mxu0 %v301
        %v1343 = vpop.f32.mrf.mxu0
        %v1344 = vadd.f32 %v1324, %v1343
        %1345 = vdwg.mxu0
        %1346 = vmatpush.msra.mxu0 %v624
        %1347 = vmatpush.msra.mxu0 %v619
        %1348 = vmatpush.msra.mxu0 %v614
        %1349 = vmatpush.msra.mxu0 %v609
        %1350 = vmatpush.msra.mxu0 %v604
        %1351 = vmatpush.msra.mxu0 %v599
        %1352 = vmatpush.msra.mxu0 %v594
        %1353 = vmatpush.msra.mxu0 %v589
        %1354 = vmatpush.msra.mxu0 %v584
        %1355 = vmatpush.msra.mxu0 %v579
        %1356 = vmatpush.msra.mxu0 %v574
        %1357 = vmatpush.msra.mxu0 %v569
        %1358 = vmatpush.msra.mxu0 %v564
        %1359 = vmatpush.msra.mxu0 %v559
        %1360 = vmatpush.msra.mxu0 %v554
        %1361 = vmatpush.msra.mxu0 %v549
        %1362 = vmatmul.f32.gmra.mxu0 %v302
        %v1363 = vpop.f32.mrf.mxu0
        %v1364 = vadd.f32 %v1344, %v1363
        %1365 = vdwg.mxu0
        %1366 = vmatpush.msra.mxu0 %v704
        %1367 = vmatpush.msra.mxu0 %v699
        %1368 = vmatpush.msra.mxu0 %v694
        %1369 = vmatpush.msra.mxu0 %v689
        %1370 = vmatpush.msra.mxu0 %v684
        %1371 = vmatpush.msra.mxu0 %v679
        %1372 = vmatpush.msra.mxu0 %v674
        %1373 = vmatpush.msra.mxu0 %v669
        %1374 = vmatpush.msra.mxu0 %v664
        %1375 = vmatpush.msra.mxu0 %v659
        %1376 = vmatpush.msra.mxu0 %v654
        %1377 = vmatpush.msra.mxu0 %v649
        %1378 = vmatpush.msra.mxu0 %v644
        %1379 = vmatpush.msra.mxu0 %v639
        %1380 = vmatpush.msra.mxu0 %v634
        %1381 = vmatpush.msra.mxu0 %v629
        %1382 = vmatmul.f32.gmra.mxu0 %v303
        %v1383 = vpop.f32.mrf.mxu0
        %v1384 = vadd.f32 %v1364, %v1383
        %1385 = vdwg.mxu0
        %1386 = vmatpush.msra.mxu0 %v784
        %1387 = vmatpush.msra.mxu0 %v779
        %1388 = vmatpush.msra.mxu0 %v774
        %1389 = vmatpush.msra.mxu0 %v769
        %1390 = vmatpush.msra.mxu0 %v764
        %1391 = vmatpush.msra.mxu0 %v759
        %1392 = vmatpush.msra.mxu0 %v754
        %1393 = vmatpush.msra.mxu0 %v749
        %1394 = vmatpush.msra.mxu0 %v744
        %1395 = vmatpush.msra.mxu0 %v739
        %1396 = vmatpush.msra.mxu0 %v734
        %1397 = vmatpush.msra.mxu0 %v729
        %1398 = vmatpush.msra.mxu0 %v724
        %1399 = vmatpush.msra.mxu0 %v719
        %1400 = vmatpush.msra.mxu0 %v714
        %1401 = vmatpush.msra.mxu0 %v709
        %1402 = vmatmul.f32.gmra.mxu0 %v304
        %v1403 = vpop.f32.mrf.mxu0
        %v1404 = vadd.f32 %v1384, %v1403
        %1405 = vdwg.mxu0
        %1406 = vmatpush.msra.mxu0 %v864
        %1407 = vmatpush.msra.mxu0 %v859
        %1408 = vmatpush.msra.mxu0 %v854
        %1409 = vmatpush.msra.mxu0 %v849
        %1410 = vmatpush.msra.mxu0 %v844
        %1411 = vmatpush.msra.mxu0 %v839
        %1412 = vmatpush.msra.mxu0 %v834
        %1413 = vmatpush.msra.mxu0 %v829
        %1414 = vmatpush.msra.mxu0 %v824
        %1415 = vmatpush.msra.mxu0 %v819
        %1416 = vmatpush.msra.mxu0 %v814
        %1417 = vmatpush.msra.mxu0 %v809
        %1418 = vmatpush.msra.mxu0 %v804
        %1419 = vmatpush.msra.mxu0 %v799
        %1420 = vmatpush.msra.mxu0 %v794
        %1421 = vmatpush.msra.mxu0 %v789
        %1422 = vmatmul.f32.gmra.mxu0 %v305
        %v1423 = vpop.f32.mrf.mxu0
        %v1424 = vadd.f32 %v1404, %v1423
        %1425 = vdwg.mxu0
        %1426 = vmatpush.msra.mxu0 %v385
        %1427 = vmatpush.msra.mxu0 %v380
        %1428 = vmatpush.msra.mxu0 %v375
        %1429 = vmatpush.msra.mxu0 %v370
        %1430 = vmatpush.msra.mxu0 %v365
        %1431 = vmatpush.msra.mxu0 %v360
        %1432 = vmatpush.msra.mxu0 %v355
        %1433 = vmatpush.msra.mxu0 %v350
        %1434 = vmatpush.msra.mxu0 %v345
        %1435 = vmatpush.msra.mxu0 %v340
        %1436 = vmatpush.msra.mxu0 %v335
        %1437 = vmatpush.msra.mxu0 %v330
        %1438 = vmatpush.msra.mxu0 %v325
        %1439 = vmatpush.msra.mxu0 %v320
        %1440 = vmatpush.msra.mxu0 %v315
        %1441 = vmatpush.msra.mxu0 %v310
        %1442 = vmatmul.f32.gmra.mxu0 %v299
        %v1443 = vpop.f32.mrf.mxu0
        %v1444 = vadd.f32 0.0, %v1443
        %1445 = vdwg.mxu0
        %1446 = vmatpush.msra.mxu0 %v465
        %1447 = vmatpush.msra.mxu0 %v460
        %1448 = vmatpush.msra.mxu0 %v455
        %1449 = vmatpush.msra.mxu0 %v450
        %1450 = vmatpush.msra.mxu0 %v445
        %1451 = vmatpush.msra.mxu0 %v440
        %1452 = vmatpush.msra.mxu0 %v435
        %1453 = vmatpush.msra.mxu0 %v430
        %1454 = vmatpush.msra.mxu0 %v425
        %1455 = vmatpush.msra.mxu0 %v420
        %1456 = vmatpush.msra.mxu0 %v415
        %1457 = vmatpush.msra.mxu0 %v410
        %1458 = vmatpush.msra.mxu0 %v405
        %1459 = vmatpush.msra.mxu0 %v400
        %1460 = vmatpush.msra.mxu0 %v395
        %1461 = vmatpush.msra.mxu0 %v390
        %1462 = vmatmul.f32.gmra.mxu0 %v300
        %v1463 = vpop.f32.mrf.mxu0
        %v1464 = vadd.f32 %v1444, %v1463
        %1465 = vdwg.mxu0
        %1466 = vmatpush.msra.mxu0 %v545
        %1467 = vmatpush.msra.mxu0 %v540
        %1468 = vmatpush.msra.mxu0 %v535
        %1469 = vmatpush.msra.mxu0 %v530
        %1470 = vmatpush.msra.mxu0 %v525
        %1471 = vmatpush.msra.mxu0 %v520
        %1472 = vmatpush.msra.mxu0 %v515
        %1473 = vmatpush.msra.mxu0 %v510
        %1474 = vmatpush.msra.mxu0 %v505
        %1475 = vmatpush.msra.mxu0 %v500
        %1476 = vmatpush.msra.mxu0 %v495
        %1477 = vmatpush.msra.mxu0 %v490
        %1478 = vmatpush.msra.mxu0 %v485
        %1479 = vmatpush.msra.mxu0 %v480
        %1480 = vmatpush.msra.mxu0 %v475
        %1481 = vmatpush.msra.mxu0 %v470
        %1482 = vmatmul.f32.gmra.mxu0 %v301
        %v1483 = vpop.f32.mrf.mxu0
        %v1484 = vadd.f32 %v1464, %v1483
        %1485 = vdwg.mxu0
        %1486 = vmatpush.msra.mxu0 %v625
        %1487 = vmatpush.msra.mxu0 %v620
        %1488 = vmatpush.msra.mxu0 %v615
        %1489 = vmatpush.msra.mxu0 %v610
        %1490 = vmatpush.msra.mxu0 %v605
        %1491 = vmatpush.msra.mxu0 %v600
        %1492 = vmatpush.msra.mxu0 %v595
        %1493 = vmatpush.msra.mxu0 %v590
        %1494 = vmatpush.msra.mxu0 %v585
        %1495 = vmatpush.msra.mxu0 %v580
        %1496 = vmatpush.msra.mxu0 %v575
        %1497 = vmatpush.msra.mxu0 %v570
        %1498 = vmatpush.msra.mxu0 %v565
        %1499 = vmatpush.msra.mxu0 %v560
        %1500 = vmatpush.msra.mxu0 %v555
        %1501 = vmatpush.msra.mxu0 %v550
        %1502 = vmatmul.f32.gmra.mxu0 %v302
        %v1503 = vpop.f32.mrf.mxu0
        %v1504 = vadd.f32 %v1484, %v1503
        %1505 = vdwg.mxu0
        %1506 = vmatpush.msra.mxu0 %v705
        %1507 = vmatpush.msra.mxu0 %v700
        %1508 = vmatpush.msra.mxu0 %v695
        %1509 = vmatpush.msra.mxu0 %v690
        %1510 = vmatpush.msra.mxu0 %v685
        %1511 = vmatpush.msra.mxu0 %v680
        %1512 = vmatpush.msra.mxu0 %v675
        %1513 = vmatpush.msra.mxu0 %v670
        %1514 = vmatpush.msra.mxu0 %v665
        %1515 = vmatpush.msra.mxu0 %v660
        %1516 = vmatpush.msra.mxu0 %v655
        %1517 = vmatpush.msra.mxu0 %v650
        %1518 = vmatpush.msra.mxu0 %v645
        %1519 = vmatpush.msra.mxu0 %v640
        %1520 = vmatpush.msra.mxu0 %v635
        %1521 = vmatpush.msra.mxu0 %v630
        %1522 = vmatmul.f32.gmra.mxu0 %v303
        %v1523 = vpop.f32.mrf.mxu0
        %v1524 = vadd.f32 %v1504, %v1523
        %1525 = vdwg.mxu0
        %1526 = vmatpush.msra.mxu0 %v785
        %1527 = vmatpush.msra.mxu0 %v780
        %1528 = vmatpush.msra.mxu0 %v775
        %1529 = vmatpush.msra.mxu0 %v770
        %1530 = vmatpush.msra.mxu0 %v765
        %1531 = vmatpush.msra.mxu0 %v760
        %1532 = vmatpush.msra.mxu0 %v755
        %1533 = vmatpush.msra.mxu0 %v750
        %1534 = vmatpush.msra.mxu0 %v745
        %1535 = vmatpush.msra.mxu0 %v740
        %1536 = vmatpush.msra.mxu0 %v735
        %1537 = vmatpush.msra.mxu0 %v730
        %1538 = vmatpush.msra.mxu0 %v725
        %1539 = vmatpush.msra.mxu0 %v720
        %1540 = vmatpush.msra.mxu0 %v715
        %1541 = vmatpush.msra.mxu0 %v710
        %1542 = vmatmul.f32.gmra.mxu0 %v304
        %v1543 = vpop.f32.mrf.mxu0
        %v1544 = vadd.f32 %v1524, %v1543
        %1545 = vdwg.mxu0
        %1546 = vmatpush.msra.mxu0 %v865
        %1547 = vmatpush.msra.mxu0 %v860
        %1548 = vmatpush.msra.mxu0 %v855
        %1549 = vmatpush.msra.mxu0 %v850
        %1550 = vmatpush.msra.mxu0 %v845
        %1551 = vmatpush.msra.mxu0 %v840
        %1552 = vmatpush.msra.mxu0 %v835
        %1553 = vmatpush.msra.mxu0 %v830
        %1554 = vmatpush.msra.mxu0 %v825
        %1555 = vmatpush.msra.mxu0 %v820
        %1556 = vmatpush.msra.mxu0 %v815
        %1557 = vmatpush.msra.mxu0 %v810
        %1558 = vmatpush.msra.mxu0 %v805
        %1559 = vmatpush.msra.mxu0 %v800
        %1560 = vmatpush.msra.mxu0 %v795
        %1561 = vmatpush.msra.mxu0 %v790
        %1562 = vmatmul.f32.gmra.mxu0 %v305
        %v1563 = vpop.f32.mrf.mxu0
        %v1564 = vadd.f32 %v1544, %v1563
        %1565 = vdwg.mxu0
        %v1566 = vadd.f32 %v294, %v1004
        %v1567 = vadd.f32 %v295, %v1144
        %v1568 = vadd.f32 %v296, %v1284
        %v1569 = vadd.f32 %v297, %v1424
        %v1570 = vadd.f32 %v298, %v1564
        %1571 = vst [vmem:[#allocation2] sm:$0xff] %v1566
        %1572 = vst [vmem:[#allocation2 + $0x8] sm:$0xff] %v1567
        %1573 = vst [vmem:[#allocation2 + $0x10] sm:$0xff] %v1568
        %1574 = vst [vmem:[#allocation2 + $0x18] sm:$0xff] %v1569
        %1575 = vst [vmem:[#allocation2 + $0x20] sm:$0xff] %v1570
        %p1576 = scmp.eq.s32.totalorder %s24, 6
        // Predicated region
        $region41: #{cnn_forward.10} parent=31 // pred_check
          %p1577 = pneg %p1576
        $region42: #{cnn_forward.10} parent=31 // pred_check_branch
          %1579 = sbr.rel (%p1577) target = $region44
        $region43: #{cnn_forward.10} parent=31 // pred_region
          %v1580 = vld [vmem:[#allocation2] sm:$0xff]
          %v1581 = vld [vmem:[#allocation2 + $0x8] sm:$0xff]
          %v1582 = vld [vmem:[#allocation2 + $0x10] sm:$0xff]
          %v1583 = vld [vmem:[#allocation2 + $0x18] sm:$0xff]
          %v1584 = vld [vmem:[#allocation2 + $0x20] sm:$0xff]
          %v1585 = vld [vmem:[%s273] sm:$0x1f]
          %v1587 = vperm.slane %v1585, 0
          %v1588 = vperm.slane %v1585, 1
          %v1589 = vperm.slane %v1585, 2
          %v1590 = vperm.slane %v1585, 3
          %v1591 = vperm.slane %v1585, 4
          %v1597 = vadd.f32 %v1580, %v1587
          %v1598 = vadd.f32 %v1581, %v1588
          %v1599 = vadd.f32 %v1582, %v1589
          %v1600 = vadd.f32 %v1583, %v1590
          %v1601 = vadd.f32 %v1584, %v1591
          %v1602 = vmax.f32 %v1597, 0.0
          %v1603 = vmax.f32 %v1598, 0.0
          %v1604 = vmax.f32 %v1599, 0.0
          %v1605 = vmax.f32 %v1600, 0.0
          %v1606 = vmax.f32 %v1601, 0.0
          %1607 = vst [vmem:[%s283] sm:$0xff] %v1602
          %1608 = vst [vmem:[%s283 + $0x8] sm:$0xff] %v1603
          %1609 = vst [vmem:[%s283 + $0x10] sm:$0xff] %v1604
          %1610 = vst [vmem:[%s283 + $0x18] sm:$0xff] %v1605
          %1611 = vst [vmem:[%s283 + $0x20] sm:$0xff] %v1606
        $region44: #{cnn_forward.10} parent=31 // pred_fallthru
          _
        %s1612 = smul.u32 5, %s23
        %p1613 = scmp.lt.s32.totalorder %s22, 0
        %s1614 = scalar_select %p1613, %s22, 0
        %p1615 = scmp.lt.s32.totalorder %s1612, 24
        %s1616 = scalar_select %p1615, %s1612, 24
        %s1617 = smul.addr %s1614, 25
        %s1618 = sadd.s32 %s1616, %s1617
        %s1619 = smul.addr %s1618, 8
        %s1620 = scalar_lea.vmem %s3, %s1619
        // Predicated region
        $region45: #{cnn_forward.10} parent=31 // pred_check
          %p1621 = pneg %p138
        $region46: #{cnn_forward.10} parent=31 // pred_check_branch
          %1623 = sbr.rel (%p1621) target = $region48
        $region47: #{cnn_forward.10} parent=31 // pred_region
          %s1624 = smul.u32 5, %s23
        $region48: #{cnn_forward.10} parent=31 // pred_fallthru
          _
      $region32: #{cnn_forward.10} parent=5 // pred_fallthru
        _
      %p1625 = scmp.le.s32.totalorder 2, %s12
      // Predicated region
      $region49: #{cnn_forward.10} parent=5 // pred_check
        %p1626 = pneg %p1625
      $region50: #{cnn_forward.10} parent=5 // pred_check_branch
        %1628 = sbr.rel (%p1626) target = $region52
      $region51: #{cnn_forward.10} parent=5 // pred_region
        %s1629 = ssub.s32 %s12, 2
        // Predicated region
        $region53: #{cnn_forward.10} parent=51 // pred_check
          %p1630 = pneg %p144
        $region54: #{cnn_forward.10} parent=51 // pred_check_branch
          %1632 = sbr.rel (%p1630) target = $region56
        $region55: #{cnn_forward.10} parent=51 // pred_region
          %s1633 = smul.u32 5, %s26
          %p1634 = scmp.lt.s32.totalorder %s25, 0
          %s1635 = scalar_select %p1634, %s25, 0
          %p1636 = scmp.lt.s32.totalorder %s1633, 24
          %s1637 = scalar_select %p1636, %s1633, 24
          %s1638 = smul.addr %s1635, 25
          %s1639 = sadd.s32 %s1637, %s1638
          %s1640 = smul.addr %s1639, 8
          %s1641 = scalar_lea.vmem %s3, %s1640
        $region56: #{cnn_forward.10} parent=51 // pred_fallthru
          _
      $region52: #{cnn_forward.10} parent=5 // pred_fallthru
        _
    $region6: #{cnn_forward.10} parent=1 // loop_footer
      %s16 = sadd.s32 1, %s12
    $region7: #{cnn_forward.10} parent=1 // loop_footer_branch
      %11 = sbr.rel target = $region3
    $region8: #{cnn_forward.10} parent=1 // loop_exit
      _
    %1642 = vsyncpa [#allocation4], 1
    %s1643 = scalar_lea.sflag [#allocation4], 1
    %1644 = vsyncpa %s1643, 1

// kernel: cnn_forward.11
$region0: #{cnn_forward.11}
  #allocation0 [shape = 'u32[]', space=smem, size = 0x4, offset = 0x4, fixed_abs, tag = 'smem constant byte address 0x4 - core index']
  #allocation1 [shape = 'u32[72,128]{1,0:T(1,128)}', space=vmem, size = 0x9000, scoped, tag = 'internal scratch']
  %s0 = inlined_call_operand.vmem [shape: f32[8,3136], index: 0, kind: input, shape index: {}]
  %s1 = inlined_call_operand.vmem [shape: f32[3136,10], index: 1, kind: input, shape index: {}]
  %s2 = inlined_call_operand.vmem [shape: f32[1,10], index: 2, kind: input, shape index: {}]
  %s3 = inlined_call_operand.vmem [shape: f32[8,10], index: 3, kind: output, shape index: {}]
  %s4 = sld [smem:[#allocation0]]
  $region22: #{cnn_forward.11} parent=0
    _
  %s6 = ssub.s32 1, %s4
  %s7 = scalar_select 0, %s6, %s4
  // Predicated region
  $region2: #{cnn_forward.11} parent=0 // pred_check
    _
  $region3: #{cnn_forward.11} parent=0 // pred_check_branch
    %9 = sbr.rel (0) target = $region5
  $region4: #{cnn_forward.11} parent=0 // pred_region
    _
  $region5: #{cnn_forward.11} parent=0 // pred_fallthru
    _
  // Predicated region
  $region6: #{cnn_forward.11} parent=0 // pred_check
    _
  $region7: #{cnn_forward.11} parent=0 // pred_check_branch
    %11 = sbr.rel (0) target = $region9
  $region8: #{cnn_forward.11} parent=0 // pred_region
    _
  $region9: #{cnn_forward.11} parent=0 // pred_fallthru
    _
  // Predicated region
  $region10: #{cnn_forward.11} parent=0 // pred_check
    _
  $region11: #{cnn_forward.11} parent=0 // pred_check_branch
    %13 = sbr.rel (0) target = $region13
  $region12: #{cnn_forward.11} parent=0 // pred_region
    _
  $region13: #{cnn_forward.11} parent=0 // pred_fallthru
    _
  %v14 = vld [vmem:[%s0] sm:$0xff]
  %v15 = vld [vmem:[%s0 + $0x8] sm:$0xff]
  %v16 = vld [vmem:[%s0 + $0x10] sm:$0xff]
  %v17 = vld [vmem:[%s0 + $0x18] sm:$0xff]
  %v18 = vld [vmem:[%s0 + $0x20] sm:$0xff]
  %v19 = vld [vmem:[%s0 + $0x28] sm:$0xff]
  %v20 = vld [vmem:[%s0 + $0x30] sm:$0xff]
  %v21 = vld [vmem:[%s0 + $0x38] sm:$0xff]
  %v22 = vld [vmem:[%s0 + $0x40] sm:$0xff]
  %v23 = vld [vmem:[%s0 + $0x48] sm:$0xff]
  %v24 = vld [vmem:[%s0 + $0x50] sm:$0xff]
  %v25 = vld [vmem:[%s0 + $0x58] sm:$0xff]
  %v26 = vld [vmem:[%s0 + $0x60] sm:$0xff]
  %v27 = vld [vmem:[%s0 + $0x68] sm:$0xff]
  %v28 = vld [vmem:[%s0 + $0x70] sm:$0xff]
  %v29 = vld [vmem:[%s0 + $0x78] sm:$0xff]
  %v30 = vld [vmem:[%s0 + $0x80] sm:$0xff]
  %v31 = vld [vmem:[%s0 + $0x88] sm:$0xff]
  %v32 = vld [vmem:[%s0 + $0x90] sm:$0xff]
  %v33 = vld [vmem:[%s0 + $0x98] sm:$0xff]
  %v34 = vld [vmem:[%s0 + $0xa0] sm:$0xff]
  %v35 = vld [vmem:[%s0 + $0xa8] sm:$0xff]
  %v36 = vld [vmem:[%s0 + $0xb0] sm:$0xff]
  %v37 = vld [vmem:[%s0 + $0xb8] sm:$0xff]
  %v38 = vld [vmem:[%s0 + $0xc0] sm:$0xff]
  %v39 = vld [vmem:[%s1] sm:$0xff]
  %v40 = vld [vmem:[%s1 + $0x8] sm:$0xff]
  %v41 = vld [vmem:[%s1 + $0x10] sm:$0xff]
  %v42 = vld [vmem:[%s1 + $0x18] sm:$0xff]
  %v43 = vld [vmem:[%s1 + $0x20] sm:$0xff]
  %v44 = vld [vmem:[%s1 + $0x28] sm:$0xff]
  %v45 = vld [vmem:[%s1 + $0x30] sm:$0xff]
  %v46 = vld [vmem:[%s1 + $0x38] sm:$0xff]
  %v47 = vld [vmem:[%s1 + $0x40] sm:$0xff]
  %v48 = vld [vmem:[%s1 + $0x48] sm:$0xff]
  %v49 = vld [vmem:[%s1 + $0x50] sm:$0xff]
  %v50 = vld [vmem:[%s1 + $0x58] sm:$0xff]
  %v51 = vld [vmem:[%s1 + $0x60] sm:$0xff]
  %v52 = vld [vmem:[%s1 + $0x68] sm:$0xff]
  %v53 = vld [vmem:[%s1 + $0x70] sm:$0xff]
  %v54 = vld [vmem:[%s1 + $0x78] sm:$0xff]
  %v55 = vld [vmem:[%s1 + $0x80] sm:$0xff]
  %v56 = vld [vmem:[%s1 + $0x88] sm:$0xff]
  %v57 = vld [vmem:[%s1 + $0x90] sm:$0xff]
  %v58 = vld [vmem:[%s1 + $0x98] sm:$0xff]
  %v59 = vld [vmem:[%s1 + $0xa0] sm:$0xff]
  %v60 = vld [vmem:[%s1 + $0xa8] sm:$0xff]
  %v61 = vld [vmem:[%s1 + $0xb0] sm:$0xff]
  %v62 = vld [vmem:[%s1 + $0xb8] sm:$0xff]
  %v63 = vld [vmem:[%s1 + $0xc0] sm:$0xff]
  %v64 = vld [vmem:[%s1 + $0xc8] sm:$0xff]
  %v65 = vld [vmem:[%s1 + $0xd0] sm:$0xff]
  %v66 = vld [vmem:[%s1 + $0xd8] sm:$0xff]
  %v67 = vld [vmem:[%s1 + $0xe0] sm:$0xff]
  %v68 = vld [vmem:[%s1 + $0xe8] sm:$0xff]
  %v69 = vld [vmem:[%s1 + $0xf0] sm:$0xff]
  %v70 = vld [vmem:[%s1 + $0xf8] sm:$0xff]
  %v71 = vld [vmem:[%s1 + $0x100] sm:$0xff]
  %v72 = vld [vmem:[%s1 + $0x108] sm:$0xff]
  %v73 = vld [vmem:[%s1 + $0x110] sm:$0xff]
  %v74 = vld [vmem:[%s1 + $0x118] sm:$0xff]
  %v75 = vld [vmem:[%s1 + $0x120] sm:$0xff]
  %v76 = vld [vmem:[%s1 + $0x128] sm:$0xff]
  %v77 = vld [vmem:[%s1 + $0x130] sm:$0xff]
  %v78 = vld [vmem:[%s1 + $0x138] sm:$0xff]
  %v79 = vld [vmem:[%s1 + $0x140] sm:$0xff]
  %v80 = vld [vmem:[%s1 + $0x148] sm:$0xff]
  %v81 = vld [vmem:[%s1 + $0x150] sm:$0xff]
  %v82 = vld [vmem:[%s1 + $0x158] sm:$0xff]
  %v83 = vld [vmem:[%s1 + $0x160] sm:$0xff]
  %v84 = vld [vmem:[%s1 + $0x168] sm:$0xff]
  %v85 = vld [vmem:[%s1 + $0x170] sm:$0xff]
  %v86 = vld [vmem:[%s1 + $0x178] sm:$0xff]
  %v87 = vld [vmem:[%s1 + $0x180] sm:$0xff]
  %v88 = vld [vmem:[%s1 + $0x188] sm:$0xff]
  %v89 = vld [vmem:[%s1 + $0x190] sm:$0xff]
  %v90 = vld [vmem:[%s1 + $0x198] sm:$0xff]
  %v91 = vld [vmem:[%s1 + $0x1a0] sm:$0xff]
  %v92 = vld [vmem:[%s1 + $0x1a8] sm:$0xff]
  %v93 = vld [vmem:[%s1 + $0x1b0] sm:$0xff]
  %v94 = vld [vmem:[%s1 + $0x1b8] sm:$0xff]
  %v95 = vld [vmem:[%s1 + $0x1c0] sm:$0xff]
  %v96 = vld [vmem:[%s1 + $0x1c8] sm:$0xff]
  %v97 = vld [vmem:[%s1 + $0x1d0] sm:$0xff]
  %v98 = vld [vmem:[%s1 + $0x1d8] sm:$0xff]
  %v99 = vld [vmem:[%s1 + $0x1e0] sm:$0xff]
  %v100 = vld [vmem:[%s1 + $0x1e8] sm:$0xff]
  %v101 = vld [vmem:[%s1 + $0x1f0] sm:$0xff]
  %v102 = vld [vmem:[%s1 + $0x1f8] sm:$0xff]
  %v103 = vld [vmem:[%s1 + $0x200] sm:$0xff]
  %v104 = vld [vmem:[%s1 + $0x208] sm:$0xff]
  %v105 = vld [vmem:[%s1 + $0x210] sm:$0xff]
  %v106 = vld [vmem:[%s1 + $0x218] sm:$0xff]
  %v107 = vld [vmem:[%s1 + $0x220] sm:$0xff]
  %v108 = vld [vmem:[%s1 + $0x228] sm:$0xff]
  %v109 = vld [vmem:[%s1 + $0x230] sm:$0xff]
  %v110 = vld [vmem:[%s1 + $0x238] sm:$0xff]
  %v111 = vld [vmem:[%s1 + $0x240] sm:$0xff]
  %v112 = vld [vmem:[%s1 + $0x248] sm:$0xff]
  %v113 = vld [vmem:[%s1 + $0x250] sm:$0xff]
  %v114 = vld [vmem:[%s1 + $0x258] sm:$0xff]
  %v115 = vld [vmem:[%s1 + $0x260] sm:$0xff]
  %v116 = vld [vmem:[%s1 + $0x268] sm:$0xff]
  %v117 = vld [vmem:[%s1 + $0x270] sm:$0xff]
  %v118 = vld [vmem:[%s1 + $0x278] sm:$0xff]
  %v119 = vld [vmem:[%s1 + $0x280] sm:$0xff]
  %v120 = vld [vmem:[%s1 + $0x288] sm:$0xff]
  %v121 = vld [vmem:[%s1 + $0x290] sm:$0xff]
  %v122 = vld [vmem:[%s1 + $0x298] sm:$0xff]
  %v123 = vld [vmem:[%s1 + $0x2a0] sm:$0xff]
  %v124 = vld [vmem:[%s1 + $0x2a8] sm:$0xff]
  %v125 = vld [vmem:[%s1 + $0x2b0] sm:$0xff]
  %v126 = vld [vmem:[%s1 + $0x2b8] sm:$0xff]
  %v127 = vld [vmem:[%s1 + $0x2c0] sm:$0xff]
  %v128 = vld [vmem:[%s1 + $0x2c8] sm:$0xff]
  %v129 = vld [vmem:[%s1 + $0x2d0] sm:$0xff]
  %v130 = vld [vmem:[%s1 + $0x2d8] sm:$0xff]
  %v131 = vld [vmem:[%s1 + $0x2e0] sm:$0xff]
  %v132 = vld [vmem:[%s1 + $0x2e8] sm:$0xff]
  %v133 = vld [vmem:[%s1 + $0x2f0] sm:$0xff]
  %v134 = vld [vmem:[%s1 + $0x2f8] sm:$0xff]
  %v135 = vld [vmem:[%s1 + $0x300] sm:$0xff]
  %v136 = vld [vmem:[%s1 + $0x308] sm:$0xff]
  %v137 = vld [vmem:[%s1 + $0x310] sm:$0xff]
  %v138 = vld [vmem:[%s1 + $0x318] sm:$0xff]
  %v139 = vld [vmem:[%s1 + $0x320] sm:$0xff]
  %v140 = vld [vmem:[%s1 + $0x328] sm:$0xff]
  %v141 = vld [vmem:[%s1 + $0x330] sm:$0xff]
  %v142 = vld [vmem:[%s1 + $0x338] sm:$0xff]
  %v143 = vld [vmem:[%s1 + $0x340] sm:$0xff]
  %v144 = vld [vmem:[%s1 + $0x348] sm:$0xff]
  %v145 = vld [vmem:[%s1 + $0x350] sm:$0xff]
  %v146 = vld [vmem:[%s1 + $0x358] sm:$0xff]
  %v147 = vld [vmem:[%s1 + $0x360] sm:$0xff]
  %v148 = vld [vmem:[%s1 + $0x368] sm:$0xff]
  %v149 = vld [vmem:[%s1 + $0x370] sm:$0xff]
  %v150 = vld [vmem:[%s1 + $0x378] sm:$0xff]
  %v151 = vld [vmem:[%s1 + $0x380] sm:$0xff]
  %v152 = vld [vmem:[%s1 + $0x388] sm:$0xff]
  %v153 = vld [vmem:[%s1 + $0x390] sm:$0xff]
  %v154 = vld [vmem:[%s1 + $0x398] sm:$0xff]
  %v155 = vld [vmem:[%s1 + $0x3a0] sm:$0xff]
  %v156 = vld [vmem:[%s1 + $0x3a8] sm:$0xff]
  %v157 = vld [vmem:[%s1 + $0x3b0] sm:$0xff]
  %v158 = vld [vmem:[%s1 + $0x3b8] sm:$0xff]
  %v159 = vld [vmem:[%s1 + $0x3c0] sm:$0xff]
  %v160 = vld [vmem:[%s1 + $0x3c8] sm:$0xff]
  %v161 = vld [vmem:[%s1 + $0x3d0] sm:$0xff]
  %v162 = vld [vmem:[%s1 + $0x3d8] sm:$0xff]
  %v163 = vld [vmem:[%s1 + $0x3e0] sm:$0xff]
  %v164 = vld [vmem:[%s1 + $0x3e8] sm:$0xff]
  %v165 = vld [vmem:[%s1 + $0x3f0] sm:$0xff]
  %v166 = vld [vmem:[%s1 + $0x3f8] sm:$0xff]
  %v167 = vld [vmem:[%s1 + $0x400] sm:$0xff]
  %v168 = vld [vmem:[%s1 + $0x408] sm:$0xff]
  %v169 = vld [vmem:[%s1 + $0x410] sm:$0xff]
  %v170 = vld [vmem:[%s1 + $0x418] sm:$0xff]
  %v171 = vld [vmem:[%s1 + $0x420] sm:$0xff]
  %v172 = vld [vmem:[%s1 + $0x428] sm:$0xff]
  %v173 = vld [vmem:[%s1 + $0x430] sm:$0xff]
  %v174 = vld [vmem:[%s1 + $0x438] sm:$0xff]
  %v175 = vld [vmem:[%s1 + $0x440] sm:$0xff]
  %v176 = vld [vmem:[%s1 + $0x448] sm:$0xff]
  %v177 = vld [vmem:[%s1 + $0x450] sm:$0xff]
  %v178 = vld [vmem:[%s1 + $0x458] sm:$0xff]
  %v179 = vld [vmem:[%s1 + $0x460] sm:$0xff]
  %v180 = vld [vmem:[%s1 + $0x468] sm:$0xff]
  %v181 = vld [vmem:[%s1 + $0x470] sm:$0xff]
  %v182 = vld [vmem:[%s1 + $0x478] sm:$0xff]
  %v183 = vld [vmem:[%s1 + $0x480] sm:$0xff]
  %v184 = vld [vmem:[%s1 + $0x488] sm:$0xff]
  %v185 = vld [vmem:[%s1 + $0x490] sm:$0xff]
  %v186 = vld [vmem:[%s1 + $0x498] sm:$0xff]
  %v187 = vld [vmem:[%s1 + $0x4a0] sm:$0xff]
  %v188 = vld [vmem:[%s1 + $0x4a8] sm:$0xff]
  %v189 = vld [vmem:[%s1 + $0x4b0] sm:$0xff]
  %v190 = vld [vmem:[%s1 + $0x4b8] sm:$0xff]
  %v191 = vld [vmem:[%s1 + $0x4c0] sm:$0xff]
  %v192 = vld [vmem:[%s1 + $0x4c8] sm:$0xff]
  %v193 = vld [vmem:[%s1 + $0x4d0] sm:$0xff]
  %v194 = vld [vmem:[%s1 + $0x4d8] sm:$0xff]
  %v195 = vld [vmem:[%s1 + $0x4e0] sm:$0xff]
  %v196 = vld [vmem:[%s1 + $0x4e8] sm:$0xff]
  %v197 = vld [vmem:[%s1 + $0x4f0] sm:$0xff]
  %v198 = vld [vmem:[%s1 + $0x4f8] sm:$0xff]
  %v199 = vld [vmem:[%s1 + $0x500] sm:$0xff]
  %v200 = vld [vmem:[%s1 + $0x508] sm:$0xff]
  %v201 = vld [vmem:[%s1 + $0x510] sm:$0xff]
  %v202 = vld [vmem:[%s1 + $0x518] sm:$0xff]
  %v203 = vld [vmem:[%s1 + $0x520] sm:$0xff]
  %v204 = vld [vmem:[%s1 + $0x528] sm:$0xff]
  %v205 = vld [vmem:[%s1 + $0x530] sm:$0xff]
  %v206 = vld [vmem:[%s1 + $0x538] sm:$0xff]
  %v207 = vld [vmem:[%s1 + $0x540] sm:$0xff]
  %v208 = vld [vmem:[%s1 + $0x548] sm:$0xff]
  %v209 = vld [vmem:[%s1 + $0x550] sm:$0xff]
  %v210 = vld [vmem:[%s1 + $0x558] sm:$0xff]
  %v211 = vld [vmem:[%s1 + $0x560] sm:$0xff]
  %v212 = vld [vmem:[%s1 + $0x568] sm:$0xff]
  %v213 = vld [vmem:[%s1 + $0x570] sm:$0xff]
  %v214 = vld [vmem:[%s1 + $0x578] sm:$0xff]
  %v215 = vld [vmem:[%s1 + $0x580] sm:$0xff]
  %v216 = vld [vmem:[%s1 + $0x588] sm:$0xff]
  %v217 = vld [vmem:[%s1 + $0x590] sm:$0xff]
  %v218 = vld [vmem:[%s1 + $0x598] sm:$0xff]
  %v219 = vld [vmem:[%s1 + $0x5a0] sm:$0xff]
  %v220 = vld [vmem:[%s1 + $0x5a8] sm:$0xff]
  %v221 = vld [vmem:[%s1 + $0x5b0] sm:$0xff]
  %v222 = vld [vmem:[%s1 + $0x5b8] sm:$0xff]
  %v223 = vld [vmem:[%s1 + $0x5c0] sm:$0xff]
  %v224 = vld [vmem:[%s1 + $0x5c8] sm:$0xff]
  %v225 = vld [vmem:[%s1 + $0x5d0] sm:$0xff]
  %v226 = vld [vmem:[%s1 + $0x5d8] sm:$0xff]
  %v227 = vld [vmem:[%s1 + $0x5e0] sm:$0xff]
  %v228 = vld [vmem:[%s1 + $0x5e8] sm:$0xff]
  %v229 = vld [vmem:[%s1 + $0x5f0] sm:$0xff]
  %v230 = vld [vmem:[%s1 + $0x5f8] sm:$0xff]
  %v231 = vld [vmem:[%s1 + $0x600] sm:$0xff]
  %v232 = vld [vmem:[%s1 + $0x608] sm:$0xff]
  %v233 = vld [vmem:[%s1 + $0x610] sm:$0xff]
  %v234 = vld [vmem:[%s1 + $0x618] sm:$0xff]
  %v235 = vld [vmem:[%s1 + $0x620] sm:$0xff]
  %v236 = vld [vmem:[%s1 + $0x628] sm:$0xff]
  %v237 = vld [vmem:[%s1 + $0x630] sm:$0xff]
  %v238 = vld [vmem:[%s1 + $0x638] sm:$0xff]
  %v239 = vld [vmem:[%s1 + $0x640] sm:$0xff]
  %v240 = vld [vmem:[%s1 + $0x648] sm:$0xff]
  %v241 = vld [vmem:[%s1 + $0x650] sm:$0xff]
  %v242 = vld [vmem:[%s1 + $0x658] sm:$0xff]
  %v243 = vld [vmem:[%s1 + $0x660] sm:$0xff]
  %v244 = vld [vmem:[%s1 + $0x668] sm:$0xff]
  %v245 = vld [vmem:[%s1 + $0x670] sm:$0xff]
  %v246 = vld [vmem:[%s1 + $0x678] sm:$0xff]
  %v247 = vld [vmem:[%s1 + $0x680] sm:$0xff]
  %v248 = vld [vmem:[%s1 + $0x688] sm:$0xff]
  %v249 = vld [vmem:[%s1 + $0x690] sm:$0xff]
  %v250 = vld [vmem:[%s1 + $0x698] sm:$0xff]
  %v251 = vld [vmem:[%s1 + $0x6a0] sm:$0xff]
  %v252 = vld [vmem:[%s1 + $0x6a8] sm:$0xff]
  %v253 = vld [vmem:[%s1 + $0x6b0] sm:$0xff]
  %v254 = vld [vmem:[%s1 + $0x6b8] sm:$0xff]
  %v255 = vld [vmem:[%s1 + $0x6c0] sm:$0xff]
  %v256 = vld [vmem:[%s1 + $0x6c8] sm:$0xff]
  %v257 = vld [vmem:[%s1 + $0x6d0] sm:$0xff]
  %v258 = vld [vmem:[%s1 + $0x6d8] sm:$0xff]
  %v259 = vld [vmem:[%s1 + $0x6e0] sm:$0xff]
  %v260 = vld [vmem:[%s1 + $0x6e8] sm:$0xff]
  %v261 = vld [vmem:[%s1 + $0x6f0] sm:$0xff]
  %v262 = vld [vmem:[%s1 + $0x6f8] sm:$0xff]
  %v263 = vld [vmem:[%s1 + $0x700] sm:$0xff]
  %v264 = vld [vmem:[%s1 + $0x708] sm:$0xff]
  %v265 = vld [vmem:[%s1 + $0x710] sm:$0xff]
  %v266 = vld [vmem:[%s1 + $0x718] sm:$0xff]
  %v267 = vld [vmem:[%s1 + $0x720] sm:$0xff]
  %v268 = vld [vmem:[%s1 + $0x728] sm:$0xff]
  %v269 = vld [vmem:[%s1 + $0x730] sm:$0xff]
  %v270 = vld [vmem:[%s1 + $0x738] sm:$0xff]
  %v271 = vld [vmem:[%s1 + $0x740] sm:$0xff]
  %v272 = vld [vmem:[%s1 + $0x748] sm:$0xff]
  %v273 = vld [vmem:[%s1 + $0x750] sm:$0xff]
  %v274 = vld [vmem:[%s1 + $0x758] sm:$0xff]
  %v275 = vld [vmem:[%s1 + $0x760] sm:$0xff]
  %v276 = vld [vmem:[%s1 + $0x768] sm:$0xff]
  %v277 = vld [vmem:[%s1 + $0x770] sm:$0xff]
  %v278 = vld [vmem:[%s1 + $0x778] sm:$0xff]
  %v279 = vld [vmem:[%s1 + $0x780] sm:$0xff]
  %v280 = vld [vmem:[%s1 + $0x788] sm:$0xff]
  %v281 = vld [vmem:[%s1 + $0x790] sm:$0xff]
  %v282 = vld [vmem:[%s1 + $0x798] sm:$0xff]
  %v283 = vld [vmem:[%s1 + $0x7a0] sm:$0xff]
  %v284 = vld [vmem:[%s1 + $0x7a8] sm:$0xff]
  %v285 = vld [vmem:[%s1 + $0x7b0] sm:$0xff]
  %v286 = vld [vmem:[%s1 + $0x7b8] sm:$0xff]
  %v287 = vld [vmem:[%s1 + $0x7c0] sm:$0xff]
  %v288 = vld [vmem:[%s1 + $0x7c8] sm:$0xff]
  %v289 = vld [vmem:[%s1 + $0x7d0] sm:$0xff]
  %v290 = vld [vmem:[%s1 + $0x7d8] sm:$0xff]
  %v291 = vld [vmem:[%s1 + $0x7e0] sm:$0xff]
  %v292 = vld [vmem:[%s1 + $0x7e8] sm:$0xff]
  %v293 = vld [vmem:[%s1 + $0x7f0] sm:$0xff]
  %v294 = vld [vmem:[%s1 + $0x7f8] sm:$0xff]
  %v295 = vld [vmem:[%s1 + $0x800] sm:$0xff]
  %v296 = vld [vmem:[%s1 + $0x808] sm:$0xff]
  %v297 = vld [vmem:[%s1 + $0x810] sm:$0xff]
  %v298 = vld [vmem:[%s1 + $0x818] sm:$0xff]
  %v299 = vld [vmem:[%s1 + $0x820] sm:$0xff]
  %v300 = vld [vmem:[%s1 + $0x828] sm:$0xff]
  %v301 = vld [vmem:[%s1 + $0x830] sm:$0xff]
  %v302 = vld [vmem:[%s1 + $0x838] sm:$0xff]
  %v303 = vld [vmem:[%s1 + $0x840] sm:$0xff]
  %v304 = vld [vmem:[%s1 + $0x848] sm:$0xff]
  %v305 = vld [vmem:[%s1 + $0x850] sm:$0xff]
  %v306 = vld [vmem:[%s1 + $0x858] sm:$0xff]
  %v307 = vld [vmem:[%s1 + $0x860] sm:$0xff]
  %v308 = vld [vmem:[%s1 + $0x868] sm:$0xff]
  %v309 = vld [vmem:[%s1 + $0x870] sm:$0xff]
  %v310 = vld [vmem:[%s1 + $0x878] sm:$0xff]
  %v311 = vld [vmem:[%s1 + $0x880] sm:$0xff]
  %v312 = vld [vmem:[%s1 + $0x888] sm:$0xff]
  %v313 = vld [vmem:[%s1 + $0x890] sm:$0xff]
  %v314 = vld [vmem:[%s1 + $0x898] sm:$0xff]
  %v315 = vld [vmem:[%s1 + $0x8a0] sm:$0xff]
  %v316 = vld [vmem:[%s1 + $0x8a8] sm:$0xff]
  %v317 = vld [vmem:[%s1 + $0x8b0] sm:$0xff]
  %v318 = vld [vmem:[%s1 + $0x8b8] sm:$0xff]
  %v319 = vld [vmem:[%s1 + $0x8c0] sm:$0xff]
  %v320 = vld [vmem:[%s1 + $0x8c8] sm:$0xff]
  %v321 = vld [vmem:[%s1 + $0x8d0] sm:$0xff]
  %v322 = vld [vmem:[%s1 + $0x8d8] sm:$0xff]
  %v323 = vld [vmem:[%s1 + $0x8e0] sm:$0xff]
  %v324 = vld [vmem:[%s1 + $0x8e8] sm:$0xff]
  %v325 = vld [vmem:[%s1 + $0x8f0] sm:$0xff]
  %v326 = vld [vmem:[%s1 + $0x8f8] sm:$0xff]
  %v327 = vld [vmem:[%s1 + $0x900] sm:$0xff]
  %v328 = vld [vmem:[%s1 + $0x908] sm:$0xff]
  %v329 = vld [vmem:[%s1 + $0x910] sm:$0xff]
  %v330 = vld [vmem:[%s1 + $0x918] sm:$0xff]
  %v331 = vld [vmem:[%s1 + $0x920] sm:$0xff]
  %v332 = vld [vmem:[%s1 + $0x928] sm:$0xff]
  %v333 = vld [vmem:[%s1 + $0x930] sm:$0xff]
  %v334 = vld [vmem:[%s1 + $0x938] sm:$0xff]
  %v335 = vld [vmem:[%s1 + $0x940] sm:$0xff]
  %v336 = vld [vmem:[%s1 + $0x948] sm:$0xff]
  %v337 = vld [vmem:[%s1 + $0x950] sm:$0xff]
  %v338 = vld [vmem:[%s1 + $0x958] sm:$0xff]
  %v339 = vld [vmem:[%s1 + $0x960] sm:$0xff]
  %v340 = vld [vmem:[%s1 + $0x968] sm:$0xff]
  %v341 = vld [vmem:[%s1 + $0x970] sm:$0xff]
  %v342 = vld [vmem:[%s1 + $0x978] sm:$0xff]
  %v343 = vld [vmem:[%s1 + $0x980] sm:$0xff]
  %v344 = vld [vmem:[%s1 + $0x988] sm:$0xff]
  %v345 = vld [vmem:[%s1 + $0x990] sm:$0xff]
  %v346 = vld [vmem:[%s1 + $0x998] sm:$0xff]
  %v347 = vld [vmem:[%s1 + $0x9a0] sm:$0xff]
  %v348 = vld [vmem:[%s1 + $0x9a8] sm:$0xff]
  %v349 = vld [vmem:[%s1 + $0x9b0] sm:$0xff]
  %v350 = vld [vmem:[%s1 + $0x9b8] sm:$0xff]
  %v351 = vld [vmem:[%s1 + $0x9c0] sm:$0xff]
  %v352 = vld [vmem:[%s1 + $0x9c8] sm:$0xff]
  %v353 = vld [vmem:[%s1 + $0x9d0] sm:$0xff]
  %v354 = vld [vmem:[%s1 + $0x9d8] sm:$0xff]
  %v355 = vld [vmem:[%s1 + $0x9e0] sm:$0xff]
  %v356 = vld [vmem:[%s1 + $0x9e8] sm:$0xff]
  %v357 = vld [vmem:[%s1 + $0x9f0] sm:$0xff]
  %v358 = vld [vmem:[%s1 + $0x9f8] sm:$0xff]
  %v359 = vld [vmem:[%s1 + $0xa00] sm:$0xff]
  %v360 = vld [vmem:[%s1 + $0xa08] sm:$0xff]
  %v361 = vld [vmem:[%s1 + $0xa10] sm:$0xff]
  %v362 = vld [vmem:[%s1 + $0xa18] sm:$0xff]
  %v363 = vld [vmem:[%s1 + $0xa20] sm:$0xff]
  %v364 = vld [vmem:[%s1 + $0xa28] sm:$0xff]
  %v365 = vld [vmem:[%s1 + $0xa30] sm:$0xff]
  %v366 = vld [vmem:[%s1 + $0xa38] sm:$0xff]
  %v367 = vld [vmem:[%s1 + $0xa40] sm:$0xff]
  %v368 = vld [vmem:[%s1 + $0xa48] sm:$0xff]
  %v369 = vld [vmem:[%s1 + $0xa50] sm:$0xff]
  %v370 = vld [vmem:[%s1 + $0xa58] sm:$0xff]
  %v371 = vld [vmem:[%s1 + $0xa60] sm:$0xff]
  %v372 = vld [vmem:[%s1 + $0xa68] sm:$0xff]
  %v373 = vld [vmem:[%s1 + $0xa70] sm:$0xff]
  %v374 = vld [vmem:[%s1 + $0xa78] sm:$0xff]
  %v375 = vld [vmem:[%s1 + $0xa80] sm:$0xff]
  %v376 = vld [vmem:[%s1 + $0xa88] sm:$0xff]
  %v377 = vld [vmem:[%s1 + $0xa90] sm:$0xff]
  %v378 = vld [vmem:[%s1 + $0xa98] sm:$0xff]
  %v379 = vld [vmem:[%s1 + $0xaa0] sm:$0xff]
  %v380 = vld [vmem:[%s1 + $0xaa8] sm:$0xff]
  %v381 = vld [vmem:[%s1 + $0xab0] sm:$0xff]
  %v382 = vld [vmem:[%s1 + $0xab8] sm:$0xff]
  %v383 = vld [vmem:[%s1 + $0xac0] sm:$0xff]
  %v384 = vld [vmem:[%s1 + $0xac8] sm:$0xff]
  %v385 = vld [vmem:[%s1 + $0xad0] sm:$0xff]
  %v386 = vld [vmem:[%s1 + $0xad8] sm:$0xff]
  %v387 = vld [vmem:[%s1 + $0xae0] sm:$0xff]
  %v388 = vld [vmem:[%s1 + $0xae8] sm:$0xff]
  %v389 = vld [vmem:[%s1 + $0xaf0] sm:$0xff]
  %v390 = vld [vmem:[%s1 + $0xaf8] sm:$0xff]
  %v391 = vld [vmem:[%s1 + $0xb00] sm:$0xff]
  %v392 = vld [vmem:[%s1 + $0xb08] sm:$0xff]
  %v393 = vld [vmem:[%s1 + $0xb10] sm:$0xff]
  %v394 = vld [vmem:[%s1 + $0xb18] sm:$0xff]
  %v395 = vld [vmem:[%s1 + $0xb20] sm:$0xff]
  %v396 = vld [vmem:[%s1 + $0xb28] sm:$0xff]
  %v397 = vld [vmem:[%s1 + $0xb30] sm:$0xff]
  %v398 = vld [vmem:[%s1 + $0xb38] sm:$0xff]
  %v399 = vld [vmem:[%s1 + $0xb40] sm:$0xff]
  %v400 = vld [vmem:[%s1 + $0xb48] sm:$0xff]
  %v401 = vld [vmem:[%s1 + $0xb50] sm:$0xff]
  %v402 = vld [vmem:[%s1 + $0xb58] sm:$0xff]
  %v403 = vld [vmem:[%s1 + $0xb60] sm:$0xff]
  %v404 = vld [vmem:[%s1 + $0xb68] sm:$0xff]
  %v405 = vld [vmem:[%s1 + $0xb70] sm:$0xff]
  %v406 = vld [vmem:[%s1 + $0xb78] sm:$0xff]
  %v407 = vld [vmem:[%s1 + $0xb80] sm:$0xff]
  %v408 = vld [vmem:[%s1 + $0xb88] sm:$0xff]
  %v409 = vld [vmem:[%s1 + $0xb90] sm:$0xff]
  %v410 = vld [vmem:[%s1 + $0xb98] sm:$0xff]
  %v411 = vld [vmem:[%s1 + $0xba0] sm:$0xff]
  %v412 = vld [vmem:[%s1 + $0xba8] sm:$0xff]
  %v413 = vld [vmem:[%s1 + $0xbb0] sm:$0xff]
  %v414 = vld [vmem:[%s1 + $0xbb8] sm:$0xff]
  %v415 = vld [vmem:[%s1 + $0xbc0] sm:$0xff]
  %v416 = vld [vmem:[%s1 + $0xbc8] sm:$0xff]
  %v417 = vld [vmem:[%s1 + $0xbd0] sm:$0xff]
  %v418 = vld [vmem:[%s1 + $0xbd8] sm:$0xff]
  %v419 = vld [vmem:[%s1 + $0xbe0] sm:$0xff]
  %v420 = vld [vmem:[%s1 + $0xbe8] sm:$0xff]
  %v421 = vld [vmem:[%s1 + $0xbf0] sm:$0xff]
  %v422 = vld [vmem:[%s1 + $0xbf8] sm:$0xff]
  %v423 = vld [vmem:[%s1 + $0xc00] sm:$0xff]
  %v424 = vld [vmem:[%s1 + $0xc08] sm:$0xff]
  %v425 = vld [vmem:[%s1 + $0xc10] sm:$0xff]
  %v426 = vld [vmem:[%s1 + $0xc18] sm:$0xff]
  %v427 = vld [vmem:[%s1 + $0xc20] sm:$0xff]
  %v428 = vld [vmem:[%s1 + $0xc28] sm:$0xff]
  %v429 = vld [vmem:[%s1 + $0xc30] sm:$0xff]
  %v430 = vld [vmem:[%s1 + $0xc38] sm:$0xff]
  %v431 = vld [vmem:[%s2] sm:$0x1]
  %v433 = vperm.slane %v431, 0
  %vm435 = vcmask 523264
  %v437 = vsel %vm435, %v38, 0
  %439 = vmatpush.msra.mxu0 %v54
  %440 = vmatpush.msra.mxu0 %v53
  %441 = vmatpush.msra.mxu0 %v52
  %442 = vmatpush.msra.mxu0 %v51
  %443 = vmatpush.msra.mxu0 %v50
  %444 = vmatpush.msra.mxu0 %v49
  %445 = vmatpush.msra.mxu0 %v48
  %446 = vmatpush.msra.mxu0 %v47
  %447 = vmatpush.msra.mxu0 %v46
  %448 = vmatpush.msra.mxu0 %v45
  %449 = vmatpush.msra.mxu0 %v44
  %450 = vmatpush.msra.mxu0 %v43
  %451 = vmatpush.msra.mxu0 %v42
  %452 = vmatpush.msra.mxu0 %v41
  %453 = vmatpush.msra.mxu0 %v40
  %454 = vmatpush.msra.mxu0 %v39
  %455 = vmatmul.f32.gmra.mxu0 %v14
  %v456 = vpop.f32.mrf.mxu0
  %v457 = vadd.f32 %v433, %v456
  %458 = vdwg.mxu0
  %459 = vmatpush.msra.mxu0 %v70
  %460 = vmatpush.msra.mxu0 %v69
  %461 = vmatpush.msra.mxu0 %v68
  %462 = vmatpush.msra.mxu0 %v67
  %463 = vmatpush.msra.mxu0 %v66
  %464 = vmatpush.msra.mxu0 %v65
  %465 = vmatpush.msra.mxu0 %v64
  %466 = vmatpush.msra.mxu0 %v63
  %467 = vmatpush.msra.mxu0 %v62
  %468 = vmatpush.msra.mxu0 %v61
  %469 = vmatpush.msra.mxu0 %v60
  %470 = vmatpush.msra.mxu0 %v59
  %471 = vmatpush.msra.mxu0 %v58
  %472 = vmatpush.msra.mxu0 %v57
  %473 = vmatpush.msra.mxu0 %v56
  %474 = vmatpush.msra.mxu0 %v55
  %475 = vmatmul.f32.gmra.mxu0 %v15
  %v476 = vpop.f32.mrf.mxu0
  %v477 = vadd.f32 %v457, %v476
  %478 = vdwg.mxu0
  %479 = vmatpush.msra.mxu0 %v86
  %480 = vmatpush.msra.mxu0 %v85
  %481 = vmatpush.msra.mxu0 %v84
  %482 = vmatpush.msra.mxu0 %v83
  %483 = vmatpush.msra.mxu0 %v82
  %484 = vmatpush.msra.mxu0 %v81
  %485 = vmatpush.msra.mxu0 %v80
  %486 = vmatpush.msra.mxu0 %v79
  %487 = vmatpush.msra.mxu0 %v78
  %488 = vmatpush.msra.mxu0 %v77
  %489 = vmatpush.msra.mxu0 %v76
  %490 = vmatpush.msra.mxu0 %v75
  %491 = vmatpush.msra.mxu0 %v74
  %492 = vmatpush.msra.mxu0 %v73
  %493 = vmatpush.msra.mxu0 %v72
  %494 = vmatpush.msra.mxu0 %v71
  %495 = vmatmul.f32.gmra.mxu0 %v16
  %v496 = vpop.f32.mrf.mxu0
  %v497 = vadd.f32 %v477, %v496
  %498 = vdwg.mxu0
  %499 = vmatpush.msra.mxu0 %v102
  %500 = vmatpush.msra.mxu0 %v101
  %501 = vmatpush.msra.mxu0 %v100
  %502 = vmatpush.msra.mxu0 %v99
  %503 = vmatpush.msra.mxu0 %v98
  %504 = vmatpush.msra.mxu0 %v97
  %505 = vmatpush.msra.mxu0 %v96
  %506 = vmatpush.msra.mxu0 %v95
  %507 = vmatpush.msra.mxu0 %v94
  %508 = vmatpush.msra.mxu0 %v93
  %509 = vmatpush.msra.mxu0 %v92
  %510 = vmatpush.msra.mxu0 %v91
  %511 = vmatpush.msra.mxu0 %v90
  %512 = vmatpush.msra.mxu0 %v89
  %513 = vmatpush.msra.mxu0 %v88
  %514 = vmatpush.msra.mxu0 %v87
  %515 = vmatmul.f32.gmra.mxu0 %v17
  %v516 = vpop.f32.mrf.mxu0
  %v517 = vadd.f32 %v497, %v516
  %518 = vdwg.mxu0
  %519 = vmatpush.msra.mxu0 %v118
  %520 = vmatpush.msra.mxu0 %v117
  %521 = vmatpush.msra.mxu0 %v116
  %522 = vmatpush.msra.mxu0 %v115
  %523 = vmatpush.msra.mxu0 %v114
  %524 = vmatpush.msra.mxu0 %v113
  %525 = vmatpush.msra.mxu0 %v112
  %526 = vmatpush.msra.mxu0 %v111
  %527 = vmatpush.msra.mxu0 %v110
  %528 = vmatpush.msra.mxu0 %v109
  %529 = vmatpush.msra.mxu0 %v108
  %530 = vmatpush.msra.mxu0 %v107
  %531 = vmatpush.msra.mxu0 %v106
  %532 = vmatpush.msra.mxu0 %v105
  %533 = vmatpush.msra.mxu0 %v104
  %534 = vmatpush.msra.mxu0 %v103
  %535 = vmatmul.f32.gmra.mxu0 %v18
  %v536 = vpop.f32.mrf.mxu0
  %v537 = vadd.f32 %v517, %v536
  %538 = vdwg.mxu0
  %539 = vmatpush.msra.mxu0 %v134
  %540 = vmatpush.msra.mxu0 %v133
  %541 = vmatpush.msra.mxu0 %v132
  %542 = vmatpush.msra.mxu0 %v131
  %543 = vmatpush.msra.mxu0 %v130
  %544 = vmatpush.msra.mxu0 %v129
  %545 = vmatpush.msra.mxu0 %v128
  %546 = vmatpush.msra.mxu0 %v127
  %547 = vmatpush.msra.mxu0 %v126
  %548 = vmatpush.msra.mxu0 %v125
  %549 = vmatpush.msra.mxu0 %v124
  %550 = vmatpush.msra.mxu0 %v123
  %551 = vmatpush.msra.mxu0 %v122
  %552 = vmatpush.msra.mxu0 %v121
  %553 = vmatpush.msra.mxu0 %v120
  %554 = vmatpush.msra.mxu0 %v119
  %555 = vmatmul.f32.gmra.mxu0 %v19
  %v556 = vpop.f32.mrf.mxu0
  %v557 = vadd.f32 %v537, %v556
  %558 = vdwg.mxu0
  %559 = vmatpush.msra.mxu0 %v150
  %560 = vmatpush.msra.mxu0 %v149
  %561 = vmatpush.msra.mxu0 %v148
  %562 = vmatpush.msra.mxu0 %v147
  %563 = vmatpush.msra.mxu0 %v146
  %564 = vmatpush.msra.mxu0 %v145
  %565 = vmatpush.msra.mxu0 %v144
  %566 = vmatpush.msra.mxu0 %v143
  %567 = vmatpush.msra.mxu0 %v142
  %568 = vmatpush.msra.mxu0 %v141
  %569 = vmatpush.msra.mxu0 %v140
  %570 = vmatpush.msra.mxu0 %v139
  %571 = vmatpush.msra.mxu0 %v138
  %572 = vmatpush.msra.mxu0 %v137
  %573 = vmatpush.msra.mxu0 %v136
  %574 = vmatpush.msra.mxu0 %v135
  %575 = vmatmul.f32.gmra.mxu0 %v20
  %v576 = vpop.f32.mrf.mxu0
  %v577 = vadd.f32 %v557, %v576
  %578 = vdwg.mxu0
  %579 = vmatpush.msra.mxu0 %v166
  %580 = vmatpush.msra.mxu0 %v165
  %581 = vmatpush.msra.mxu0 %v164
  %582 = vmatpush.msra.mxu0 %v163
  %583 = vmatpush.msra.mxu0 %v162
  %584 = vmatpush.msra.mxu0 %v161
  %585 = vmatpush.msra.mxu0 %v160
  %586 = vmatpush.msra.mxu0 %v159
  %587 = vmatpush.msra.mxu0 %v158
  %588 = vmatpush.msra.mxu0 %v157
  %589 = vmatpush.msra.mxu0 %v156
  %590 = vmatpush.msra.mxu0 %v155
  %591 = vmatpush.msra.mxu0 %v154
  %592 = vmatpush.msra.mxu0 %v153
  %593 = vmatpush.msra.mxu0 %v152
  %594 = vmatpush.msra.mxu0 %v151
  %595 = vmatmul.f32.gmra.mxu0 %v21
  %v596 = vpop.f32.mrf.mxu0
  %v597 = vadd.f32 %v577, %v596
  %598 = vdwg.mxu0
  %599 = vmatpush.msra.mxu0 %v182
  %600 = vmatpush.msra.mxu0 %v181
  %601 = vmatpush.msra.mxu0 %v180
  %602 = vmatpush.msra.mxu0 %v179
  %603 = vmatpush.msra.mxu0 %v178
  %604 = vmatpush.msra.mxu0 %v177
  %605 = vmatpush.msra.mxu0 %v176
  %606 = vmatpush.msra.mxu0 %v175
  %607 = vmatpush.msra.mxu0 %v174
  %608 = vmatpush.msra.mxu0 %v173
  %609 = vmatpush.msra.mxu0 %v172
  %610 = vmatpush.msra.mxu0 %v171
  %611 = vmatpush.msra.mxu0 %v170
  %612 = vmatpush.msra.mxu0 %v169
  %613 = vmatpush.msra.mxu0 %v168
  %614 = vmatpush.msra.mxu0 %v167
  %615 = vmatmul.f32.gmra.mxu0 %v22
  %v616 = vpop.f32.mrf.mxu0
  %v617 = vadd.f32 %v597, %v616
  %618 = vdwg.mxu0
  %619 = vmatpush.msra.mxu0 %v198
  %620 = vmatpush.msra.mxu0 %v197
  %621 = vmatpush.msra.mxu0 %v196
  %622 = vmatpush.msra.mxu0 %v195
  %623 = vmatpush.msra.mxu0 %v194
  %624 = vmatpush.msra.mxu0 %v193
  %625 = vmatpush.msra.mxu0 %v192
  %626 = vmatpush.msra.mxu0 %v191
  %627 = vmatpush.msra.mxu0 %v190
  %628 = vmatpush.msra.mxu0 %v189
  %629 = vmatpush.msra.mxu0 %v188
  %630 = vmatpush.msra.mxu0 %v187
  %631 = vmatpush.msra.mxu0 %v186
  %632 = vmatpush.msra.mxu0 %v185
  %633 = vmatpush.msra.mxu0 %v184
  %634 = vmatpush.msra.mxu0 %v183
  %635 = vmatmul.f32.gmra.mxu0 %v23
  %v636 = vpop.f32.mrf.mxu0
  %v637 = vadd.f32 %v617, %v636
  %638 = vdwg.mxu0
  %639 = vmatpush.msra.mxu0 %v214
  %640 = vmatpush.msra.mxu0 %v213
  %641 = vmatpush.msra.mxu0 %v212
  %642 = vmatpush.msra.mxu0 %v211
  %643 = vmatpush.msra.mxu0 %v210
  %644 = vmatpush.msra.mxu0 %v209
  %645 = vmatpush.msra.mxu0 %v208
  %646 = vmatpush.msra.mxu0 %v207
  %647 = vmatpush.msra.mxu0 %v206
  %648 = vmatpush.msra.mxu0 %v205
  %649 = vmatpush.msra.mxu0 %v204
  %650 = vmatpush.msra.mxu0 %v203
  %651 = vmatpush.msra.mxu0 %v202
  %652 = vmatpush.msra.mxu0 %v201
  %653 = vmatpush.msra.mxu0 %v200
  %654 = vmatpush.msra.mxu0 %v199
  %655 = vmatmul.f32.gmra.mxu0 %v24
  %v656 = vpop.f32.mrf.mxu0
  %v657 = vadd.f32 %v637, %v656
  %658 = vdwg.mxu0
  %659 = vmatpush.msra.mxu0 %v230
  %660 = vmatpush.msra.mxu0 %v229
  %661 = vmatpush.msra.mxu0 %v228
  %662 = vmatpush.msra.mxu0 %v227
  %663 = vmatpush.msra.mxu0 %v226
  %664 = vmatpush.msra.mxu0 %v225
  %665 = vmatpush.msra.mxu0 %v224
  %666 = vmatpush.msra.mxu0 %v223
  %667 = vmatpush.msra.mxu0 %v222
  %668 = vmatpush.msra.mxu0 %v221
  %669 = vmatpush.msra.mxu0 %v220
  %670 = vmatpush.msra.mxu0 %v219
  %671 = vmatpush.msra.mxu0 %v218
  %672 = vmatpush.msra.mxu0 %v217
  %673 = vmatpush.msra.mxu0 %v216
  %674 = vmatpush.msra.mxu0 %v215
  %675 = vmatmul.f32.gmra.mxu0 %v25
  %v676 = vpop.f32.mrf.mxu0
  %v677 = vadd.f32 %v657, %v676
  %678 = vdwg.mxu0
  %679 = vmatpush.msra.mxu0 %v246
  %680 = vmatpush.msra.mxu0 %v245
  %681 = vmatpush.msra.mxu0 %v244
  %682 = vmatpush.msra.mxu0 %v243
  %683 = vmatpush.msra.mxu0 %v242
  %684 = vmatpush.msra.mxu0 %v241
  %685 = vmatpush.msra.mxu0 %v240
  %686 = vmatpush.msra.mxu0 %v239
  %687 = vmatpush.msra.mxu0 %v238
  %688 = vmatpush.msra.mxu0 %v237
  %689 = vmatpush.msra.mxu0 %v236
  %690 = vmatpush.msra.mxu0 %v235
  %691 = vmatpush.msra.mxu0 %v234
  %692 = vmatpush.msra.mxu0 %v233
  %693 = vmatpush.msra.mxu0 %v232
  %694 = vmatpush.msra.mxu0 %v231
  %695 = vmatmul.f32.gmra.mxu0 %v26
  %v696 = vpop.f32.mrf.mxu0
  %v697 = vadd.f32 %v677, %v696
  %698 = vdwg.mxu0
  %699 = vmatpush.msra.mxu0 %v262
  %700 = vmatpush.msra.mxu0 %v261
  %701 = vmatpush.msra.mxu0 %v260
  %702 = vmatpush.msra.mxu0 %v259
  %703 = vmatpush.msra.mxu0 %v258
  %704 = vmatpush.msra.mxu0 %v257
  %705 = vmatpush.msra.mxu0 %v256
  %706 = vmatpush.msra.mxu0 %v255
  %707 = vmatpush.msra.mxu0 %v254
  %708 = vmatpush.msra.mxu0 %v253
  %709 = vmatpush.msra.mxu0 %v252
  %710 = vmatpush.msra.mxu0 %v251
  %711 = vmatpush.msra.mxu0 %v250
  %712 = vmatpush.msra.mxu0 %v249
  %713 = vmatpush.msra.mxu0 %v248
  %714 = vmatpush.msra.mxu0 %v247
  %715 = vmatmul.f32.gmra.mxu0 %v27
  %v716 = vpop.f32.mrf.mxu0
  %v717 = vadd.f32 %v697, %v716
  %718 = vdwg.mxu0
  %719 = vmatpush.msra.mxu0 %v278
  %720 = vmatpush.msra.mxu0 %v277
  %721 = vmatpush.msra.mxu0 %v276
  %722 = vmatpush.msra.mxu0 %v275
  %723 = vmatpush.msra.mxu0 %v274
  %724 = vmatpush.msra.mxu0 %v273
  %725 = vmatpush.msra.mxu0 %v272
  %726 = vmatpush.msra.mxu0 %v271
  %727 = vmatpush.msra.mxu0 %v270
  %728 = vmatpush.msra.mxu0 %v269
  %729 = vmatpush.msra.mxu0 %v268
  %730 = vmatpush.msra.mxu0 %v267
  %731 = vmatpush.msra.mxu0 %v266
  %732 = vmatpush.msra.mxu0 %v265
  %733 = vmatpush.msra.mxu0 %v264
  %734 = vmatpush.msra.mxu0 %v263
  %735 = vmatmul.f32.gmra.mxu0 %v28
  %v736 = vpop.f32.mrf.mxu0
  %v737 = vadd.f32 %v717, %v736
  %738 = vdwg.mxu0
  %739 = vmatpush.msra.mxu0 %v294
  %740 = vmatpush.msra.mxu0 %v293
  %741 = vmatpush.msra.mxu0 %v292
  %742 = vmatpush.msra.mxu0 %v291
  %743 = vmatpush.msra.mxu0 %v290
  %744 = vmatpush.msra.mxu0 %v289
  %745 = vmatpush.msra.mxu0 %v288
  %746 = vmatpush.msra.mxu0 %v287
  %747 = vmatpush.msra.mxu0 %v286
  %748 = vmatpush.msra.mxu0 %v285
  %749 = vmatpush.msra.mxu0 %v284
  %750 = vmatpush.msra.mxu0 %v283
  %751 = vmatpush.msra.mxu0 %v282
  %752 = vmatpush.msra.mxu0 %v281
  %753 = vmatpush.msra.mxu0 %v280
  %754 = vmatpush.msra.mxu0 %v279
  %755 = vmatmul.f32.gmra.mxu0 %v29
  %v756 = vpop.f32.mrf.mxu0
  %v757 = vadd.f32 %v737, %v756
  %758 = vdwg.mxu0
  %759 = vmatpush.msra.mxu0 %v310
  %760 = vmatpush.msra.mxu0 %v309
  %761 = vmatpush.msra.mxu0 %v308
  %762 = vmatpush.msra.mxu0 %v307
  %763 = vmatpush.msra.mxu0 %v306
  %764 = vmatpush.msra.mxu0 %v305
  %765 = vmatpush.msra.mxu0 %v304
  %766 = vmatpush.msra.mxu0 %v303
  %767 = vmatpush.msra.mxu0 %v302
  %768 = vmatpush.msra.mxu0 %v301
  %769 = vmatpush.msra.mxu0 %v300
  %770 = vmatpush.msra.mxu0 %v299
  %771 = vmatpush.msra.mxu0 %v298
  %772 = vmatpush.msra.mxu0 %v297
  %773 = vmatpush.msra.mxu0 %v296
  %774 = vmatpush.msra.mxu0 %v295
  %775 = vmatmul.f32.gmra.mxu0 %v30
  %v776 = vpop.f32.mrf.mxu0
  %v777 = vadd.f32 %v757, %v776
  %778 = vdwg.mxu0
  %779 = vmatpush.msra.mxu0 %v326
  %780 = vmatpush.msra.mxu0 %v325
  %781 = vmatpush.msra.mxu0 %v324
  %782 = vmatpush.msra.mxu0 %v323
  %783 = vmatpush.msra.mxu0 %v322
  %784 = vmatpush.msra.mxu0 %v321
  %785 = vmatpush.msra.mxu0 %v320
  %786 = vmatpush.msra.mxu0 %v319
  %787 = vmatpush.msra.mxu0 %v318
  %788 = vmatpush.msra.mxu0 %v317
  %789 = vmatpush.msra.mxu0 %v316
  %790 = vmatpush.msra.mxu0 %v315
  %791 = vmatpush.msra.mxu0 %v314
  %792 = vmatpush.msra.mxu0 %v313
  %793 = vmatpush.msra.mxu0 %v312
  %794 = vmatpush.msra.mxu0 %v311
  %795 = vmatmul.f32.gmra.mxu0 %v31
  %v796 = vpop.f32.mrf.mxu0
  %v797 = vadd.f32 %v777, %v796
  %798 = vdwg.mxu0
  %799 = vmatpush.msra.mxu0 %v342
  %800 = vmatpush.msra.mxu0 %v341
  %801 = vmatpush.msra.mxu0 %v340
  %802 = vmatpush.msra.mxu0 %v339
  %803 = vmatpush.msra.mxu0 %v338
  %804 = vmatpush.msra.mxu0 %v337
  %805 = vmatpush.msra.mxu0 %v336
  %806 = vmatpush.msra.mxu0 %v335
  %807 = vmatpush.msra.mxu0 %v334
  %808 = vmatpush.msra.mxu0 %v333
  %809 = vmatpush.msra.mxu0 %v332
  %810 = vmatpush.msra.mxu0 %v331
  %811 = vmatpush.msra.mxu0 %v330
  %812 = vmatpush.msra.mxu0 %v329
  %813 = vmatpush.msra.mxu0 %v328
  %814 = vmatpush.msra.mxu0 %v327
  %815 = vmatmul.f32.gmra.mxu0 %v32
  %v816 = vpop.f32.mrf.mxu0
  %v817 = vadd.f32 %v797, %v816
  %818 = vdwg.mxu0
  %819 = vmatpush.msra.mxu0 %v358
  %820 = vmatpush.msra.mxu0 %v357
  %821 = vmatpush.msra.mxu0 %v356
  %822 = vmatpush.msra.mxu0 %v355
  %823 = vmatpush.msra.mxu0 %v354
  %824 = vmatpush.msra.mxu0 %v353
  %825 = vmatpush.msra.mxu0 %v352
  %826 = vmatpush.msra.mxu0 %v351
  %827 = vmatpush.msra.mxu0 %v350
  %828 = vmatpush.msra.mxu0 %v349
  %829 = vmatpush.msra.mxu0 %v348
  %830 = vmatpush.msra.mxu0 %v347
  %831 = vmatpush.msra.mxu0 %v346
  %832 = vmatpush.msra.mxu0 %v345
  %833 = vmatpush.msra.mxu0 %v344
  %834 = vmatpush.msra.mxu0 %v343
  %835 = vmatmul.f32.gmra.mxu0 %v33
  %v836 = vpop.f32.mrf.mxu0
  %v837 = vadd.f32 %v817, %v836
  %838 = vdwg.mxu0
  %839 = vmatpush.msra.mxu0 %v374
  %840 = vmatpush.msra.mxu0 %v373
  %841 = vmatpush.msra.mxu0 %v372
  %842 = vmatpush.msra.mxu0 %v371
  %843 = vmatpush.msra.mxu0 %v370
  %844 = vmatpush.msra.mxu0 %v369
  %845 = vmatpush.msra.mxu0 %v368
  %846 = vmatpush.msra.mxu0 %v367
  %847 = vmatpush.msra.mxu0 %v366
  %848 = vmatpush.msra.mxu0 %v365
  %849 = vmatpush.msra.mxu0 %v364
  %850 = vmatpush.msra.mxu0 %v363
  %851 = vmatpush.msra.mxu0 %v362
  %852 = vmatpush.msra.mxu0 %v361
  %853 = vmatpush.msra.mxu0 %v360
  %854 = vmatpush.msra.mxu0 %v359
  %855 = vmatmul.f32.gmra.mxu0 %v34
  %v856 = vpop.f32.mrf.mxu0
  %v857 = vadd.f32 %v837, %v856
  %858 = vdwg.mxu0
  %859 = vmatpush.msra.mxu0 %v390
  %860 = vmatpush.msra.mxu0 %v389
  %861 = vmatpush.msra.mxu0 %v388
  %862 = vmatpush.msra.mxu0 %v387
  %863 = vmatpush.msra.mxu0 %v386
  %864 = vmatpush.msra.mxu0 %v385
  %865 = vmatpush.msra.mxu0 %v384
  %866 = vmatpush.msra.mxu0 %v383
  %867 = vmatpush.msra.mxu0 %v382
  %868 = vmatpush.msra.mxu0 %v381
  %869 = vmatpush.msra.mxu0 %v380
  %870 = vmatpush.msra.mxu0 %v379
  %871 = vmatpush.msra.mxu0 %v378
  %872 = vmatpush.msra.mxu0 %v377
  %873 = vmatpush.msra.mxu0 %v376
  %874 = vmatpush.msra.mxu0 %v375
  %875 = vmatmul.f32.gmra.mxu0 %v35
  %v876 = vpop.f32.mrf.mxu0
  %v877 = vadd.f32 %v857, %v876
  %878 = vdwg.mxu0
  %879 = vmatpush.msra.mxu0 %v406
  %880 = vmatpush.msra.mxu0 %v405
  %881 = vmatpush.msra.mxu0 %v404
  %882 = vmatpush.msra.mxu0 %v403
  %883 = vmatpush.msra.mxu0 %v402
  %884 = vmatpush.msra.mxu0 %v401
  %885 = vmatpush.msra.mxu0 %v400
  %886 = vmatpush.msra.mxu0 %v399
  %887 = vmatpush.msra.mxu0 %v398
  %888 = vmatpush.msra.mxu0 %v397
  %889 = vmatpush.msra.mxu0 %v396
  %890 = vmatpush.msra.mxu0 %v395
  %891 = vmatpush.msra.mxu0 %v394
  %892 = vmatpush.msra.mxu0 %v393
  %893 = vmatpush.msra.mxu0 %v392
  %894 = vmatpush.msra.mxu0 %v391
  %895 = vmatmul.f32.gmra.mxu0 %v36
  %v896 = vpop.f32.mrf.mxu0
  %v897 = vadd.f32 %v877, %v896
  %898 = vdwg.mxu0
  %899 = vmatpush.msra.mxu0 %v422
  %900 = vmatpush.msra.mxu0 %v421
  %901 = vmatpush.msra.mxu0 %v420
  %902 = vmatpush.msra.mxu0 %v419
  %903 = vmatpush.msra.mxu0 %v418
  %904 = vmatpush.msra.mxu0 %v417
  %905 = vmatpush.msra.mxu0 %v416
  %906 = vmatpush.msra.mxu0 %v415
  %907 = vmatpush.msra.mxu0 %v414
  %908 = vmatpush.msra.mxu0 %v413
  %909 = vmatpush.msra.mxu0 %v412
  %910 = vmatpush.msra.mxu0 %v411
  %911 = vmatpush.msra.mxu0 %v410
  %912 = vmatpush.msra.mxu0 %v409
  %913 = vmatpush.msra.mxu0 %v408
  %914 = vmatpush.msra.mxu0 %v407
  %915 = vmatmul.f32.gmra.mxu0 %v37
  %v916 = vpop.f32.mrf.mxu0
  %v917 = vadd.f32 %v897, %v916
  %918 = vdwg.mxu0
  %919 = vmatpush.msra.mxu0 0.0
  %920 = vmatpush.msra.mxu0 0.0
  %921 = vmatpush.msra.mxu0 0.0
  %922 = vmatpush.msra.mxu0 0.0
  %923 = vmatpush.msra.mxu0 0.0
  %924 = vmatpush.msra.mxu0 0.0
  %925 = vmatpush.msra.mxu0 0.0
  %926 = vmatpush.msra.mxu0 0.0
  %927 = vmatpush.msra.mxu0 %v430
  %928 = vmatpush.msra.mxu0 %v429
  %929 = vmatpush.msra.mxu0 %v428
  %930 = vmatpush.msra.mxu0 %v427
  %931 = vmatpush.msra.mxu0 %v426
  %932 = vmatpush.msra.mxu0 %v425
  %933 = vmatpush.msra.mxu0 %v424
  %934 = vmatpush.msra.mxu0 %v423
  %935 = vmatmul.f32.gmra.mxu0 %v437
  %v936 = vpop.f32.mrf.mxu0
  %v937 = vadd.f32 %v917, %v936
  %938 = vdwg.mxu0
  %vm939 = vcmask 80896
  %940 = vst.msk [vmem:[%s3] sm:$0xff] %vm939, %v937
  // Predicated region
  $region14: #{cnn_forward.11} parent=0 // pred_check
    _
  $region15: #{cnn_forward.11} parent=0 // pred_check_branch
    %942 = sbr.rel (0) target = $region17
  $region16: #{cnn_forward.11} parent=0 // pred_region
    _
  $region17: #{cnn_forward.11} parent=0 // pred_fallthru
    _
  // Predicated region
  $region18: #{cnn_forward.11} parent=0 // pred_check
    _
  $region19: #{cnn_forward.11} parent=0 // pred_check_branch
    %944 = sbr.rel (0) target = $region21
  $region20: #{cnn_forward.11} parent=0 // pred_region
    _
  $region21: #{cnn_forward.11} parent=0 // pred_fallthru
    _

</llo_original>
